<compile_context>
chip_gen: v6e
topology: v6e:2x2x1
jax: 0.10.0
libtpu: 0.0.40
codegen_flags: <defaults>
</compile_context>

<pallas_src>
import functools

import jax
import jax.numpy as jnp
from jax.experimental import pallas as pl
from jax.experimental.pallas import tpu as pltpu


# ------------------------------- helpers ----------------------------------- #

def _round_up(x, m):
    return ((x + m - 1) // m) * m


def _swish(y):
    # y * sigmoid(y); approx reciprocal rides the EUP slot (nearly free in the bundle).
    return y * pl.reciprocal(1.0 + jnp.exp(-y), approx=True)


def _fold_bn(gamma, beta, mean, var, lin_bias=None, eps=1e-5):
    """Fold eval-mode BatchNorm (and optional preceding linear bias) into scale/bias."""
    scale = gamma / jnp.sqrt(var + eps)
    bias = beta - mean * scale
    if lin_bias is not None:
        bias = bias + lin_bias * scale
    return scale, bias


def _vmem_limit_bytes():
    """Generation-aware scoped-VMEM budget (v7x: 64 MiB total vs 128 MiB on v5e/v6e)."""
    try:
        cap = int(pltpu.get_tpu_info().vmem_capacity_bytes)
    except Exception:
        cap = 64 * 1024 * 1024                       # conservative (v7x) fallback
    return max(16 * 1024 * 1024, min(cap // 2, 96 * 1024 * 1024))


def _spatial_plan(P, B, vmem_limit):
    """Pick (n_split, n_tiles, tile_rows, padded_P).

    n_split: independent partial GAP sums along a leading "parallel" grid axis so
    both TensorCores on v7x get work (a single cheap extra grid step on 1-TC chips).
    tile_rows is sized from the VMEM budget: cols are lane-padded Kp=32 -> 128 (x4)
    and double-buffered, plus two f32 (B*tp, 128) intermediates (h, h2) + slack.
    """
    bytes_per_row = B * 128 * (2 * 2 + 4 + 4 + 4)    # ~2 KiB per spatial row per batch row
    cap_rows = max(64, (vmem_limit - (4 << 20)) // bytes_per_row)
    tile_cap = max(8, min(8192, (cap_rows // 8) * 8))
    n_split = 2 if P >= 512 else 1
    share = -(-P // n_split)
    tile = min(tile_cap, _round_up(share, 8))
    n_tiles = -(-share // tile)
    p_pad = n_split * n_tiles * tile
    return n_split, n_tiles, tile, p_pad


# --------------------------- fused stem + GAP kernel ------------------------ #

def _stem_gap_kernel(cols_ref, w1_ref, b1_ref, w2_ref, b2_ref,
                     part_ref, acc_ref, *, true_p, inv_p, needs_mask):
    """Per spatial tile: swish(cols@w1 + b1) -> swish(. @ w2 + b2), accumulate the
    spatial sum into VMEM scratch; emit this split's partial GAP on the last tile."""
    t = pl.program_id(1)

    @pl.when(t == 0)
    def _():
        acc_ref[...] = jnp.zeros_like(acc_ref)

    Bb, tp, Kp = cols_ref.shape
    x = cols_ref[...].reshape(Bb * tp, Kp)                               # bf16
    # BN scales are folded into the bf16 weights -> matmul + bias + swish only.
    h = jnp.dot(x, w1_ref[...], preferred_element_type=jnp.float32) + b1_ref[...]
    h = _swish(h)
    h2 = jnp.dot(h.astype(jnp.bfloat16), w2_ref[...],
                 preferred_element_type=jnp.float32) + b2_ref[...]
    h2 = _swish(h2).reshape(Bb, tp, -1)

    if needs_mask:
        # Zero-padded spatial rows still yield swish(bias) != 0 -> mask before GAP.
        base = (pl.program_id(0) * pl.num_programs(1) + t) * tp
        row = base + jax.lax.broadcasted_iota(jnp.int32, (Bb, tp, 1), 1)
        h2 = jnp.where(row < true_p, h2, 0.0)

    acc_ref[...] += h2.sum(axis=1)                                       # (B, C2)

    @pl.when(t == pl.num_programs(1) - 1)
    def _():
        part_ref[...] = (acc_ref[...] * inv_p).astype(part_ref.dtype)


def fused_stem_gap(cols_bpk, w1, b1, w2, b2):
    """cols [B, P, Kp] -> partial GAP features [n_split, B, C2] in one pallas_call."""
    B, P, Kp = cols_bpk.shape
    C1 = w1.shape[1]
    C2 = w2.shape[1]

    vmem_limit = _vmem_limit_bytes()
    n_split, n_tiles, tp, p_pad = _spatial_plan(P, B, vmem_limit)

    cols = cols_bpk.astype(jnp.bfloat16)
    if p_pad > P:
        cols = jnp.pad(cols, ((0, 0), (0, p_pad - P), (0, 0)))

    M = B * P
    cost = pl.CostEstimate(
        flops=2 * M * (Kp * C1 + C1 * C2),
        transcendentals=2 * M * (C1 + C2),                 # exp + approx reciprocal
        bytes_accessed=(B * p_pad * Kp * 2                 # bf16 cols
                        + (w1.size + w2.size) * 2          # bf16 weights
                        + (b1.size + b2.size) * 4
                        + n_split * B * C2 * 4),           # f32 partial outputs
    )
    kern = functools.partial(_stem_gap_kernel, true_p=P, inv_p=1.0 / P,
                             needs_mask=(p_pad != P))

    def cols_map(c, t, _n=n_tiles):
        return (0, c * _n + t, 0)

    return pl.pallas_call(
        kern,
        out_shape=jax.ShapeDtypeStruct((n_split, B, C2), jnp.float32),
        grid_spec=pltpu.PrefetchScalarGridSpec(
            num_scalar_prefetch=0,
            grid=(n_split, n_tiles),
            in_specs=[
                pl.BlockSpec((B, tp, Kp), cols_map),              # streamed cols
                pl.BlockSpec((Kp, C1), lambda c, t: (0, 0)),      # resident weights
                pl.BlockSpec((1, C1), lambda c, t: (0, 0)),
                pl.BlockSpec((C1, C2), lambda c, t: (0, 0)),
                pl.BlockSpec((1, C2), lambda c, t: (0, 0)),
            ],
            out_specs=pl.BlockSpec((None, B, C2), lambda c, t: (c, 0, 0)),
            scratch_shapes=[pltpu.VMEM((B, C2), jnp.float32)],
        ),
        compiler_params=pltpu.CompilerParams(
            dimension_semantics=("parallel", "arbitrary"),   # split x reduction
            vmem_limit_bytes=vmem_limit,
        ),
        cost_estimate=cost,
    )(cols,
      w1, b1.reshape(1, C1),
      w2, b2.reshape(1, C2))


# -------------- partial-sum combine + meta branch + fc head kernel ---------- #

def _head_kernel(part_ref, meta_ref,
                 mw1_ref, mb1_ref, mw2_ref, mb2_ref,
                 fwf_ref, fwm_ref, fb_ref,
                 out_ref, feat_ref, m_ref):
    """Combine per-core partial GAPs, meta MLP (Linear->BN->Swish x2, dropout = eval
    identity), and split-weight myfc (no concat needed)."""
    feat = part_ref[...].sum(axis=0)                         # (B, C2)
    feat_ref[...] = feat
    m = _swish(jnp.dot(meta_ref[...], mw1_ref[...],
                       preferred_element_type=jnp.float32) + mb1_ref[...])
    m = _swish(jnp.dot(m, mw2_ref[...],
                       preferred_element_type=jnp.float32) + mb2_ref[...])
    m_ref[...] = m
    # myfc(concat(feat, m)) == feat @ W[:C2] + m @ W[C2:] + b
    out_ref[...] = (jnp.dot(feat, fwf_ref[...], preferred_element_type=jnp.float32)
                    + jnp.dot(m, fwm_ref[...], preferred_element_type=jnp.float32)
                    + fb_ref[...])


def meta_fc_head(partial_feat, x_meta, p):
    S, B, C2 = partial_feat.shape
    F = x_meta.shape[1]
    D1 = p["meta_w1"].shape[1]
    D2 = p["meta_w2"].shape[1]
    O = p["fc_b"].shape[0]

    def full(shape):
        return pl.BlockSpec(shape, lambda *args: (0,) * len(shape))

    out, feat, m = pl.pallas_call(
        _head_kernel,
        out_shape=(jax.ShapeDtypeStruct((B, O), jnp.float32),
                   jax.ShapeDtypeStruct((B, C2), jnp.float32),
                   jax.ShapeDtypeStruct((B, D2), jnp.float32)),
        in_specs=[full((S, B, C2)), full((B, F)),
                  full((F, D1)), full((1, D1)),
                  full((D1, D2)), full((1, D2)),
                  full((C2, O)), full((D2, O)), full((1, O))],
        out_specs=(full((B, O)), full((B, C2)), full((B, D2))),
    )(partial_feat, x_meta.astype(jnp.float32),
      p["meta_w1"], p["meta_b1"].reshape(1, D1),
      p["meta_w2"], p["meta_b2"].reshape(1, D2),
      p["fc_w"][:C2], p["fc_w"][C2:], p["fc_b"].reshape(1, O))
    return out, feat, m


# -------------------------------- JAX glue ---------------------------------- #

def im2col(x_nhwc, k=3, stride=2, pad=1, pad_k_to=None):
    """Extract kxk patches (stride, zero-pad) -> [B, Ho*Wo, k*k*C] (dtype preserved)."""
    x = jnp.pad(x_nhwc, ((0, 0), (pad, pad), (pad, pad), (0, 0)))
    B, H, W, C = x.shape
    Ho = (H - k) // stride + 1
    Wo = (W - k) // stride + 1
    patches = []
    for di in range(k):
        for dj in range(k):
            patches.append(
                x[:, di:di + Ho * stride:stride, dj:dj + Wo * stride:stride, :])
    cols = jnp.stack(patches, axis=-2).reshape(B, Ho * Wo, k * k * C)
    if pad_k_to is not None and pad_k_to > k * k * C:
        cols = jnp.pad(cols, ((0, 0), (0, 0), (0, pad_k_to - k * k * C)))
    return cols, Ho, Wo


def init_params(key, *, c_in=3, stem_ch=128, in_ch=128,
                n_meta_features=8, n_meta_dim=(32, 16), out_dim=4):
    ks = jax.random.split(key, 8)
    f32 = jnp.float32

    def bn(c):
        return (jnp.ones((c,), f32), jnp.zeros((c,), f32),
                jnp.zeros((c,), f32), jnp.ones((c,), f32))

    p = {}
    # stem 3x3/2 conv (no bias) + BN + Swish; BN scale folded into the conv weights,
    # K padded 27 -> 32 (zero rows)
    k_raw = 3 * 3 * c_in
    Kp = _round_up(k_raw, 8)
    stem_w = 0.1 * jax.random.normal(ks[0], (k_raw, stem_ch), f32)
    s, b = _fold_bn(*bn(stem_ch))
    p["stem_w"] = jnp.pad(stem_w * s[None, :],
                          ((0, Kp - k_raw), (0, 0))).astype(jnp.bfloat16)
    p["stem_b"] = b
    # pointwise 1x1 conv (no bias) + BN + Swish; BN scale folded
    pw_w = 0.1 * jax.random.normal(ks[1], (stem_ch, in_ch), f32)
    s, b = _fold_bn(*bn(in_ch))
    p["pw_w"] = (pw_w * s[None, :]).astype(jnp.bfloat16)
    p["pw_b"] = b
    # meta branch (Linear -> BN1d -> Swish) x2, eval-mode BN folded into W / bias
    mw1 = 0.1 * jax.random.normal(ks[2], (n_meta_features, n_meta_dim[0]), f32)
    lb1 = 0.01 * jax.random.normal(ks[3], (n_meta_dim[0],), f32)
    s, b = _fold_bn(*bn(n_meta_dim[0]), lin_bias=lb1)
    p["meta_w1"], p["meta_b1"] = mw1 * s[None, :], b
    mw2 = 0.1 * jax.random.normal(ks[4], (n_meta_dim[0], n_meta_dim[1]), f32)
    lb2 = 0.01 * jax.random.normal(ks[5], (n_meta_dim[1],), f32)
    s, b = _fold_bn(*bn(n_meta_dim[1]), lin_bias=lb2)
    p["meta_w2"], p["meta_b2"] = mw2 * s[None, :], b
    # classifier head: Linear(in_ch + n_meta_dim[1], out_dim)
    p["fc_w"] = 0.1 * jax.random.normal(ks[6], (in_ch + n_meta_dim[1], out_dim), f32)
    p["fc_b"] = 0.01 * jax.random.normal(ks[7], (out_dim,), f32)
    return p


@functools.partial(jax.jit, static_argnames=("featurepred",))
def effnet_melanoma_forward(params, x_nchw, x_meta, featurepred=False):
    """Mirrors Effnet_Melanoma.forward (eval mode)."""
    x = jnp.transpose(x_nchw, (0, 2, 3, 1)).astype(jnp.bfloat16)   # NCHW -> NHWC, bf16
    Kp = params["stem_w"].shape[0]
    # TODO(synk): im2col still runs in XLA; building the 3x3/s2 patches in-kernel
    # (halo tiles on the raw NHWC image) would cut ~5x of input-side HBM traffic.
    cols, _, _ = im2col(x, k=3, stride=2, pad=1, pad_k_to=Kp)      # [B, P, Kp]

    # --- self.enet(x): fused synthetic stem + GAP, per-core partial sums ---
    partial_feat = fused_stem_gap(cols,
                                  params["stem_w"], params["stem_b"],
                                  params["pw_w"], params["pw_b"])

    # --- combine partials + meta branch + myfc head in one small kernel ---
    # Dropout(p=0.3)/(0.5) are eval-mode identities.
    # TODO(synk): n_meta_features == 0 path (no meta branch) not exercised here.
    out, feat, m = meta_fc_head(partial_feat, x_meta, params)

    if featurepred:
        return jnp.concatenate([feat, m], axis=1)
    # 5 eval-mode dropouts: mean of 5 identical myfc(x) terms == myfc(x)
    return out


# ---------------------------------- main ------------------------------------ #

if __name__ == "__main__":
    key = jax.random.PRNGKey(0)
    k_img, k_meta, k_par = jax.random.split(key, 3)

    B, C, H, W = 2, 3, 64, 64          # P = 32*32 = 1024 -> exercises the 2-way split
    n_meta_features = 8

    x = jax.random.normal(k_img, (B, C, H, W), jnp.float32)        # NCHW like PyTorch
    x_meta = jax.random.normal(k_meta, (B, n_meta_features), jnp.float32)

    params = init_params(k_par, c_in=C, stem_ch=128, in_ch=128,
                         n_meta_features=n_meta_features,
                         n_meta_dim=(32, 16), out_dim=4)

    out = effnet_melanoma_forward(params, x, x_meta)
    out = jax.block_until_ready(out)
    assert out.shape == (B, 4), out.shape
    print("KERNEL_OK")
</pallas_src>

<mosaic_0001>
module attributes {stable_mosaic.version = 11 : i64} {
  func.func @_stem_gap_kernel(%arg0: i32, %arg1: i32, %arg2: memref<2x512x32xbf16, #tpu.memory_space<vmem>>, %arg3: memref<32x128xbf16, #tpu.memory_space<vmem>>, %arg4: memref<1x128xf32, #tpu.memory_space<vmem>>, %arg5: memref<128x128xbf16, #tpu.memory_space<vmem>>, %arg6: memref<1x128xf32, #tpu.memory_space<vmem>>, %arg7: memref<1x2x128xf32, #tpu.memory_space<vmem>>, %arg8: memref<2x128xf32, #tpu.memory_space<vmem>>) attributes {dimension_semantics = [#tpu.dimension_semantics<parallel>, #tpu.dimension_semantics<arbitrary>], iteration_bounds = array<i64: 2, 1>, scalar_prefetch = 0 : i64, scratch_operands = 1 : i64, tpu.core_type = #tpu.core_type<tc>, window_params = [{transform_indices = @transform_0, window_bounds = array<i64: 2, 512, 32>}, {pipeline_mode = #tpu.pipeline_mode<synchronous>, transform_indices = @transform_1, window_bounds = array<i64: 32, 128>}, {pipeline_mode = #tpu.pipeline_mode<synchronous>, transform_indices = @transform_2, window_bounds = array<i64: 1, 128>}, {pipeline_mode = #tpu.pipeline_mode<synchronous>, transform_indices = @transform_3, window_bounds = array<i64: 128, 128>}, {pipeline_mode = #tpu.pipeline_mode<synchronous>, transform_indices = @transform_4, window_bounds = array<i64: 1, 128>}, {transform_indices = @transform_5, window_bounds = array<i64: 1, 2, 128>}]} {
    %c0_i32 = arith.constant 0 : i32
    %0 = arith.cmpi eq, %arg1, %c0_i32 : i32
    %1 = arith.extui %0 : i1 to i32
    %c0_i32_0 = arith.constant 0 : i32
    %2 = arith.cmpi ne, %1, %c0_i32_0 : i32
    scf.if %2 {
      %cst_23 = arith.constant 0.000000e+00 : f32
      %38 = vector.broadcast %cst_23 : f32 to vector<2x128xf32>
      %c0_24 = arith.constant 0 : index
      %c0_25 = arith.constant 0 : index
      %39 = vector.load %arg8[%c0_24, %c0_25] : memref<2x128xf32, #tpu.memory_space<vmem>>, vector<2x128xf32>
      tpu.vector_store %arg8[%c0_24, %c0_25], %38 {strides = array<i32>} : memref<2x128xf32, #tpu.memory_space<vmem>>, vector<2x128xf32>,
    } else {
    }
    %c0 = arith.constant 0 : index
    %c0_1 = arith.constant 0 : index
    %c0_2 = arith.constant 0 : index
    %3 = vector.load %arg2[%c0, %c0_1, %c0_2] : memref<2x512x32xbf16, #tpu.memory_space<vmem>>, vector<2x512x32xbf16>
    %4 = vector.shape_cast %3 : vector<2x512x32xbf16> to vector<1024x32xbf16>
    %c0_3 = arith.constant 0 : index
    %c0_4 = arith.constant 0 : index
    %5 = vector.load %arg3[%c0_3, %c0_4] : memref<32x128xbf16, #tpu.memory_space<vmem>>, vector<32x128xbf16>
    %cst = arith.constant dense<0.000000e+00> : vector<1024x128xf32>
    %6 = tpu.matmul %4, %5, %cst {dimension_numbers = #tpu.dot_dimension_numbers<[1], [0], [0], [1], [0, 0, 1, 1], [], []>} : vector<1024x32xbf16>, vector<32x128xbf16>, vector<1024x128xf32> -> vector<1024x128xf32>
    %c0_5 = arith.constant 0 : index
    %c0_6 = arith.constant 0 : index
    %7 = vector.load %arg4[%c0_5, %c0_6] : memref<1x128xf32, #tpu.memory_space<vmem>>, vector<1x128xf32>
    %8 = vector.broadcast %7 : vector<1x128xf32> to vector<1024x128xf32>
    %9 = arith.addf %6, %8 : vector<1024x128xf32>
    %cst_7 = arith.constant 0.000000e+00 : f32
    %10 = vector.broadcast %cst_7 : f32 to vector<1024x128xf32>
    %11 = arith.subf %10, %9 : vector<1024x128xf32>
    %12 = math.exp %11 : vector<1024x128xf32>
    %cst_8 = arith.constant 1.000000e+00 : f32
    %13 = vector.broadcast %cst_8 : f32 to vector<1024x128xf32>
    %14 = arith.addf %13, %12 : vector<1024x128xf32>
    %15 = tpu.reciprocal %14 {approx = true} : vector<1024x128xf32> -> vector<1024x128xf32>
    %16 = arith.mulf %9, %15 : vector<1024x128xf32>
    %17 = arith.truncf %16 : vector<1024x128xf32> to vector<1024x128xbf16>
    %c0_9 = arith.constant 0 : index
    %c0_10 = arith.constant 0 : index
    %18 = vector.load %arg5[%c0_9, %c0_10] : memref<128x128xbf16, #tpu.memory_space<vmem>>, vector<128x128xbf16>
    %cst_11 = arith.constant dense<0.000000e+00> : vector<1024x128xf32>
    %19 = tpu.matmul %17, %18, %cst_11 {dimension_numbers = #tpu.dot_dimension_numbers<[1], [0], [0], [1], [0, 0, 1, 1], [], []>} : vector<1024x128xbf16>, vector<128x128xbf16>, vector<1024x128xf32> -> vector<1024x128xf32>
    %c0_12 = arith.constant 0 : index
    %c0_13 = arith.constant 0 : index
    %20 = vector.load %arg6[%c0_12, %c0_13] : memref<1x128xf32, #tpu.memory_space<vmem>>, vector<1x128xf32>
    %21 = vector.broadcast %20 : vector<1x128xf32> to vector<1024x128xf32>
    %22 = arith.addf %19, %21 : vector<1024x128xf32>
    %cst_14 = arith.constant 0.000000e+00 : f32
    %23 = vector.broadcast %cst_14 : f32 to vector<1024x128xf32>
    %24 = arith.subf %23, %22 : vector<1024x128xf32>
    %25 = math.exp %24 : vector<1024x128xf32>
    %cst_15 = arith.constant 1.000000e+00 : f32
    %26 = vector.broadcast %cst_15 : f32 to vector<1024x128xf32>
    %27 = arith.addf %26, %25 : vector<1024x128xf32>
    %28 = tpu.reciprocal %27 {approx = true} : vector<1024x128xf32> -> vector<1024x128xf32>
    %29 = arith.mulf %22, %28 : vector<1024x128xf32>
    %30 = vector.shape_cast %29 : vector<1024x128xf32> to vector<2x512x128xf32>
    %c0_16 = arith.constant 0 : index
    %c0_17 = arith.constant 0 : index
    %31 = vector.load %arg8[%c0_16, %c0_17] : memref<2x128xf32, #tpu.memory_space<vmem>>, vector<2x128xf32>
    %cst_18 = arith.constant dense<0.000000e+00> : vector<2x128xf32>
    %32 = vector.multi_reduction <add>, %30, %cst_18 [1] : vector<2x512x128xf32> to vector<2x128xf32>
    %33 = arith.addf %31, %32 : vector<2x128xf32>
    %c0_19 = arith.constant 0 : index
    %c0_20 = arith.constant 0 : index
    %34 = vector.load %arg8[%c0_19, %c0_20] : memref<2x128xf32, #tpu.memory_space<vmem>>, vector<2x128xf32>
    tpu.vector_store %arg8[%c0_19, %c0_20], %33 {strides = array<i32>} : memref<2x128xf32, #tpu.memory_space<vmem>>, vector<2x128xf32>,
    %c0_i32_21 = arith.constant 0 : i32
    %35 = arith.cmpi eq, %arg1, %c0_i32_21 : i32
    %36 = arith.extui %35 : i1 to i32
    %c0_i32_22 = arith.constant 0 : i32
    %37 = arith.cmpi ne, %36, %c0_i32_22 : i32
    scf.if %37 {
      %c0_23 = arith.constant 0 : index
      %c0_24 = arith.constant 0 : index
      %38 = vector.load %arg8[%c0_23, %c0_24] : memref<2x128xf32, #tpu.memory_space<vmem>>, vector<2x128xf32>
      %cst_25 = arith.constant 9.765625E-4 : f32
      %39 = vector.broadcast %cst_25 : f32 to vector<2x128xf32>
      %40 = arith.mulf %38, %39 : vector<2x128xf32>
      %c0_26 = arith.constant 0 : index
      %c0_27 = arith.constant 0 : index
      %c0_28 = arith.constant 0 : index
      %41 = vector.load %arg7[%c0_26, %c0_27, %c0_28] : memref<1x2x128xf32, #tpu.memory_space<vmem>>, vector<1x2x128xf32>
      %42 = vector.shape_cast %41 : vector<1x2x128xf32> to vector<2x128xf32>
      %43 = vector.shape_cast %40 : vector<2x128xf32> to vector<1x2x128xf32>
      tpu.vector_store %arg7[%c0_26, %c0_27, %c0_28], %43 {strides = array<i32>} : memref<1x2x128xf32, #tpu.memory_space<vmem>>, vector<1x2x128xf32>,
    } else {
    }
    return
  }
  func.func @transform_0(%arg0: i32, %arg1: i32) -> (i32, i32, i32) {
    %c1_i32 = arith.constant 1 : i32
    %0 = arith.muli %arg0, %c1_i32 : i32
    %1 = arith.addi %0, %arg1 : i32
    %c0_i32 = arith.constant 0 : i32
    %c0_i32_0 = arith.constant 0 : i32
    %c0_i32_1 = arith.constant 0 : i32
    return %c0_i32, %1, %c0_i32_0 : i32, i32, i32
  }
  func.func @transform_1(%arg0: i32, %arg1: i32) -> (i32, i32) {
    %c0_i32 = arith.constant 0 : i32
    %c0_i32_0 = arith.constant 0 : i32
    %c0_i32_1 = arith.constant 0 : i32
    return %c0_i32, %c0_i32_0 : i32, i32
  }
  func.func @transform_2(%arg0: i32, %arg1: i32) -> (i32, i32) {
    %c0_i32 = arith.constant 0 : i32
    %c0_i32_0 = arith.constant 0 : i32
    %c0_i32_1 = arith.constant 0 : i32
    return %c0_i32, %c0_i32_0 : i32, i32
  }
  func.func @transform_3(%arg0: i32, %arg1: i32) -> (i32, i32) {
    %c0_i32 = arith.constant 0 : i32
    %c0_i32_0 = arith.constant 0 : i32
    %c0_i32_1 = arith.constant 0 : i32
    return %c0_i32, %c0_i32_0 : i32, i32
  }
  func.func @transform_4(%arg0: i32, %arg1: i32) -> (i32, i32) {
    %c0_i32 = arith.constant 0 : i32
    %c0_i32_0 = arith.constant 0 : i32
    %c0_i32_1 = arith.constant 0 : i32
    return %c0_i32, %c0_i32_0 : i32, i32
  }
  func.func @transform_5(%arg0: i32, %arg1: i32) -> (i32, i32, i32) {
    %c0_i32 = arith.constant 0 : i32
    %c0_i32_0 = arith.constant 0 : i32
    %c0_i32_1 = arith.constant 0 : i32
    return %arg0, %c0_i32, %c0_i32_0 : i32, i32, i32
  }
}

module attributes {stable_mosaic.version = 11 : i64} {
  func.func @_head_kernel(%arg0: memref<2x2x128xf32, #tpu.memory_space<vmem>>, %arg1: memref<2x8xf32, #tpu.memory_space<vmem>>, %arg2: memref<8x32xf32, #tpu.memory_space<vmem>>, %arg3: memref<1x32xf32, #tpu.memory_space<vmem>>, %arg4: memref<32x16xf32, #tpu.memory_space<vmem>>, %arg5: memref<1x16xf32, #tpu.memory_space<vmem>>, %arg6: memref<128x4xf32, #tpu.memory_space<vmem>>, %arg7: memref<16x4xf32, #tpu.memory_space<vmem>>, %arg8: memref<1x4xf32, #tpu.memory_space<vmem>>, %arg9: memref<2x4xf32, #tpu.memory_space<vmem>>, %arg10: memref<2x128xf32, #tpu.memory_space<vmem>>, %arg11: memref<2x16xf32, #tpu.memory_space<vmem>>) attributes {dimension_semantics = [], scalar_prefetch = 0 : i64, scratch_operands = 0 : i64, tpu.core_type = #tpu.core_type<tc>} {
    %c0 = arith.constant 0 : index
    %c0_0 = arith.constant 0 : index
    %c0_1 = arith.constant 0 : index
    %0 = vector.load %arg0[%c0, %c0_0, %c0_1] : memref<2x2x128xf32, #tpu.memory_space<vmem>>, vector<2x2x128xf32>
    %cst = arith.constant dense<0.000000e+00> : vector<2x128xf32>
    %1 = vector.multi_reduction <add>, %0, %cst [0] : vector<2x2x128xf32> to vector<2x128xf32>
    %c0_2 = arith.constant 0 : index
    %c0_3 = arith.constant 0 : index
    %2 = vector.load %arg10[%c0_2, %c0_3] : memref<2x128xf32, #tpu.memory_space<vmem>>, vector<2x128xf32>
    tpu.vector_store %arg10[%c0_2, %c0_3], %1 {strides = array<i32>} : memref<2x128xf32, #tpu.memory_space<vmem>>, vector<2x128xf32>,
    %c0_4 = arith.constant 0 : index
    %c0_5 = arith.constant 0 : index
    %3 = vector.load %arg1[%c0_4, %c0_5] : memref<2x8xf32, #tpu.memory_space<vmem>>, vector<2x8xf32>
    %c0_6 = arith.constant 0 : index
    %c0_7 = arith.constant 0 : index
    %4 = vector.load %arg2[%c0_6, %c0_7] : memref<8x32xf32, #tpu.memory_space<vmem>>, vector<8x32xf32>
    %cst_8 = arith.constant dense<0.000000e+00> : vector<2x32xf32>
    %5 = tpu.matmul %3, %4, %cst_8 {dimension_numbers = #tpu.dot_dimension_numbers<[1], [0], [0], [1], [0, 0, 1, 1], [], []>} : vector<2x8xf32>, vector<8x32xf32>, vector<2x32xf32> -> vector<2x32xf32>
    %c0_9 = arith.constant 0 : index
    %c0_10 = arith.constant 0 : index
    %6 = vector.load %arg3[%c0_9, %c0_10] : memref<1x32xf32, #tpu.memory_space<vmem>>, vector<1x32xf32>
    %7 = vector.broadcast %6 : vector<1x32xf32> to vector<2x32xf32>
    %8 = arith.addf %5, %7 : vector<2x32xf32>
    %cst_11 = arith.constant 0.000000e+00 : f32
    %9 = vector.broadcast %cst_11 : f32 to vector<2x32xf32>
    %10 = arith.subf %9, %8 : vector<2x32xf32>
    %11 = math.exp %10 : vector<2x32xf32>
    %cst_12 = arith.constant 1.000000e+00 : f32
    %12 = vector.broadcast %cst_12 : f32 to vector<2x32xf32>
    %13 = arith.addf %12, %11 : vector<2x32xf32>
    %14 = tpu.reciprocal %13 {approx = true} : vector<2x32xf32> -> vector<2x32xf32>
    %15 = arith.mulf %8, %14 : vector<2x32xf32>
    %c0_13 = arith.constant 0 : index
    %c0_14 = arith.constant 0 : index
    %16 = vector.load %arg4[%c0_13, %c0_14] : memref<32x16xf32, #tpu.memory_space<vmem>>, vector<32x16xf32>
    %cst_15 = arith.constant dense<0.000000e+00> : vector<2x16xf32>
    %17 = tpu.matmul %15, %16, %cst_15 {dimension_numbers = #tpu.dot_dimension_numbers<[1], [0], [0], [1], [0, 0, 1, 1], [], []>} : vector<2x32xf32>, vector<32x16xf32>, vector<2x16xf32> -> vector<2x16xf32>
    %c0_16 = arith.constant 0 : index
    %c0_17 = arith.constant 0 : index
    %18 = vector.load %arg5[%c0_16, %c0_17] : memref<1x16xf32, #tpu.memory_space<vmem>>, vector<1x16xf32>
    %19 = vector.broadcast %18 : vector<1x16xf32> to vector<2x16xf32>
    %20 = arith.addf %17, %19 : vector<2x16xf32>
    %cst_18 = arith.constant 0.000000e+00 : f32
    %21 = vector.broadcast %cst_18 : f32 to vector<2x16xf32>
    %22 = arith.subf %21, %20 : vector<2x16xf32>
    %23 = math.exp %22 : vector<2x16xf32>
    %cst_19 = arith.constant 1.000000e+00 : f32
    %24 = vector.broadcast %cst_19 : f32 to vector<2x16xf32>
    %25 = arith.addf %24, %23 : vector<2x16xf32>
    %26 = tpu.reciprocal %25 {approx = true} : vector<2x16xf32> -> vector<2x16xf32>
    %27 = arith.mulf %20, %26 : vector<2x16xf32>
    %c0_20 = arith.constant 0 : index
    %c0_21 = arith.constant 0 : index
    %28 = vector.load %arg11[%c0_20, %c0_21] : memref<2x16xf32, #tpu.memory_space<vmem>>, vector<2x16xf32>
    tpu.vector_store %arg11[%c0_20, %c0_21], %27 {strides = array<i32>} : memref<2x16xf32, #tpu.memory_space<vmem>>, vector<2x16xf32>,
    %c0_22 = arith.constant 0 : index
    %c0_23 = arith.constant 0 : index
    %29 = vector.load %arg6[%c0_22, %c0_23] : memref<128x4xf32, #tpu.memory_space<vmem>>, vector<128x4xf32>
    %cst_24 = arith.constant dense<0.000000e+00> : vector<2x4xf32>
    %30 = tpu.matmul %1, %29, %cst_24 {dimension_numbers = #tpu.dot_dimension_numbers<[1], [0], [0], [1], [0, 0, 1, 1], [], []>} : vector<2x128xf32>, vector<128x4xf32>, vector<2x4xf32> -> vector<2x4xf32>
    %c0_25 = arith.constant 0 : index
    %c0_26 = arith.constant 0 : index
    %31 = vector.load %arg7[%c0_25, %c0_26] : memref<16x4xf32, #tpu.memory_space<vmem>>, vector<16x4xf32>
    %cst_27 = arith.constant dense<0.000000e+00> : vector<2x4xf32>
    %32 = tpu.matmul %27, %31, %cst_27 {dimension_numbers = #tpu.dot_dimension_numbers<[1], [0], [0], [1], [0, 0, 1, 1], [], []>} : vector<2x16xf32>, vector<16x4xf32>, vector<2x4xf32> -> vector<2x4xf32>
    %33 = arith.addf %30, %32 : vector<2x4xf32>
    %c0_28 = arith.constant 0 : index
    %c0_29 = arith.constant 0 : index
    %34 = vector.load %arg8[%c0_28, %c0_29] : memref<1x4xf32, #tpu.memory_space<vmem>>, vector<1x4xf32>
    %35 = vector.broadcast %34 : vector<1x4xf32> to vector<2x4xf32>
    %36 = arith.addf %33, %35 : vector<2x4xf32>
    %c0_30 = arith.constant 0 : index
    %c0_31 = arith.constant 0 : index
    %37 = vector.load %arg9[%c0_30, %c0_31] : memref<2x4xf32, #tpu.memory_space<vmem>>, vector<2x4xf32>
    tpu.vector_store %arg9[%c0_30, %c0_31], %36 {strides = array<i32>} : memref<2x4xf32, #tpu.memory_space<vmem>>, vector<2x4xf32>,
    return
  }
}

</mosaic_0001>

<llo_original>
// kernel: effnet_melanoma_forward.3
$region0: #{effnet_melanoma_forward.3}
  #allocation0 [shape = 'u32[]', space=smem, size = 0x4, offset = 0x4, fixed_abs, tag = 'smem constant byte address 0x4 - core index']
  #allocation1 [shape = 'u32[144,128]{1,0:T(1,128)}', space=vmem, size = 0x12000, scoped, tag = 'internal scratch']
  %s0 = inlined_call_operand.vmem [shape: f32[2,2,128], index: 0, kind: input, shape index: {}]
  %s1 = inlined_call_operand.vmem [shape: f32[2,8], index: 1, kind: input, shape index: {}]
  %s2 = inlined_call_operand.vmem [shape: f32[8,32], index: 2, kind: input, shape index: {}]
  %s3 = inlined_call_operand.vmem [shape: f32[1,32], index: 3, kind: input, shape index: {}]
  %s4 = inlined_call_operand.vmem [shape: f32[32,16], index: 4, kind: input, shape index: {}]
  %s5 = inlined_call_operand.vmem [shape: f32[1,16], index: 5, kind: input, shape index: {}]
  %s6 = inlined_call_operand.vmem [shape: f32[128,4], index: 6, kind: input, shape index: {}]
  %s7 = inlined_call_operand.vmem [shape: f32[16,4], index: 7, kind: input, shape index: {}]
  %s8 = inlined_call_operand.vmem [shape: f32[1,4], index: 8, kind: input, shape index: {}]
  %s9 = inlined_call_operand.hbm [shape: f32[2,4], index: 9, kind: output, shape index: {0}]
  %s10 = inlined_call_operand.hbm [shape: f32[2,128], index: 10, kind: output, shape index: {1}]
  %s11 = inlined_call_operand.hbm [shape: f32[2,16], index: 11, kind: output, shape index: {2}]
  %12 = xla_tuple %s9, %s10, %s11
  %s13 = sld [smem:[#allocation0]]
  $region62: #{effnet_melanoma_forward.3} parent=0
    _
  %s15 = ssub.s32 1, %s13
  %s16 = scalar_select 0, %s15, %s13
  $region1: #{effnet_melanoma_forward.3} parent=0
    #allocation2 [shape = 'u8[1024]{0}', space=vmem, size = 0x400, scoped, tag = 'output window, operand 0, single buffered']
    #allocation3 [shape = 's32[1]{0}', space=sflag, size = 0x4, scoped, tag = 'scoped memory for effnet_melanoma_forward.3']
    #allocation4 [shape = 'u8[1024]{0}', space=vmem, size = 0x400, scoped, tag = 'output window, operand 1, single buffered']
    #allocation5 [shape = 's32[1]{0}', space=sflag, size = 0x4, scoped, tag = 'scoped memory for effnet_melanoma_forward.3']
    #allocation6 [shape = 'u8[1024]{0}', space=vmem, size = 0x400, scoped, tag = 'output window, operand 2, single buffered']
    %17 = vsyncpa [#allocation3], 0
    %18 = vsyncpa [#allocation5], 0
    // Predicated region
    $region2: #{effnet_melanoma_forward.3} parent=1 // pred_check
      _
    $region3: #{effnet_melanoma_forward.3} parent=1 // pred_check_branch
      %20 = sbr.rel (0) target = $region5
    $region4: #{effnet_melanoma_forward.3} parent=1 // pred_region
      _
    $region5: #{effnet_melanoma_forward.3} parent=1 // pred_fallthru
      _
    // Predicated region
    $region6: #{effnet_melanoma_forward.3} parent=1 // pred_check
      _
    $region7: #{effnet_melanoma_forward.3} parent=1 // pred_check_branch
      %22 = sbr.rel (0) target = $region9
    $region8: #{effnet_melanoma_forward.3} parent=1 // pred_region
      _
    $region9: #{effnet_melanoma_forward.3} parent=1 // pred_fallthru
      _
    // Predicated region
    $region10: #{effnet_melanoma_forward.3} parent=1 // pred_check
      _
    $region11: #{effnet_melanoma_forward.3} parent=1 // pred_check_branch
      %24 = sbr.rel (0) target = $region13
    $region12: #{effnet_melanoma_forward.3} parent=1 // pred_region
      _
    $region13: #{effnet_melanoma_forward.3} parent=1 // pred_fallthru
      _
    // Predicated region
    $region14: #{effnet_melanoma_forward.3} parent=1 // pred_check
      _
    $region15: #{effnet_melanoma_forward.3} parent=1 // pred_check_branch
      %26 = sbr.rel (0) target = $region17
    $region16: #{effnet_melanoma_forward.3} parent=1 // pred_region
      _
    $region17: #{effnet_melanoma_forward.3} parent=1 // pred_fallthru
      _
    // Predicated region
    $region18: #{effnet_melanoma_forward.3} parent=1 // pred_check
      _
    $region19: #{effnet_melanoma_forward.3} parent=1 // pred_check_branch
      %28 = sbr.rel (0) target = $region21
    $region20: #{effnet_melanoma_forward.3} parent=1 // pred_region
      _
    $region21: #{effnet_melanoma_forward.3} parent=1 // pred_fallthru
      _
    // Predicated region
    $region22: #{effnet_melanoma_forward.3} parent=1 // pred_check
      _
    $region23: #{effnet_melanoma_forward.3} parent=1 // pred_check_branch
      %30 = sbr.rel (0) target = $region25
    $region24: #{effnet_melanoma_forward.3} parent=1 // pred_region
      _
    $region25: #{effnet_melanoma_forward.3} parent=1 // pred_fallthru
      _
    // Predicated region
    $region26: #{effnet_melanoma_forward.3} parent=1 // pred_check
      _
    $region27: #{effnet_melanoma_forward.3} parent=1 // pred_check_branch
      %32 = sbr.rel (0) target = $region29
    $region28: #{effnet_melanoma_forward.3} parent=1 // pred_region
      _
    $region29: #{effnet_melanoma_forward.3} parent=1 // pred_fallthru
      _
    // Predicated region
    $region30: #{effnet_melanoma_forward.3} parent=1 // pred_check
      _
    $region31: #{effnet_melanoma_forward.3} parent=1 // pred_check_branch
      %34 = sbr.rel (0) target = $region33
    $region32: #{effnet_melanoma_forward.3} parent=1 // pred_region
      _
    $region33: #{effnet_melanoma_forward.3} parent=1 // pred_fallthru
      _
    // Predicated region
    $region34: #{effnet_melanoma_forward.3} parent=1 // pred_check
      _
    $region35: #{effnet_melanoma_forward.3} parent=1 // pred_check_branch
      %36 = sbr.rel (0) target = $region37
    $region36: #{effnet_melanoma_forward.3} parent=1 // pred_region
      _
    $region37: #{effnet_melanoma_forward.3} parent=1 // pred_fallthru
      _
    %v37 = vld [vmem:[%s0] sm:$0x3]
    %v38 = vld [vmem:[%s0 + $0x2] sm:$0x3]
    %vm39 = vcmask 1041408
    %v40 = vsel %vm39, %v37, 0.0
    %v41 = vsel %vm39, %v38, 0.0
    %v42 = vadd.f32 %v40, %v41
    %43 = vst [vmem:[#allocation4] sm:$0x3] %v42
    %v44 = vld [vmem:[%s1] sm:$0x3]
    %v45 = vld [vmem:[%s2] sm:$0xff]
    %v46 = vld [vmem:[%s3] sm:$0x1]
    %v48 = vlaneseq
    %v49 = vshrl.u32 %v48, 7
    %v50 = vsub.s32 0, %v49
    %v51 = vrot.slane %v46, %v50
    %vm53 = vcmask 64512
    %v55 = vsel %vm53, %v44, 0
    %57 = vmatprep.subr.mxu0 0.0
    %58 = vmatpush1.msra.mxu0 0.0
    %59 = vmatprep.subr.mxu0 0.0
    %60 = vmatpush1.msra.mxu0 0.0
    %61 = vmatprep.subr.mxu0 0.0
    %62 = vmatpush1.msra.mxu0 0.0
    %63 = vmatprep.subr.mxu0 0.0
    %64 = vmatpush1.msra.mxu0 0.0
    %65 = vmatprep.subr.mxu0 0.0
    %66 = vmatpush1.msra.mxu0 0.0
    %67 = vmatprep.subr.mxu0 0.0
    %68 = vmatpush1.msra.mxu0 0.0
    %69 = vmatprep.subr.mxu0 0.0
    %70 = vmatpush1.msra.mxu0 0.0
    %71 = vmatprep.subr.mxu0 0.0
    %72 = vmatpush1.msra.mxu0 0.0
    %73 = vmatprep.subr.mxu0 0.0
    %74 = vmatpush1.msra.mxu0 0.0
    %75 = vmatprep.subr.mxu0 0.0
    %76 = vmatpush1.msra.mxu0 0.0
    %77 = vmatprep.subr.mxu0 0.0
    %78 = vmatpush1.msra.mxu0 0.0
    %79 = vmatprep.subr.mxu0 0.0
    %80 = vmatpush1.msra.mxu0 0.0
    %81 = vmatprep.subr.mxu0 0.0
    %82 = vmatpush1.msra.mxu0 0.0
    %83 = vmatprep.subr.mxu0 0.0
    %84 = vmatpush1.msra.mxu0 0.0
    %85 = vmatprep.subr.mxu0 0.0
    %86 = vmatpush1.msra.mxu0 0.0
    %87 = vmatprep.subr.mxu0 0.0
    %88 = vmatpush1.msra.mxu0 %v45
    %89 = vmatprep.subr.mxu0 0.0
    %90 = vmatpush2.msra.mxu0 0.0
    %91 = vmatprep.subr.mxu0 0.0
    %92 = vmatpush2.msra.mxu0 0.0
    %93 = vmatprep.subr.mxu0 0.0
    %94 = vmatpush2.msra.mxu0 0.0
    %95 = vmatprep.subr.mxu0 0.0
    %96 = vmatpush2.msra.mxu0 0.0
    %97 = vmatprep.subr.mxu0 0.0
    %98 = vmatpush2.msra.mxu0 0.0
    %99 = vmatprep.subr.mxu0 0.0
    %100 = vmatpush2.msra.mxu0 0.0
    %101 = vmatprep.subr.mxu0 0.0
    %102 = vmatpush2.msra.mxu0 0.0
    %103 = vmatprep.subr.mxu0 0.0
    %104 = vmatpush2.msra.mxu0 0.0
    %105 = vmatprep.subr.mxu0 0.0
    %106 = vmatpush2.msra.mxu0 0.0
    %107 = vmatprep.subr.mxu0 0.0
    %108 = vmatpush2.msra.mxu0 0.0
    %109 = vmatprep.subr.mxu0 0.0
    %110 = vmatpush2.msra.mxu0 0.0
    %111 = vmatprep.subr.mxu0 0.0
    %112 = vmatpush2.msra.mxu0 0.0
    %113 = vmatprep.subr.mxu0 0.0
    %114 = vmatpush2.msra.mxu0 0.0
    %115 = vmatprep.subr.mxu0 0.0
    %116 = vmatpush2.msra.mxu0 0.0
    %117 = vmatprep.subr.mxu0 0.0
    %118 = vmatpush2.msra.mxu0 0.0
    %119 = vmatprep.subr.mxu0 0.0
    %120 = vmatpush2.msra.mxu0 0.0
    %121 = vmatprep.mubr.f32.mxu0 0.0
    %122 = vmatmul.mubr.f32.gmra.mxu0 %v55
    %v123 = vpop.f32.mrf.mxu0
    %v124 = vadd.f32 %v51, %v123
    %v125 = vpop.f32.mrf.mxu0
    %126 = vdwg.mxu0
    %v127 = vsub.f32 0.0, %v124
    %v128 = vmul.f32 %v127, 1.442695
    %v129 = vpow.pop %v128
    %v130 = vadd.f32 %v129, 1.0
    %v131 = vrcp.pop %v130
    %v132 = vmul.f32 %v124, %v131
    %v133 = vld [vmem:[%s4] sm:$0xff]
    %v134 = vld [vmem:[%s4 + $0x8] sm:$0xff]
    %v135 = vld [vmem:[%s4 + $0x10] sm:$0xff]
    %v136 = vld [vmem:[%s4 + $0x18] sm:$0xff]
    %v137 = vld [vmem:[%s5] sm:$0x1]
    %v139 = vlaneseq
    %v140 = vshrl.u32 %v139, 7
    %v141 = vsub.s32 0, %v140
    %v142 = vrot.slane %v137, %v141
    %vm144 = vcmask 261120
    %v146 = vsel %vm144, %v132, 0
    %148 = vmatprep.subr.mxu0 0.0
    %149 = vmatpush1.msra.mxu0 0.0
    %150 = vmatprep.subr.mxu0 0.0
    %151 = vmatpush1.msra.mxu0 0.0
    %152 = vmatprep.subr.mxu0 0.0
    %153 = vmatpush1.msra.mxu0 0.0
    %154 = vmatprep.subr.mxu0 0.0
    %155 = vmatpush1.msra.mxu0 0.0
    %156 = vmatprep.subr.mxu0 0.0
    %157 = vmatpush1.msra.mxu0 0.0
    %158 = vmatprep.subr.mxu0 0.0
    %159 = vmatpush1.msra.mxu0 0.0
    %160 = vmatprep.subr.mxu0 0.0
    %161 = vmatpush1.msra.mxu0 0.0
    %162 = vmatprep.subr.mxu0 0.0
    %163 = vmatpush1.msra.mxu0 0.0
    %164 = vmatprep.subr.mxu0 0.0
    %165 = vmatpush1.msra.mxu0 0.0
    %166 = vmatprep.subr.mxu0 0.0
    %167 = vmatpush1.msra.mxu0 0.0
    %168 = vmatprep.subr.mxu0 0.0
    %169 = vmatpush1.msra.mxu0 0.0
    %170 = vmatprep.subr.mxu0 0.0
    %171 = vmatpush1.msra.mxu0 0.0
    %172 = vmatprep.subr.mxu0 0.0
    %173 = vmatpush1.msra.mxu0 %v136
    %174 = vmatprep.subr.mxu0 0.0
    %175 = vmatpush1.msra.mxu0 %v135
    %176 = vmatprep.subr.mxu0 0.0
    %177 = vmatpush1.msra.mxu0 %v134
    %178 = vmatprep.subr.mxu0 0.0
    %179 = vmatpush1.msra.mxu0 %v133
    %180 = vmatprep.subr.mxu0 0.0
    %181 = vmatpush2.msra.mxu0 0.0
    %182 = vmatprep.subr.mxu0 0.0
    %183 = vmatpush2.msra.mxu0 0.0
    %184 = vmatprep.subr.mxu0 0.0
    %185 = vmatpush2.msra.mxu0 0.0
    %186 = vmatprep.subr.mxu0 0.0
    %187 = vmatpush2.msra.mxu0 0.0
    %188 = vmatprep.subr.mxu0 0.0
    %189 = vmatpush2.msra.mxu0 0.0
    %190 = vmatprep.subr.mxu0 0.0
    %191 = vmatpush2.msra.mxu0 0.0
    %192 = vmatprep.subr.mxu0 0.0
    %193 = vmatpush2.msra.mxu0 0.0
    %194 = vmatprep.subr.mxu0 0.0
    %195 = vmatpush2.msra.mxu0 0.0
    %196 = vmatprep.subr.mxu0 0.0
    %197 = vmatpush2.msra.mxu0 0.0
    %198 = vmatprep.subr.mxu0 0.0
    %199 = vmatpush2.msra.mxu0 0.0
    %200 = vmatprep.subr.mxu0 0.0
    %201 = vmatpush2.msra.mxu0 0.0
    %202 = vmatprep.subr.mxu0 0.0
    %203 = vmatpush2.msra.mxu0 0.0
    %204 = vmatprep.subr.mxu0 0.0
    %205 = vmatpush2.msra.mxu0 0.0
    %206 = vmatprep.subr.mxu0 0.0
    %207 = vmatpush2.msra.mxu0 0.0
    %208 = vmatprep.subr.mxu0 0.0
    %209 = vmatpush2.msra.mxu0 0.0
    %210 = vmatprep.subr.mxu0 0.0
    %211 = vmatpush2.msra.mxu0 0.0
    %212 = vmatprep.mubr.f32.mxu0 0.0
    %213 = vmatmul.mubr.f32.gmra.mxu0 %v146
    %v214 = vpop.f32.mrf.mxu0
    %v215 = vadd.f32 %v142, %v214
    %v216 = vpop.f32.mrf.mxu0
    %217 = vdwg.mxu0
    %v218 = vsub.f32 0.0, %v215
    %v219 = vmul.f32 %v218, 1.442695
    %v220 = vpow.pop %v219
    %v221 = vadd.f32 %v220, 1.0
    %v222 = vrcp.pop %v221
    %v223 = vmul.f32 %v215, %v222
    %vm224 = vcmask 123904
    %225 = vst.msk [vmem:[#allocation6] sm:$0x3] %vm224, %v223
    %v226 = vld [vmem:[%s6] sm:$0xff]
    %v227 = vld [vmem:[%s6 + $0x8] sm:$0xff]
    %v228 = vld [vmem:[%s6 + $0x10] sm:$0xff]
    %v229 = vld [vmem:[%s6 + $0x18] sm:$0xff]
    %v230 = vld [vmem:[%s6 + $0x20] sm:$0xff]
    %v231 = vld [vmem:[%s6 + $0x28] sm:$0xff]
    %v232 = vld [vmem:[%s6 + $0x30] sm:$0xff]
    %v233 = vld [vmem:[%s6 + $0x38] sm:$0xff]
    %v234 = vld [vmem:[%s6 + $0x40] sm:$0xff]
    %v235 = vld [vmem:[%s6 + $0x48] sm:$0xff]
    %v236 = vld [vmem:[%s6 + $0x50] sm:$0xff]
    %v237 = vld [vmem:[%s6 + $0x58] sm:$0xff]
    %v238 = vld [vmem:[%s6 + $0x60] sm:$0xff]
    %v239 = vld [vmem:[%s6 + $0x68] sm:$0xff]
    %v240 = vld [vmem:[%s6 + $0x70] sm:$0xff]
    %v241 = vld [vmem:[%s6 + $0x78] sm:$0xff]
    %v242 = vld [vmem:[%s7] sm:$0xff]
    %v243 = vld [vmem:[%s7 + $0x8] sm:$0xff]
    %vm244 = vcmask 130048
    %v246 = vsel %vm244, %v223, 0
    %248 = vmatprep.subr.mxu0 0.0
    %249 = vmatpush1.msra.mxu0 0.0
    %250 = vmatprep.subr.mxu0 0.0
    %251 = vmatpush1.msra.mxu0 0.0
    %252 = vmatprep.subr.mxu0 0.0
    %253 = vmatpush1.msra.mxu0 0.0
    %254 = vmatprep.subr.mxu0 0.0
    %255 = vmatpush1.msra.mxu0 0.0
    %256 = vmatprep.subr.mxu0 0.0
    %257 = vmatpush1.msra.mxu0 0.0
    %258 = vmatprep.subr.mxu0 0.0
    %259 = vmatpush1.msra.mxu0 0.0
    %260 = vmatprep.subr.mxu0 0.0
    %261 = vmatpush1.msra.mxu0 0.0
    %262 = vmatprep.subr.mxu0 0.0
    %263 = vmatpush1.msra.mxu0 0.0
    %264 = vmatprep.subr.mxu0 0.0
    %265 = vmatpush1.msra.mxu0 0.0
    %266 = vmatprep.subr.mxu0 0.0
    %267 = vmatpush1.msra.mxu0 0.0
    %268 = vmatprep.subr.mxu0 0.0
    %269 = vmatpush1.msra.mxu0 0.0
    %270 = vmatprep.subr.mxu0 0.0
    %271 = vmatpush1.msra.mxu0 0.0
    %272 = vmatprep.subr.mxu0 0.0
    %273 = vmatpush1.msra.mxu0 0.0
    %274 = vmatprep.subr.mxu0 0.0
    %275 = vmatpush1.msra.mxu0 0.0
    %276 = vmatprep.subr.mxu0 0.0
    %277 = vmatpush1.msra.mxu0 %v243
    %278 = vmatprep.subr.mxu0 0.0
    %279 = vmatpush1.msra.mxu0 %v242
    %280 = vmatprep.subr.mxu0 0.0
    %281 = vmatpush2.msra.mxu0 0.0
    %282 = vmatprep.subr.mxu0 0.0
    %283 = vmatpush2.msra.mxu0 0.0
    %284 = vmatprep.subr.mxu0 0.0
    %285 = vmatpush2.msra.mxu0 0.0
    %286 = vmatprep.subr.mxu0 0.0
    %287 = vmatpush2.msra.mxu0 0.0
    %288 = vmatprep.subr.mxu0 0.0
    %289 = vmatpush2.msra.mxu0 0.0
    %290 = vmatprep.subr.mxu0 0.0
    %291 = vmatpush2.msra.mxu0 0.0
    %292 = vmatprep.subr.mxu0 0.0
    %293 = vmatpush2.msra.mxu0 0.0
    %294 = vmatprep.subr.mxu0 0.0
    %295 = vmatpush2.msra.mxu0 0.0
    %296 = vmatprep.subr.mxu0 0.0
    %297 = vmatpush2.msra.mxu0 0.0
    %298 = vmatprep.subr.mxu0 0.0
    %299 = vmatpush2.msra.mxu0 0.0
    %300 = vmatprep.subr.mxu0 0.0
    %301 = vmatpush2.msra.mxu0 0.0
    %302 = vmatprep.subr.mxu0 0.0
    %303 = vmatpush2.msra.mxu0 0.0
    %304 = vmatprep.subr.mxu0 0.0
    %305 = vmatpush2.msra.mxu0 0.0
    %306 = vmatprep.subr.mxu0 0.0
    %307 = vmatpush2.msra.mxu0 0.0
    %308 = vmatprep.subr.mxu0 0.0
    %309 = vmatpush2.msra.mxu0 0.0
    %310 = vmatprep.subr.mxu0 0.0
    %311 = vmatpush2.msra.mxu0 0.0
    %312 = vmatprep.mubr.f32.mxu0 0.0
    %313 = vmatmul.mubr.f32.gmra.mxu0 %v246
    %v314 = vpop.f32.mrf.mxu0
    %v315 = vadd.f32 0.0, %v314
    %v316 = vpop.f32.mrf.mxu0
    %317 = vdwg.mxu0
    %318 = vmatprep.subr.mxu0 0.0
    %319 = vmatpush1.msra.mxu0 %v241
    %320 = vmatprep.subr.mxu0 0.0
    %321 = vmatpush1.msra.mxu0 %v240
    %322 = vmatprep.subr.mxu0 0.0
    %323 = vmatpush1.msra.mxu0 %v239
    %324 = vmatprep.subr.mxu0 0.0
    %325 = vmatpush1.msra.mxu0 %v238
    %326 = vmatprep.subr.mxu0 0.0
    %327 = vmatpush1.msra.mxu0 %v237
    %328 = vmatprep.subr.mxu0 0.0
    %329 = vmatpush1.msra.mxu0 %v236
    %330 = vmatprep.subr.mxu0 0.0
    %331 = vmatpush1.msra.mxu0 %v235
    %332 = vmatprep.subr.mxu0 0.0
    %333 = vmatpush1.msra.mxu0 %v234
    %334 = vmatprep.subr.mxu0 0.0
    %335 = vmatpush1.msra.mxu0 %v233
    %336 = vmatprep.subr.mxu0 0.0
    %337 = vmatpush1.msra.mxu0 %v232
    %338 = vmatprep.subr.mxu0 0.0
    %339 = vmatpush1.msra.mxu0 %v231
    %340 = vmatprep.subr.mxu0 0.0
    %341 = vmatpush1.msra.mxu0 %v230
    %342 = vmatprep.subr.mxu0 0.0
    %343 = vmatpush1.msra.mxu0 %v229
    %344 = vmatprep.subr.mxu0 0.0
    %345 = vmatpush1.msra.mxu0 %v228
    %346 = vmatprep.subr.mxu0 0.0
    %347 = vmatpush1.msra.mxu0 %v227
    %348 = vmatprep.subr.mxu0 0.0
    %349 = vmatpush1.msra.mxu0 %v226
    %350 = vmatprep.subr.mxu0 0.0
    %351 = vmatpush2.msra.mxu0 0.0
    %352 = vmatprep.subr.mxu0 0.0
    %353 = vmatpush2.msra.mxu0 0.0
    %354 = vmatprep.subr.mxu0 0.0
    %355 = vmatpush2.msra.mxu0 0.0
    %356 = vmatprep.subr.mxu0 0.0
    %357 = vmatpush2.msra.mxu0 0.0
    %358 = vmatprep.subr.mxu0 0.0
    %359 = vmatpush2.msra.mxu0 0.0
    %360 = vmatprep.subr.mxu0 0.0
    %361 = vmatpush2.msra.mxu0 0.0
    %362 = vmatprep.subr.mxu0 0.0
    %363 = vmatpush2.msra.mxu0 0.0
    %364 = vmatprep.subr.mxu0 0.0
    %365 = vmatpush2.msra.mxu0 0.0
    %366 = vmatprep.subr.mxu0 0.0
    %367 = vmatpush2.msra.mxu0 0.0
    %368 = vmatprep.subr.mxu0 0.0
    %369 = vmatpush2.msra.mxu0 0.0
    %370 = vmatprep.subr.mxu0 0.0
    %371 = vmatpush2.msra.mxu0 0.0
    %372 = vmatprep.subr.mxu0 0.0
    %373 = vmatpush2.msra.mxu0 0.0
    %374 = vmatprep.subr.mxu0 0.0
    %375 = vmatpush2.msra.mxu0 0.0
    %376 = vmatprep.subr.mxu0 0.0
    %377 = vmatpush2.msra.mxu0 0.0
    %378 = vmatprep.subr.mxu0 0.0
    %379 = vmatpush2.msra.mxu0 0.0
    %380 = vmatprep.subr.mxu0 0.0
    %381 = vmatpush2.msra.mxu0 0.0
    %382 = vmatprep.mubr.f32.mxu0 0.0
    %383 = vmatmul.mubr.f32.gmra.mxu0 %v42
    %v384 = vpop.f32.mrf.mxu0
    %v385 = vadd.f32 %v315, %v384
    %v386 = vpop.f32.mrf.mxu0
    %387 = vdwg.mxu0
    %v388 = vld [vmem:[%s8] sm:$0x1]
    %v390 = vlaneseq
    %v391 = vshrl.u32 %v390, 7
    %v392 = vsub.s32 0, %v391
    %v393 = vrot.slane %v388, %v392
    %v395 = vadd.f32 %v385, %v393
    %vm396 = vcmask 25600
    %397 = vst.msk [vmem:[#allocation2] sm:$0x3] %vm396, %v395
    // Predicated region
    $region38: #{effnet_melanoma_forward.3} parent=1 // pred_check
      _
    $region39: #{effnet_melanoma_forward.3} parent=1 // pred_check_branch
      %399 = sbr.rel (0) target = $region41
    $region40: #{effnet_melanoma_forward.3} parent=1 // pred_region
      %s401 = ssub.s32 32, 32
      %402 = vsyncadd [#allocation3], %s401
      %s404 = sshll.u32 [#allocation2], 4
      %s405 = int_to_ptr.vmem [resolvable:$true] %s404
      %407 = dma.vmem_to_hbm [thread:$0]  %s405, 32, %s9, [#allocation3]
    $region41: #{effnet_melanoma_forward.3} parent=1 // pred_fallthru
      _
    // Predicated region
    $region42: #{effnet_melanoma_forward.3} parent=1 // pred_check
      _
    $region43: #{effnet_melanoma_forward.3} parent=1 // pred_check_branch
      %409 = sbr.rel (0) target = $region45
    $region44: #{effnet_melanoma_forward.3} parent=1 // pred_region
      %s411 = ssub.s32 32, 32
      %412 = vsyncadd [#allocation5], %s411
      %s414 = sshll.u32 [#allocation4], 4
      %s415 = int_to_ptr.vmem [resolvable:$true] %s414
      %417 = dma.vmem_to_hbm [thread:$0]  %s415, 32, %s10, [#allocation5]
    $region45: #{effnet_melanoma_forward.3} parent=1 // pred_fallthru
      _
    // Predicated region
    $region46: #{effnet_melanoma_forward.3} parent=1 // pred_check
      _
    $region47: #{effnet_melanoma_forward.3} parent=1 // pred_check_branch
      %419 = sbr.rel (0) target = $region49
    $region48: #{effnet_melanoma_forward.3} parent=1 // pred_region
      %s421 = ssub.s32 32, 32
      %422 = vsyncadd [#allocation5], %s421
      %s424 = sshll.u32 [#allocation6], 4
      %s425 = int_to_ptr.vmem [resolvable:$true] %s424
      %427 = dma.vmem_to_hbm [thread:$0]  %s425, 32, %s11, [#allocation5]
    $region49: #{effnet_melanoma_forward.3} parent=1 // pred_fallthru
      _
    // Predicated region
    $region50: #{effnet_melanoma_forward.3} parent=1 // pred_check
      _
    $region51: #{effnet_melanoma_forward.3} parent=1 // pred_check_branch
      %429 = sbr.rel (0) target = $region53
    $region52: #{effnet_melanoma_forward.3} parent=1 // pred_region
      %430 = dma.done [#allocation3], 32
    $region53: #{effnet_melanoma_forward.3} parent=1 // pred_fallthru
      _
    // Predicated region
    $region54: #{effnet_melanoma_forward.3} parent=1 // pred_check
      _
    $region55: #{effnet_melanoma_forward.3} parent=1 // pred_check_branch
      %432 = sbr.rel (0) target = $region57
    $region56: #{effnet_melanoma_forward.3} parent=1 // pred_region
      %433 = dma.done [#allocation5], 32
    $region57: #{effnet_melanoma_forward.3} parent=1 // pred_fallthru
      _
    // Predicated region
    $region58: #{effnet_melanoma_forward.3} parent=1 // pred_check
      _
    $region59: #{effnet_melanoma_forward.3} parent=1 // pred_check_branch
      %435 = sbr.rel (0) target = $region61
    $region60: #{effnet_melanoma_forward.3} parent=1 // pred_region
      %436 = dma.done [#allocation5], 32
    $region61: #{effnet_melanoma_forward.3} parent=1 // pred_fallthru
      _
    %437 = vsyncpa [#allocation3], 1
    %438 = vsyncpa [#allocation5], 1

// kernel: effnet_melanoma_forward.2
$region0: #{effnet_melanoma_forward.2}
  #allocation0 [shape = 'u32[]', space=smem, size = 0x4, offset = 0x4, fixed_abs, tag = 'smem constant byte address 0x4 - core index']
  #allocation1 [shape = 'u32[144,128]{1,0:T(1,128)}', space=vmem, size = 0x12000, scoped, tag = 'internal scratch']
  #allocation2 [shape = 'f32[2,128]{1,0:T(2,128)}', space=vmem, size = 0x400, scoped, tag = 'scratch operand']
  %s0 = inlined_call_operand.vmem [shape: bf16[2,1024,32], index: 0, kind: input, shape index: {}]
  %s1 = inlined_call_operand.vmem [shape: bf16[32,128], index: 1, kind: input, shape index: {}]
  %s2 = inlined_call_operand.vmem [shape: f32[1,128], index: 2, kind: input, shape index: {}]
  %s3 = inlined_call_operand.vmem [shape: bf16[128,128], index: 3, kind: input, shape index: {}]
  %s4 = inlined_call_operand.vmem [shape: f32[1,128], index: 4, kind: input, shape index: {}]
  %s5 = inlined_call_operand.vmem [shape: f32[2,2,128], index: 5, kind: output, shape index: {}]
  %s6 = sld [smem:[#allocation0]]
  $region102: #{effnet_melanoma_forward.2} parent=0
    _
  %s8 = ssub.s32 1, %s6
  %s9 = scalar_select 0, %s8, %s6
  $region1: #{effnet_melanoma_forward.2} parent=0
    #allocation3 [shape = 'u8[524288]{0}', space=vmem, size = 0x80000, scoped, tag = 'input window, operand 0']
    loop: start=0, step=1, limit=4
    $region2: #{effnet_melanoma_forward.2} parent=1 // loop_pre_header
      _
    $region3: #{effnet_melanoma_forward.2} parent=1 // loop_header
      %s11 = sphi 0, %s15
      %p12 = scmp.ge.s32.totalorder %s11, 4
      %s18 = sphi 0, %s30
      %s19 = sphi 0, %s26
      %s20 = sphi 0, %s18
      %s21 = sphi 0, %s19
      %s22 = sphi 0, %s20
      %s23 = sphi 0, %s21
      %s35 = sphi 0, %s37
      %s38 = sphi 0, %s35
      %s39 = sphi 0, %s38
      %s55 = sphi 0, %s39
      %s59 = sphi 0, %s59
      %s61 = sphi 0, %s59
      %s62 = sphi 0, %s61
      %s76 = sphi 0, %s62
      %s80 = sphi 0, %s80
      %s82 = sphi 0, %s80
      %s83 = sphi 0, %s82
      %s97 = sphi 0, %s83
      %s101 = sphi 0, %s101
      %s103 = sphi 0, %s101
      %s104 = sphi 0, %s103
      %s118 = sphi 0, %s104
      %s122 = sphi 0, %s122
      %s124 = sphi 0, %s122
      %s125 = sphi 0, %s124
      %s139 = sphi 0, %s125
      %s145 = sphi 0, %s147
      %s148 = sphi 0, %s145
      %s149 = sphi 0, %s148
      %s165 = sphi 0, %s149
    $region4: #{effnet_melanoma_forward.2} parent=1 // loop_header_branch
      %14 = sbr.rel (%p12) target = $region8
    $region5: #{effnet_melanoma_forward.2} parent=1 // loop_body
      %s16 = ssub.s32 %s11, 1
      %s17 = ssub.s32 %s11, 2
      %s24 = sadd.s32 1, %s19
      %p25 = scmp.ge.s32.totalorder %s24, 1
      %s26 = scalar_select %p25, 0, %s24
      %s27 = sadd.s32 1, %s18
      %s28 = scalar_select %p25, %s27, %s18
      %p29 = scmp.ge.s32.totalorder %s28, 2
      %s30 = scalar_select %p29, 0, %s28
      %s31 = sadd.s32 %s18, %s19
      %s32 = sadd.s32 %s30, %s26
      %s33 = ssub.s32 %s31, %s32
      %p34 = scmp.eq.s32.totalorder %s33, 0
      %s36 = sadd.s32 %s35, 1
      %s37 = scalar_select %p34, %s35, %s36
      %p40 = pneg %p34
      %p41 = scmp.eq.s32.totalorder %s11, 1
      %p42 = por %p40, %p41
      %p43 = scmp.ne.s32.totalorder %s35, %s38
      %p44 = scmp.eq.s32.totalorder %s11, 0
      %p45 = por %p43, %p44
      %p46 = scmp.ne.s32.totalorder %s35, %s38
      %p47 = scmp.eq.s32.totalorder %s16, 1
      %p48 = por %p46, %p47
      %p49 = scmp.ne.s32.totalorder %s38, %s39
      %p50 = scmp.eq.s32.totalorder %s16, 0
      %p51 = por %p49, %p50
      %p52 = scmp.ne.s32.totalorder %s38, %s39
      %p53 = scmp.eq.s32.totalorder %s17, 1
      %p54 = por %p52, %p53
      %p56 = scmp.ne.s32.totalorder %s39, %s55
      %p57 = scmp.eq.s32.totalorder %s17, 0
      %p58 = por %p56, %p57
      %s60 = sadd.s32 %s59, 1
      %p63 = scmp.eq.s32.totalorder %s11, 1
      %p64 = scmp.ne.s32.totalorder %s59, %s61
      %p65 = scmp.eq.s32.totalorder %s11, 0
      %p66 = por %p64, %p65
      %p67 = scmp.ne.s32.totalorder %s59, %s61
      %p68 = scmp.eq.s32.totalorder %s16, 1
      %p69 = por %p67, %p68
      %p70 = scmp.ne.s32.totalorder %s61, %s62
      %p71 = scmp.eq.s32.totalorder %s16, 0
      %p72 = por %p70, %p71
      %p73 = scmp.ne.s32.totalorder %s61, %s62
      %p74 = scmp.eq.s32.totalorder %s17, 1
      %p75 = por %p73, %p74
      %p77 = scmp.ne.s32.totalorder %s62, %s76
      %p78 = scmp.eq.s32.totalorder %s17, 0
      %p79 = por %p77, %p78
      %s81 = sadd.s32 %s80, 1
      %p84 = scmp.eq.s32.totalorder %s11, 1
      %p85 = scmp.ne.s32.totalorder %s80, %s82
      %p86 = scmp.eq.s32.totalorder %s11, 0
      %p87 = por %p85, %p86
      %p88 = scmp.ne.s32.totalorder %s80, %s82
      %p89 = scmp.eq.s32.totalorder %s16, 1
      %p90 = por %p88, %p89
      %p91 = scmp.ne.s32.totalorder %s82, %s83
      %p92 = scmp.eq.s32.totalorder %s16, 0
      %p93 = por %p91, %p92
      %p94 = scmp.ne.s32.totalorder %s82, %s83
      %p95 = scmp.eq.s32.totalorder %s17, 1
      %p96 = por %p94, %p95
      %p98 = scmp.ne.s32.totalorder %s83, %s97
      %p99 = scmp.eq.s32.totalorder %s17, 0
      %p100 = por %p98, %p99
      %s102 = sadd.s32 %s101, 1
      %p105 = scmp.eq.s32.totalorder %s11, 1
      %p106 = scmp.ne.s32.totalorder %s101, %s103
      %p107 = scmp.eq.s32.totalorder %s11, 0
      %p108 = por %p106, %p107
      %p109 = scmp.ne.s32.totalorder %s101, %s103
      %p110 = scmp.eq.s32.totalorder %s16, 1
      %p111 = por %p109, %p110
      %p112 = scmp.ne.s32.totalorder %s103, %s104
      %p113 = scmp.eq.s32.totalorder %s16, 0
      %p114 = por %p112, %p113
      %p115 = scmp.ne.s32.totalorder %s103, %s104
      %p116 = scmp.eq.s32.totalorder %s17, 1
      %p117 = por %p115, %p116
      %p119 = scmp.ne.s32.totalorder %s104, %s118
      %p120 = scmp.eq.s32.totalorder %s17, 0
      %p121 = por %p119, %p120
      %s123 = sadd.s32 %s122, 1
      %p126 = scmp.eq.s32.totalorder %s11, 1
      %p127 = scmp.ne.s32.totalorder %s122, %s124
      %p128 = scmp.eq.s32.totalorder %s11, 0
      %p129 = por %p127, %p128
      %p130 = scmp.ne.s32.totalorder %s122, %s124
      %p131 = scmp.eq.s32.totalorder %s16, 1
      %p132 = por %p130, %p131
      %p133 = scmp.ne.s32.totalorder %s124, %s125
      %p134 = scmp.eq.s32.totalorder %s16, 0
      %p135 = por %p133, %p134
      %p136 = scmp.ne.s32.totalorder %s124, %s125
      %p137 = scmp.eq.s32.totalorder %s17, 1
      %p138 = por %p136, %p137
      %p140 = scmp.ne.s32.totalorder %s125, %s139
      %p141 = scmp.eq.s32.totalorder %s17, 0
      %p142 = por %p140, %p141
      %s143 = ssub.s32 %s18, %s30
      %p144 = scmp.eq.s32.totalorder %s143, 0
      %s146 = sadd.s32 %s145, 1
      %s147 = scalar_select %p144, %s145, %s146
      %p150 = pneg %p144
      %p151 = scmp.eq.s32.totalorder %s11, 1
      %p152 = por %p150, %p151
      %p153 = scmp.ne.s32.totalorder %s145, %s148
      %p154 = scmp.eq.s32.totalorder %s11, 0
      %p155 = por %p153, %p154
      %p156 = scmp.ne.s32.totalorder %s145, %s148
      %p157 = scmp.eq.s32.totalorder %s16, 1
      %p158 = por %p156, %p157
      %p159 = scmp.ne.s32.totalorder %s148, %s149
      %p160 = scmp.eq.s32.totalorder %s16, 0
      %p161 = por %p159, %p160
      %p162 = scmp.ne.s32.totalorder %s148, %s149
      %p163 = scmp.eq.s32.totalorder %s17, 1
      %p164 = por %p162, %p163
      %p166 = scmp.ne.s32.totalorder %s149, %s165
      %p167 = scmp.eq.s32.totalorder %s17, 0
      %p168 = por %p166, %p167
      %p169 = scmp.le.s32.totalorder 1, %s11
      %p170 = scmp.lt.s32.totalorder %s11, 3
      %p171 = pnand %p169, %p170
      %p172 = pneg %p171
      // Predicated region
      $region9: #{effnet_melanoma_forward.2} parent=5 // pred_check
        _
      $region10: #{effnet_melanoma_forward.2} parent=5 // pred_check_branch
        %174 = sbr.rel (%p171) target = $region12
      $region11: #{effnet_melanoma_forward.2} parent=5 // pred_region
        %s175 = ssub.s32 %s11, 1
        // Predicated region
        $region13: #{effnet_melanoma_forward.2} parent=11 // pred_check
          %p176 = pneg %p72
        $region14: #{effnet_melanoma_forward.2} parent=11 // pred_check_branch
          %178 = sbr.rel (%p176) target = $region16
        $region15: #{effnet_melanoma_forward.2} parent=11 // pred_region
          _
        $region16: #{effnet_melanoma_forward.2} parent=11 // pred_fallthru
          _
        // Predicated region
        $region17: #{effnet_melanoma_forward.2} parent=11 // pred_check
          %p179 = pneg %p93
        $region18: #{effnet_melanoma_forward.2} parent=11 // pred_check_branch
          %181 = sbr.rel (%p179) target = $region20
        $region19: #{effnet_melanoma_forward.2} parent=11 // pred_region
          _
        $region20: #{effnet_melanoma_forward.2} parent=11 // pred_fallthru
          _
        // Predicated region
        $region21: #{effnet_melanoma_forward.2} parent=11 // pred_check
          %p182 = pneg %p114
        $region22: #{effnet_melanoma_forward.2} parent=11 // pred_check_branch
          %184 = sbr.rel (%p182) target = $region24
        $region23: #{effnet_melanoma_forward.2} parent=11 // pred_region
          _
        $region24: #{effnet_melanoma_forward.2} parent=11 // pred_fallthru
          _
        // Predicated region
        $region25: #{effnet_melanoma_forward.2} parent=11 // pred_check
          %p185 = pneg %p135
        $region26: #{effnet_melanoma_forward.2} parent=11 // pred_check_branch
          %187 = sbr.rel (%p185) target = $region28
        $region27: #{effnet_melanoma_forward.2} parent=11 // pred_region
          _
        $region28: #{effnet_melanoma_forward.2} parent=11 // pred_fallthru
          _
      $region12: #{effnet_melanoma_forward.2} parent=5 // pred_fallthru
        _
      %p188 = scmp.lt.s32.totalorder %s11, 2
      // Predicated region
      $region29: #{effnet_melanoma_forward.2} parent=5 // pred_check
        %p189 = pneg %p188
      $region30: #{effnet_melanoma_forward.2} parent=5 // pred_check_branch
        %191 = sbr.rel (%p189) target = $region32
      $region31: #{effnet_melanoma_forward.2} parent=5 // pred_region
        // Predicated region
        $region33: #{effnet_melanoma_forward.2} parent=31 // pred_check
          %p192 = pneg %p45
        $region34: #{effnet_melanoma_forward.2} parent=31 // pred_check_branch
          %194 = sbr.rel (%p192) target = $region36
        $region35: #{effnet_melanoma_forward.2} parent=31 // pred_region
          %s195 = sand.u32 %s35, 1
          %s196 = sand.u32 %s35, 1
          %s197 = smul.addr %s196, 512
          %s198 = scalar_lea.vmem [#allocation3], %s197
          %s199 = sadd.s32 %s18, %s19
          %s200 = smul.u32 64, %s199
          %s201 = smul.addr %s200, 4
          %s202 = scalar_lea.vmem %s0, %s201
          // Predicated region
          $region37: #{effnet_melanoma_forward.2} parent=35 // pred_check
            _
          $region38: #{effnet_melanoma_forward.2} parent=35 // pred_check_branch
            %204 = sbr.rel (0) target = $region40
          $region39: #{effnet_melanoma_forward.2} parent=35 // pred_region
            // Predicated region
            $region41: #{effnet_melanoma_forward.2} parent=39 // pred_check
              _
            $region42: #{effnet_melanoma_forward.2} parent=39 // pred_check_branch
              %206 = sbr.rel target = $region44
            $region43: #{effnet_melanoma_forward.2} parent=39 // pred_region
              // Predicated region
              $region56: #{effnet_melanoma_forward.2} parent=43 // pred_check
                _
              $region57: #{effnet_melanoma_forward.2} parent=43 // pred_check_branch
                %476 = sbr.rel (0) target = $region59
              $region58: #{effnet_melanoma_forward.2} parent=43 // pred_region
                loop: start=0, step=1, limit=1
                $region60: #{effnet_melanoma_forward.2} parent=58 // loop_pre_header
                  _
                $region61: #{effnet_melanoma_forward.2} parent=58 // loop_header
                  %s478 = sphi 0, %s482
                  %p479 = scmp.ge.s32.totalorder %s478, 1
                  %s483 = sphi %s202, %s202
                  %s484 = sphi %s198, %s198
                $region62: #{effnet_melanoma_forward.2} parent=58 // loop_header_branch
                  %481 = sbr.rel (%p479) target = $region66
                $region63: #{effnet_melanoma_forward.2} parent=58 // loop_body
                  _
                $region64: #{effnet_melanoma_forward.2} parent=58 // loop_footer
                  %s482 = sadd.s32 1, %s478
                $region65: #{effnet_melanoma_forward.2} parent=58 // loop_footer_branch
                  %477 = sbr.rel target = $region61
                $region66: #{effnet_melanoma_forward.2} parent=58 // loop_exit
                  _
                %s486 = ssub.s32 16, 1
                loop: start=0, step=1, limit=1
                $region67: #{effnet_melanoma_forward.2} parent=58 // loop_pre_header
                  _
                $region68: #{effnet_melanoma_forward.2} parent=58 // loop_header
                  %s488 = sphi 0, %s492
                  %p489 = scmp.ge.s32.totalorder %s488, 1
                  %s493 = sphi %s202, %s202
                  %s494 = sphi %s198, %s198
                $region69: #{effnet_melanoma_forward.2} parent=58 // loop_header_branch
                  %491 = sbr.rel (%p489) target = $region73
                $region70: #{effnet_melanoma_forward.2} parent=58 // loop_body
                  %v495 = vld [vmem:[%s493] sm:%s486]
                  %496 = vst [vmem:[%s494] sm:%s486] %v495
                  %v497 = vld [vmem:[%s493 + $0x4] sm:%s486]
                  %498 = vst [vmem:[%s494 + $0x4] sm:%s486] %v497
                  %v499 = vld [vmem:[%s493 + $0x8] sm:%s486]
                  %500 = vst [vmem:[%s494 + $0x8] sm:%s486] %v499
                  %v501 = vld [vmem:[%s493 + $0xc] sm:%s486]
                  %502 = vst [vmem:[%s494 + $0xc] sm:%s486] %v501
                  %v503 = vld [vmem:[%s493 + $0x10] sm:%s486]
                  %504 = vst [vmem:[%s494 + $0x10] sm:%s486] %v503
                  %v505 = vld [vmem:[%s493 + $0x14] sm:%s486]
                  %506 = vst [vmem:[%s494 + $0x14] sm:%s486] %v505
                  %v507 = vld [vmem:[%s493 + $0x18] sm:%s486]
                  %508 = vst [vmem:[%s494 + $0x18] sm:%s486] %v507
                  %v509 = vld [vmem:[%s493 + $0x1c] sm:%s486]
                  %510 = vst [vmem:[%s494 + $0x1c] sm:%s486] %v509
                  %v511 = vld [vmem:[%s493 + $0x20] sm:%s486]
                  %512 = vst [vmem:[%s494 + $0x20] sm:%s486] %v511
                  %v513 = vld [vmem:[%s493 + $0x24] sm:%s486]
                  %514 = vst [vmem:[%s494 + $0x24] sm:%s486] %v513
                  %v515 = vld [vmem:[%s493 + $0x28] sm:%s486]
                  %516 = vst [vmem:[%s494 + $0x28] sm:%s486] %v515
                  %v517 = vld [vmem:[%s493 + $0x2c] sm:%s486]
                  %518 = vst [vmem:[%s494 + $0x2c] sm:%s486] %v517
                  %v519 = vld [vmem:[%s493 + $0x30] sm:%s486]
                  %520 = vst [vmem:[%s494 + $0x30] sm:%s486] %v519
                  %v521 = vld [vmem:[%s493 + $0x34] sm:%s486]
                  %522 = vst [vmem:[%s494 + $0x34] sm:%s486] %v521
                  %v523 = vld [vmem:[%s493 + $0x38] sm:%s486]
                  %524 = vst [vmem:[%s494 + $0x38] sm:%s486] %v523
                  %v525 = vld [vmem:[%s493 + $0x3c] sm:%s486]
                  %526 = vst [vmem:[%s494 + $0x3c] sm:%s486] %v525
                  %v527 = vld [vmem:[%s493 + $0x40] sm:%s486]
                  %528 = vst [vmem:[%s494 + $0x40] sm:%s486] %v527
                  %v529 = vld [vmem:[%s493 + $0x44] sm:%s486]
                  %530 = vst [vmem:[%s494 + $0x44] sm:%s486] %v529
                  %v531 = vld [vmem:[%s493 + $0x48] sm:%s486]
                  %532 = vst [vmem:[%s494 + $0x48] sm:%s486] %v531
                  %v533 = vld [vmem:[%s493 + $0x4c] sm:%s486]
                  %534 = vst [vmem:[%s494 + $0x4c] sm:%s486] %v533
                  %v535 = vld [vmem:[%s493 + $0x50] sm:%s486]
                  %536 = vst [vmem:[%s494 + $0x50] sm:%s486] %v535
                  %v537 = vld [vmem:[%s493 + $0x54] sm:%s486]
                  %538 = vst [vmem:[%s494 + $0x54] sm:%s486] %v537
                  %v539 = vld [vmem:[%s493 + $0x58] sm:%s486]
                  %540 = vst [vmem:[%s494 + $0x58] sm:%s486] %v539
                  %v541 = vld [vmem:[%s493 + $0x5c] sm:%s486]
                  %542 = vst [vmem:[%s494 + $0x5c] sm:%s486] %v541
                  %v543 = vld [vmem:[%s493 + $0x60] sm:%s486]
                  %544 = vst [vmem:[%s494 + $0x60] sm:%s486] %v543
                  %v545 = vld [vmem:[%s493 + $0x64] sm:%s486]
                  %546 = vst [vmem:[%s494 + $0x64] sm:%s486] %v545
                  %v547 = vld [vmem:[%s493 + $0x68] sm:%s486]
                  %548 = vst [vmem:[%s494 + $0x68] sm:%s486] %v547
                  %v549 = vld [vmem:[%s493 + $0x6c] sm:%s486]
                  %550 = vst [vmem:[%s494 + $0x6c] sm:%s486] %v549
                  %v551 = vld [vmem:[%s493 + $0x70] sm:%s486]
                  %552 = vst [vmem:[%s494 + $0x70] sm:%s486] %v551
                  %v553 = vld [vmem:[%s493 + $0x74] sm:%s486]
                  %554 = vst [vmem:[%s494 + $0x74] sm:%s486] %v553
                  %v555 = vld [vmem:[%s493 + $0x78] sm:%s486]
                  %556 = vst [vmem:[%s494 + $0x78] sm:%s486] %v555
                  %v557 = vld [vmem:[%s493 + $0x7c] sm:%s486]
                  %558 = vst [vmem:[%s494 + $0x7c] sm:%s486] %v557
                  %v559 = vld [vmem:[%s493 + $0x80] sm:%s486]
                  %560 = vst [vmem:[%s494 + $0x80] sm:%s486] %v559
                  %v561 = vld [vmem:[%s493 + $0x84] sm:%s486]
                  %562 = vst [vmem:[%s494 + $0x84] sm:%s486] %v561
                  %v563 = vld [vmem:[%s493 + $0x88] sm:%s486]
                  %564 = vst [vmem:[%s494 + $0x88] sm:%s486] %v563
                  %v565 = vld [vmem:[%s493 + $0x8c] sm:%s486]
                  %566 = vst [vmem:[%s494 + $0x8c] sm:%s486] %v565
                  %v567 = vld [vmem:[%s493 + $0x90] sm:%s486]
                  %568 = vst [vmem:[%s494 + $0x90] sm:%s486] %v567
                  %v569 = vld [vmem:[%s493 + $0x94] sm:%s486]
                  %570 = vst [vmem:[%s494 + $0x94] sm:%s486] %v569
                  %v571 = vld [vmem:[%s493 + $0x98] sm:%s486]
                  %572 = vst [vmem:[%s494 + $0x98] sm:%s486] %v571
                  %v573 = vld [vmem:[%s493 + $0x9c] sm:%s486]
                  %574 = vst [vmem:[%s494 + $0x9c] sm:%s486] %v573
                  %v575 = vld [vmem:[%s493 + $0xa0] sm:%s486]
                  %576 = vst [vmem:[%s494 + $0xa0] sm:%s486] %v575
                  %v577 = vld [vmem:[%s493 + $0xa4] sm:%s486]
                  %578 = vst [vmem:[%s494 + $0xa4] sm:%s486] %v577
                  %v579 = vld [vmem:[%s493 + $0xa8] sm:%s486]
                  %580 = vst [vmem:[%s494 + $0xa8] sm:%s486] %v579
                  %v581 = vld [vmem:[%s493 + $0xac] sm:%s486]
                  %582 = vst [vmem:[%s494 + $0xac] sm:%s486] %v581
                  %v583 = vld [vmem:[%s493 + $0xb0] sm:%s486]
                  %584 = vst [vmem:[%s494 + $0xb0] sm:%s486] %v583
                  %v585 = vld [vmem:[%s493 + $0xb4] sm:%s486]
                  %586 = vst [vmem:[%s494 + $0xb4] sm:%s486] %v585
                  %v587 = vld [vmem:[%s493 + $0xb8] sm:%s486]
                  %588 = vst [vmem:[%s494 + $0xb8] sm:%s486] %v587
                  %v589 = vld [vmem:[%s493 + $0xbc] sm:%s486]
                  %590 = vst [vmem:[%s494 + $0xbc] sm:%s486] %v589
                  %v591 = vld [vmem:[%s493 + $0xc0] sm:%s486]
                  %592 = vst [vmem:[%s494 + $0xc0] sm:%s486] %v591
                  %v593 = vld [vmem:[%s493 + $0xc4] sm:%s486]
                  %594 = vst [vmem:[%s494 + $0xc4] sm:%s486] %v593
                  %v595 = vld [vmem:[%s493 + $0xc8] sm:%s486]
                  %596 = vst [vmem:[%s494 + $0xc8] sm:%s486] %v595
                  %v597 = vld [vmem:[%s493 + $0xcc] sm:%s486]
                  %598 = vst [vmem:[%s494 + $0xcc] sm:%s486] %v597
                  %v599 = vld [vmem:[%s493 + $0xd0] sm:%s486]
                  %600 = vst [vmem:[%s494 + $0xd0] sm:%s486] %v599
                  %v601 = vld [vmem:[%s493 + $0xd4] sm:%s486]
                  %602 = vst [vmem:[%s494 + $0xd4] sm:%s486] %v601
                  %v603 = vld [vmem:[%s493 + $0xd8] sm:%s486]
                  %604 = vst [vmem:[%s494 + $0xd8] sm:%s486] %v603
                  %v605 = vld [vmem:[%s493 + $0xdc] sm:%s486]
                  %606 = vst [vmem:[%s494 + $0xdc] sm:%s486] %v605
                  %v607 = vld [vmem:[%s493 + $0xe0] sm:%s486]
                  %608 = vst [vmem:[%s494 + $0xe0] sm:%s486] %v607
                  %v609 = vld [vmem:[%s493 + $0xe4] sm:%s486]
                  %610 = vst [vmem:[%s494 + $0xe4] sm:%s486] %v609
                  %v611 = vld [vmem:[%s493 + $0xe8] sm:%s486]
                  %612 = vst [vmem:[%s494 + $0xe8] sm:%s486] %v611
                  %v613 = vld [vmem:[%s493 + $0xec] sm:%s486]
                  %614 = vst [vmem:[%s494 + $0xec] sm:%s486] %v613
                  %v615 = vld [vmem:[%s493 + $0xf0] sm:%s486]
                  %616 = vst [vmem:[%s494 + $0xf0] sm:%s486] %v615
                  %v617 = vld [vmem:[%s493 + $0xf4] sm:%s486]
                  %618 = vst [vmem:[%s494 + $0xf4] sm:%s486] %v617
                  %v619 = vld [vmem:[%s493 + $0xf8] sm:%s486]
                  %620 = vst [vmem:[%s494 + $0xf8] sm:%s486] %v619
                  %v621 = vld [vmem:[%s493 + $0xfc] sm:%s486]
                  %622 = vst [vmem:[%s494 + $0xfc] sm:%s486] %v621
                  %v623 = vld [vmem:[%s493 + $0x200] sm:%s486]
                  %624 = vst [vmem:[%s494 + $0x100] sm:%s486] %v623
                  %v625 = vld [vmem:[%s493 + $0x204] sm:%s486]
                  %626 = vst [vmem:[%s494 + $0x104] sm:%s486] %v625
                  %v627 = vld [vmem:[%s493 + $0x208] sm:%s486]
                  %628 = vst [vmem:[%s494 + $0x108] sm:%s486] %v627
                  %v629 = vld [vmem:[%s493 + $0x20c] sm:%s486]
                  %630 = vst [vmem:[%s494 + $0x10c] sm:%s486] %v629
                  %v631 = vld [vmem:[%s493 + $0x210] sm:%s486]
                  %632 = vst [vmem:[%s494 + $0x110] sm:%s486] %v631
                  %v633 = vld [vmem:[%s493 + $0x214] sm:%s486]
                  %634 = vst [vmem:[%s494 + $0x114] sm:%s486] %v633
                  %v635 = vld [vmem:[%s493 + $0x218] sm:%s486]
                  %636 = vst [vmem:[%s494 + $0x118] sm:%s486] %v635
                  %v637 = vld [vmem:[%s493 + $0x21c] sm:%s486]
                  %638 = vst [vmem:[%s494 + $0x11c] sm:%s486] %v637
                  %v639 = vld [vmem:[%s493 + $0x220] sm:%s486]
                  %640 = vst [vmem:[%s494 + $0x120] sm:%s486] %v639
                  %v641 = vld [vmem:[%s493 + $0x224] sm:%s486]
                  %642 = vst [vmem:[%s494 + $0x124] sm:%s486] %v641
                  %v643 = vld [vmem:[%s493 + $0x228] sm:%s486]
                  %644 = vst [vmem:[%s494 + $0x128] sm:%s486] %v643
                  %v645 = vld [vmem:[%s493 + $0x22c] sm:%s486]
                  %646 = vst [vmem:[%s494 + $0x12c] sm:%s486] %v645
                  %v647 = vld [vmem:[%s493 + $0x230] sm:%s486]
                  %648 = vst [vmem:[%s494 + $0x130] sm:%s486] %v647
                  %v649 = vld [vmem:[%s493 + $0x234] sm:%s486]
                  %650 = vst [vmem:[%s494 + $0x134] sm:%s486] %v649
                  %v651 = vld [vmem:[%s493 + $0x238] sm:%s486]
                  %652 = vst [vmem:[%s494 + $0x138] sm:%s486] %v651
                  %v653 = vld [vmem:[%s493 + $0x23c] sm:%s486]
                  %654 = vst [vmem:[%s494 + $0x13c] sm:%s486] %v653
                  %v655 = vld [vmem:[%s493 + $0x240] sm:%s486]
                  %656 = vst [vmem:[%s494 + $0x140] sm:%s486] %v655
                  %v657 = vld [vmem:[%s493 + $0x244] sm:%s486]
                  %658 = vst [vmem:[%s494 + $0x144] sm:%s486] %v657
                  %v659 = vld [vmem:[%s493 + $0x248] sm:%s486]
                  %660 = vst [vmem:[%s494 + $0x148] sm:%s486] %v659
                  %v661 = vld [vmem:[%s493 + $0x24c] sm:%s486]
                  %662 = vst [vmem:[%s494 + $0x14c] sm:%s486] %v661
                  %v663 = vld [vmem:[%s493 + $0x250] sm:%s486]
                  %664 = vst [vmem:[%s494 + $0x150] sm:%s486] %v663
                  %v665 = vld [vmem:[%s493 + $0x254] sm:%s486]
                  %666 = vst [vmem:[%s494 + $0x154] sm:%s486] %v665
                  %v667 = vld [vmem:[%s493 + $0x258] sm:%s486]
                  %668 = vst [vmem:[%s494 + $0x158] sm:%s486] %v667
                  %v669 = vld [vmem:[%s493 + $0x25c] sm:%s486]
                  %670 = vst [vmem:[%s494 + $0x15c] sm:%s486] %v669
                  %v671 = vld [vmem:[%s493 + $0x260] sm:%s486]
                  %672 = vst [vmem:[%s494 + $0x160] sm:%s486] %v671
                  %v673 = vld [vmem:[%s493 + $0x264] sm:%s486]
                  %674 = vst [vmem:[%s494 + $0x164] sm:%s486] %v673
                  %v675 = vld [vmem:[%s493 + $0x268] sm:%s486]
                  %676 = vst [vmem:[%s494 + $0x168] sm:%s486] %v675
                  %v677 = vld [vmem:[%s493 + $0x26c] sm:%s486]
                  %678 = vst [vmem:[%s494 + $0x16c] sm:%s486] %v677
                  %v679 = vld [vmem:[%s493 + $0x270] sm:%s486]
                  %680 = vst [vmem:[%s494 + $0x170] sm:%s486] %v679
                  %v681 = vld [vmem:[%s493 + $0x274] sm:%s486]
                  %682 = vst [vmem:[%s494 + $0x174] sm:%s486] %v681
                  %v683 = vld [vmem:[%s493 + $0x278] sm:%s486]
                  %684 = vst [vmem:[%s494 + $0x178] sm:%s486] %v683
                  %v685 = vld [vmem:[%s493 + $0x27c] sm:%s486]
                  %686 = vst [vmem:[%s494 + $0x17c] sm:%s486] %v685
                  %v687 = vld [vmem:[%s493 + $0x280] sm:%s486]
                  %688 = vst [vmem:[%s494 + $0x180] sm:%s486] %v687
                  %v689 = vld [vmem:[%s493 + $0x284] sm:%s486]
                  %690 = vst [vmem:[%s494 + $0x184] sm:%s486] %v689
                  %v691 = vld [vmem:[%s493 + $0x288] sm:%s486]
                  %692 = vst [vmem:[%s494 + $0x188] sm:%s486] %v691
                  %v693 = vld [vmem:[%s493 + $0x28c] sm:%s486]
                  %694 = vst [vmem:[%s494 + $0x18c] sm:%s486] %v693
                  %v695 = vld [vmem:[%s493 + $0x290] sm:%s486]
                  %696 = vst [vmem:[%s494 + $0x190] sm:%s486] %v695
                  %v697 = vld [vmem:[%s493 + $0x294] sm:%s486]
                  %698 = vst [vmem:[%s494 + $0x194] sm:%s486] %v697
                  %v699 = vld [vmem:[%s493 + $0x298] sm:%s486]
                  %700 = vst [vmem:[%s494 + $0x198] sm:%s486] %v699
                  %v701 = vld [vmem:[%s493 + $0x29c] sm:%s486]
                  %702 = vst [vmem:[%s494 + $0x19c] sm:%s486] %v701
                  %v703 = vld [vmem:[%s493 + $0x2a0] sm:%s486]
                  %704 = vst [vmem:[%s494 + $0x1a0] sm:%s486] %v703
                  %v705 = vld [vmem:[%s493 + $0x2a4] sm:%s486]
                  %706 = vst [vmem:[%s494 + $0x1a4] sm:%s486] %v705
                  %v707 = vld [vmem:[%s493 + $0x2a8] sm:%s486]
                  %708 = vst [vmem:[%s494 + $0x1a8] sm:%s486] %v707
                  %v709 = vld [vmem:[%s493 + $0x2ac] sm:%s486]
                  %710 = vst [vmem:[%s494 + $0x1ac] sm:%s486] %v709
                  %v711 = vld [vmem:[%s493 + $0x2b0] sm:%s486]
                  %712 = vst [vmem:[%s494 + $0x1b0] sm:%s486] %v711
                  %v713 = vld [vmem:[%s493 + $0x2b4] sm:%s486]
                  %714 = vst [vmem:[%s494 + $0x1b4] sm:%s486] %v713
                  %v715 = vld [vmem:[%s493 + $0x2b8] sm:%s486]
                  %716 = vst [vmem:[%s494 + $0x1b8] sm:%s486] %v715
                  %v717 = vld [vmem:[%s493 + $0x2bc] sm:%s486]
                  %718 = vst [vmem:[%s494 + $0x1bc] sm:%s486] %v717
                  %v719 = vld [vmem:[%s493 + $0x2c0] sm:%s486]
                  %720 = vst [vmem:[%s494 + $0x1c0] sm:%s486] %v719
                  %v721 = vld [vmem:[%s493 + $0x2c4] sm:%s486]
                  %722 = vst [vmem:[%s494 + $0x1c4] sm:%s486] %v721
                  %v723 = vld [vmem:[%s493 + $0x2c8] sm:%s486]
                  %724 = vst [vmem:[%s494 + $0x1c8] sm:%s486] %v723
                  %v725 = vld [vmem:[%s493 + $0x2cc] sm:%s486]
                  %726 = vst [vmem:[%s494 + $0x1cc] sm:%s486] %v725
                  %v727 = vld [vmem:[%s493 + $0x2d0] sm:%s486]
                  %728 = vst [vmem:[%s494 + $0x1d0] sm:%s486] %v727
                  %v729 = vld [vmem:[%s493 + $0x2d4] sm:%s486]
                  %730 = vst [vmem:[%s494 + $0x1d4] sm:%s486] %v729
                  %v731 = vld [vmem:[%s493 + $0x2d8] sm:%s486]
                  %732 = vst [vmem:[%s494 + $0x1d8] sm:%s486] %v731
                  %v733 = vld [vmem:[%s493 + $0x2dc] sm:%s486]
                  %734 = vst [vmem:[%s494 + $0x1dc] sm:%s486] %v733
                  %v735 = vld [vmem:[%s493 + $0x2e0] sm:%s486]
                  %736 = vst [vmem:[%s494 + $0x1e0] sm:%s486] %v735
                  %v737 = vld [vmem:[%s493 + $0x2e4] sm:%s486]
                  %738 = vst [vmem:[%s494 + $0x1e4] sm:%s486] %v737
                  %v739 = vld [vmem:[%s493 + $0x2e8] sm:%s486]
                  %740 = vst [vmem:[%s494 + $0x1e8] sm:%s486] %v739
                  %v741 = vld [vmem:[%s493 + $0x2ec] sm:%s486]
                  %742 = vst [vmem:[%s494 + $0x1ec] sm:%s486] %v741
                  %v743 = vld [vmem:[%s493 + $0x2f0] sm:%s486]
                  %744 = vst [vmem:[%s494 + $0x1f0] sm:%s486] %v743
                  %v745 = vld [vmem:[%s493 + $0x2f4] sm:%s486]
                  %746 = vst [vmem:[%s494 + $0x1f4] sm:%s486] %v745
                  %v747 = vld [vmem:[%s493 + $0x2f8] sm:%s486]
                  %748 = vst [vmem:[%s494 + $0x1f8] sm:%s486] %v747
                  %v749 = vld [vmem:[%s493 + $0x2fc] sm:%s486]
                  %750 = vst [vmem:[%s494 + $0x1fc] sm:%s486] %v749
                $region71: #{effnet_melanoma_forward.2} parent=58 // loop_footer
                  %s492 = sadd.s32 1, %s488
                $region72: #{effnet_melanoma_forward.2} parent=58 // loop_footer_branch
                  %487 = sbr.rel target = $region68
                $region73: #{effnet_melanoma_forward.2} parent=58 // loop_exit
                  _
              $region59: #{effnet_melanoma_forward.2} parent=43 // pred_fallthru
                _
            $region44: #{effnet_melanoma_forward.2} parent=39 // pred_fallthru
              _
            // Predicated region
            $region45: #{effnet_melanoma_forward.2} parent=39 // pred_check
              _
            $region46: #{effnet_melanoma_forward.2} parent=39 // pred_check_branch
              %208 = sbr.rel (0) target = $region48
            $region47: #{effnet_melanoma_forward.2} parent=39 // pred_region
              %s210 = ssub.s32 16, 1
              loop: start=0, step=1, limit=1
              $region49: #{effnet_melanoma_forward.2} parent=47 // loop_pre_header
                _
              $region50: #{effnet_melanoma_forward.2} parent=47 // loop_header
                %s212 = sphi 0, %s216
                %p213 = scmp.ge.s32.totalorder %s212, 1
                %s217 = sphi %s202, %s202
                %s218 = sphi %s198, %s198
              $region51: #{effnet_melanoma_forward.2} parent=47 // loop_header_branch
                %215 = sbr.rel (%p213) target = $region55
              $region52: #{effnet_melanoma_forward.2} parent=47 // loop_body
                %v219 = vld [vmem:[%s217] sm:%s210]
                %220 = vst [vmem:[%s218] sm:%s210] %v219
                %v221 = vld [vmem:[%s217 + $0x4] sm:%s210]
                %222 = vst [vmem:[%s218 + $0x4] sm:%s210] %v221
                %v223 = vld [vmem:[%s217 + $0x8] sm:%s210]
                %224 = vst [vmem:[%s218 + $0x8] sm:%s210] %v223
                %v225 = vld [vmem:[%s217 + $0xc] sm:%s210]
                %226 = vst [vmem:[%s218 + $0xc] sm:%s210] %v225
                %v227 = vld [vmem:[%s217 + $0x10] sm:%s210]
                %228 = vst [vmem:[%s218 + $0x10] sm:%s210] %v227
                %v229 = vld [vmem:[%s217 + $0x14] sm:%s210]
                %230 = vst [vmem:[%s218 + $0x14] sm:%s210] %v229
                %v231 = vld [vmem:[%s217 + $0x18] sm:%s210]
                %232 = vst [vmem:[%s218 + $0x18] sm:%s210] %v231
                %v233 = vld [vmem:[%s217 + $0x1c] sm:%s210]
                %234 = vst [vmem:[%s218 + $0x1c] sm:%s210] %v233
                %v235 = vld [vmem:[%s217 + $0x20] sm:%s210]
                %236 = vst [vmem:[%s218 + $0x20] sm:%s210] %v235
                %v237 = vld [vmem:[%s217 + $0x24] sm:%s210]
                %238 = vst [vmem:[%s218 + $0x24] sm:%s210] %v237
                %v239 = vld [vmem:[%s217 + $0x28] sm:%s210]
                %240 = vst [vmem:[%s218 + $0x28] sm:%s210] %v239
                %v241 = vld [vmem:[%s217 + $0x2c] sm:%s210]
                %242 = vst [vmem:[%s218 + $0x2c] sm:%s210] %v241
                %v243 = vld [vmem:[%s217 + $0x30] sm:%s210]
                %244 = vst [vmem:[%s218 + $0x30] sm:%s210] %v243
                %v245 = vld [vmem:[%s217 + $0x34] sm:%s210]
                %246 = vst [vmem:[%s218 + $0x34] sm:%s210] %v245
                %v247 = vld [vmem:[%s217 + $0x38] sm:%s210]
                %248 = vst [vmem:[%s218 + $0x38] sm:%s210] %v247
                %v249 = vld [vmem:[%s217 + $0x3c] sm:%s210]
                %250 = vst [vmem:[%s218 + $0x3c] sm:%s210] %v249
                %v251 = vld [vmem:[%s217 + $0x40] sm:%s210]
                %252 = vst [vmem:[%s218 + $0x40] sm:%s210] %v251
                %v253 = vld [vmem:[%s217 + $0x44] sm:%s210]
                %254 = vst [vmem:[%s218 + $0x44] sm:%s210] %v253
                %v255 = vld [vmem:[%s217 + $0x48] sm:%s210]
                %256 = vst [vmem:[%s218 + $0x48] sm:%s210] %v255
                %v257 = vld [vmem:[%s217 + $0x4c] sm:%s210]
                %258 = vst [vmem:[%s218 + $0x4c] sm:%s210] %v257
                %v259 = vld [vmem:[%s217 + $0x50] sm:%s210]
                %260 = vst [vmem:[%s218 + $0x50] sm:%s210] %v259
                %v261 = vld [vmem:[%s217 + $0x54] sm:%s210]
                %262 = vst [vmem:[%s218 + $0x54] sm:%s210] %v261
                %v263 = vld [vmem:[%s217 + $0x58] sm:%s210]
                %264 = vst [vmem:[%s218 + $0x58] sm:%s210] %v263
                %v265 = vld [vmem:[%s217 + $0x5c] sm:%s210]
                %266 = vst [vmem:[%s218 + $0x5c] sm:%s210] %v265
                %v267 = vld [vmem:[%s217 + $0x60] sm:%s210]
                %268 = vst [vmem:[%s218 + $0x60] sm:%s210] %v267
                %v269 = vld [vmem:[%s217 + $0x64] sm:%s210]
                %270 = vst [vmem:[%s218 + $0x64] sm:%s210] %v269
                %v271 = vld [vmem:[%s217 + $0x68] sm:%s210]
                %272 = vst [vmem:[%s218 + $0x68] sm:%s210] %v271
                %v273 = vld [vmem:[%s217 + $0x6c] sm:%s210]
                %274 = vst [vmem:[%s218 + $0x6c] sm:%s210] %v273
                %v275 = vld [vmem:[%s217 + $0x70] sm:%s210]
                %276 = vst [vmem:[%s218 + $0x70] sm:%s210] %v275
                %v277 = vld [vmem:[%s217 + $0x74] sm:%s210]
                %278 = vst [vmem:[%s218 + $0x74] sm:%s210] %v277
                %v279 = vld [vmem:[%s217 + $0x78] sm:%s210]
                %280 = vst [vmem:[%s218 + $0x78] sm:%s210] %v279
                %v281 = vld [vmem:[%s217 + $0x7c] sm:%s210]
                %282 = vst [vmem:[%s218 + $0x7c] sm:%s210] %v281
                %v283 = vld [vmem:[%s217 + $0x80] sm:%s210]
                %284 = vst [vmem:[%s218 + $0x80] sm:%s210] %v283
                %v285 = vld [vmem:[%s217 + $0x84] sm:%s210]
                %286 = vst [vmem:[%s218 + $0x84] sm:%s210] %v285
                %v287 = vld [vmem:[%s217 + $0x88] sm:%s210]
                %288 = vst [vmem:[%s218 + $0x88] sm:%s210] %v287
                %v289 = vld [vmem:[%s217 + $0x8c] sm:%s210]
                %290 = vst [vmem:[%s218 + $0x8c] sm:%s210] %v289
                %v291 = vld [vmem:[%s217 + $0x90] sm:%s210]
                %292 = vst [vmem:[%s218 + $0x90] sm:%s210] %v291
                %v293 = vld [vmem:[%s217 + $0x94] sm:%s210]
                %294 = vst [vmem:[%s218 + $0x94] sm:%s210] %v293
                %v295 = vld [vmem:[%s217 + $0x98] sm:%s210]
                %296 = vst [vmem:[%s218 + $0x98] sm:%s210] %v295
                %v297 = vld [vmem:[%s217 + $0x9c] sm:%s210]
                %298 = vst [vmem:[%s218 + $0x9c] sm:%s210] %v297
                %v299 = vld [vmem:[%s217 + $0xa0] sm:%s210]
                %300 = vst [vmem:[%s218 + $0xa0] sm:%s210] %v299
                %v301 = vld [vmem:[%s217 + $0xa4] sm:%s210]
                %302 = vst [vmem:[%s218 + $0xa4] sm:%s210] %v301
                %v303 = vld [vmem:[%s217 + $0xa8] sm:%s210]
                %304 = vst [vmem:[%s218 + $0xa8] sm:%s210] %v303
                %v305 = vld [vmem:[%s217 + $0xac] sm:%s210]
                %306 = vst [vmem:[%s218 + $0xac] sm:%s210] %v305
                %v307 = vld [vmem:[%s217 + $0xb0] sm:%s210]
                %308 = vst [vmem:[%s218 + $0xb0] sm:%s210] %v307
                %v309 = vld [vmem:[%s217 + $0xb4] sm:%s210]
                %310 = vst [vmem:[%s218 + $0xb4] sm:%s210] %v309
                %v311 = vld [vmem:[%s217 + $0xb8] sm:%s210]
                %312 = vst [vmem:[%s218 + $0xb8] sm:%s210] %v311
                %v313 = vld [vmem:[%s217 + $0xbc] sm:%s210]
                %314 = vst [vmem:[%s218 + $0xbc] sm:%s210] %v313
                %v315 = vld [vmem:[%s217 + $0xc0] sm:%s210]
                %316 = vst [vmem:[%s218 + $0xc0] sm:%s210] %v315
                %v317 = vld [vmem:[%s217 + $0xc4] sm:%s210]
                %318 = vst [vmem:[%s218 + $0xc4] sm:%s210] %v317
                %v319 = vld [vmem:[%s217 + $0xc8] sm:%s210]
                %320 = vst [vmem:[%s218 + $0xc8] sm:%s210] %v319
                %v321 = vld [vmem:[%s217 + $0xcc] sm:%s210]
                %322 = vst [vmem:[%s218 + $0xcc] sm:%s210] %v321
                %v323 = vld [vmem:[%s217 + $0xd0] sm:%s210]
                %324 = vst [vmem:[%s218 + $0xd0] sm:%s210] %v323
                %v325 = vld [vmem:[%s217 + $0xd4] sm:%s210]
                %326 = vst [vmem:[%s218 + $0xd4] sm:%s210] %v325
                %v327 = vld [vmem:[%s217 + $0xd8] sm:%s210]
                %328 = vst [vmem:[%s218 + $0xd8] sm:%s210] %v327
                %v329 = vld [vmem:[%s217 + $0xdc] sm:%s210]
                %330 = vst [vmem:[%s218 + $0xdc] sm:%s210] %v329
                %v331 = vld [vmem:[%s217 + $0xe0] sm:%s210]
                %332 = vst [vmem:[%s218 + $0xe0] sm:%s210] %v331
                %v333 = vld [vmem:[%s217 + $0xe4] sm:%s210]
                %334 = vst [vmem:[%s218 + $0xe4] sm:%s210] %v333
                %v335 = vld [vmem:[%s217 + $0xe8] sm:%s210]
                %336 = vst [vmem:[%s218 + $0xe8] sm:%s210] %v335
                %v337 = vld [vmem:[%s217 + $0xec] sm:%s210]
                %338 = vst [vmem:[%s218 + $0xec] sm:%s210] %v337
                %v339 = vld [vmem:[%s217 + $0xf0] sm:%s210]
                %340 = vst [vmem:[%s218 + $0xf0] sm:%s210] %v339
                %v341 = vld [vmem:[%s217 + $0xf4] sm:%s210]
                %342 = vst [vmem:[%s218 + $0xf4] sm:%s210] %v341
                %v343 = vld [vmem:[%s217 + $0xf8] sm:%s210]
                %344 = vst [vmem:[%s218 + $0xf8] sm:%s210] %v343
                %v345 = vld [vmem:[%s217 + $0xfc] sm:%s210]
                %346 = vst [vmem:[%s218 + $0xfc] sm:%s210] %v345
                %v347 = vld [vmem:[%s217 + $0x200] sm:%s210]
                %348 = vst [vmem:[%s218 + $0x100] sm:%s210] %v347
                %v349 = vld [vmem:[%s217 + $0x204] sm:%s210]
                %350 = vst [vmem:[%s218 + $0x104] sm:%s210] %v349
                %v351 = vld [vmem:[%s217 + $0x208] sm:%s210]
                %352 = vst [vmem:[%s218 + $0x108] sm:%s210] %v351
                %v353 = vld [vmem:[%s217 + $0x20c] sm:%s210]
                %354 = vst [vmem:[%s218 + $0x10c] sm:%s210] %v353
                %v355 = vld [vmem:[%s217 + $0x210] sm:%s210]
                %356 = vst [vmem:[%s218 + $0x110] sm:%s210] %v355
                %v357 = vld [vmem:[%s217 + $0x214] sm:%s210]
                %358 = vst [vmem:[%s218 + $0x114] sm:%s210] %v357
                %v359 = vld [vmem:[%s217 + $0x218] sm:%s210]
                %360 = vst [vmem:[%s218 + $0x118] sm:%s210] %v359
                %v361 = vld [vmem:[%s217 + $0x21c] sm:%s210]
                %362 = vst [vmem:[%s218 + $0x11c] sm:%s210] %v361
                %v363 = vld [vmem:[%s217 + $0x220] sm:%s210]
                %364 = vst [vmem:[%s218 + $0x120] sm:%s210] %v363
                %v365 = vld [vmem:[%s217 + $0x224] sm:%s210]
                %366 = vst [vmem:[%s218 + $0x124] sm:%s210] %v365
                %v367 = vld [vmem:[%s217 + $0x228] sm:%s210]
                %368 = vst [vmem:[%s218 + $0x128] sm:%s210] %v367
                %v369 = vld [vmem:[%s217 + $0x22c] sm:%s210]
                %370 = vst [vmem:[%s218 + $0x12c] sm:%s210] %v369
                %v371 = vld [vmem:[%s217 + $0x230] sm:%s210]
                %372 = vst [vmem:[%s218 + $0x130] sm:%s210] %v371
                %v373 = vld [vmem:[%s217 + $0x234] sm:%s210]
                %374 = vst [vmem:[%s218 + $0x134] sm:%s210] %v373
                %v375 = vld [vmem:[%s217 + $0x238] sm:%s210]
                %376 = vst [vmem:[%s218 + $0x138] sm:%s210] %v375
                %v377 = vld [vmem:[%s217 + $0x23c] sm:%s210]
                %378 = vst [vmem:[%s218 + $0x13c] sm:%s210] %v377
                %v379 = vld [vmem:[%s217 + $0x240] sm:%s210]
                %380 = vst [vmem:[%s218 + $0x140] sm:%s210] %v379
                %v381 = vld [vmem:[%s217 + $0x244] sm:%s210]
                %382 = vst [vmem:[%s218 + $0x144] sm:%s210] %v381
                %v383 = vld [vmem:[%s217 + $0x248] sm:%s210]
                %384 = vst [vmem:[%s218 + $0x148] sm:%s210] %v383
                %v385 = vld [vmem:[%s217 + $0x24c] sm:%s210]
                %386 = vst [vmem:[%s218 + $0x14c] sm:%s210] %v385
                %v387 = vld [vmem:[%s217 + $0x250] sm:%s210]
                %388 = vst [vmem:[%s218 + $0x150] sm:%s210] %v387
                %v389 = vld [vmem:[%s217 + $0x254] sm:%s210]
                %390 = vst [vmem:[%s218 + $0x154] sm:%s210] %v389
                %v391 = vld [vmem:[%s217 + $0x258] sm:%s210]
                %392 = vst [vmem:[%s218 + $0x158] sm:%s210] %v391
                %v393 = vld [vmem:[%s217 + $0x25c] sm:%s210]
                %394 = vst [vmem:[%s218 + $0x15c] sm:%s210] %v393
                %v395 = vld [vmem:[%s217 + $0x260] sm:%s210]
                %396 = vst [vmem:[%s218 + $0x160] sm:%s210] %v395
                %v397 = vld [vmem:[%s217 + $0x264] sm:%s210]
                %398 = vst [vmem:[%s218 + $0x164] sm:%s210] %v397
                %v399 = vld [vmem:[%s217 + $0x268] sm:%s210]
                %400 = vst [vmem:[%s218 + $0x168] sm:%s210] %v399
                %v401 = vld [vmem:[%s217 + $0x26c] sm:%s210]
                %402 = vst [vmem:[%s218 + $0x16c] sm:%s210] %v401
                %v403 = vld [vmem:[%s217 + $0x270] sm:%s210]
                %404 = vst [vmem:[%s218 + $0x170] sm:%s210] %v403
                %v405 = vld [vmem:[%s217 + $0x274] sm:%s210]
                %406 = vst [vmem:[%s218 + $0x174] sm:%s210] %v405
                %v407 = vld [vmem:[%s217 + $0x278] sm:%s210]
                %408 = vst [vmem:[%s218 + $0x178] sm:%s210] %v407
                %v409 = vld [vmem:[%s217 + $0x27c] sm:%s210]
                %410 = vst [vmem:[%s218 + $0x17c] sm:%s210] %v409
                %v411 = vld [vmem:[%s217 + $0x280] sm:%s210]
                %412 = vst [vmem:[%s218 + $0x180] sm:%s210] %v411
                %v413 = vld [vmem:[%s217 + $0x284] sm:%s210]
                %414 = vst [vmem:[%s218 + $0x184] sm:%s210] %v413
                %v415 = vld [vmem:[%s217 + $0x288] sm:%s210]
                %416 = vst [vmem:[%s218 + $0x188] sm:%s210] %v415
                %v417 = vld [vmem:[%s217 + $0x28c] sm:%s210]
                %418 = vst [vmem:[%s218 + $0x18c] sm:%s210] %v417
                %v419 = vld [vmem:[%s217 + $0x290] sm:%s210]
                %420 = vst [vmem:[%s218 + $0x190] sm:%s210] %v419
                %v421 = vld [vmem:[%s217 + $0x294] sm:%s210]
                %422 = vst [vmem:[%s218 + $0x194] sm:%s210] %v421
                %v423 = vld [vmem:[%s217 + $0x298] sm:%s210]
                %424 = vst [vmem:[%s218 + $0x198] sm:%s210] %v423
                %v425 = vld [vmem:[%s217 + $0x29c] sm:%s210]
                %426 = vst [vmem:[%s218 + $0x19c] sm:%s210] %v425
                %v427 = vld [vmem:[%s217 + $0x2a0] sm:%s210]
                %428 = vst [vmem:[%s218 + $0x1a0] sm:%s210] %v427
                %v429 = vld [vmem:[%s217 + $0x2a4] sm:%s210]
                %430 = vst [vmem:[%s218 + $0x1a4] sm:%s210] %v429
                %v431 = vld [vmem:[%s217 + $0x2a8] sm:%s210]
                %432 = vst [vmem:[%s218 + $0x1a8] sm:%s210] %v431
                %v433 = vld [vmem:[%s217 + $0x2ac] sm:%s210]
                %434 = vst [vmem:[%s218 + $0x1ac] sm:%s210] %v433
                %v435 = vld [vmem:[%s217 + $0x2b0] sm:%s210]
                %436 = vst [vmem:[%s218 + $0x1b0] sm:%s210] %v435
                %v437 = vld [vmem:[%s217 + $0x2b4] sm:%s210]
                %438 = vst [vmem:[%s218 + $0x1b4] sm:%s210] %v437
                %v439 = vld [vmem:[%s217 + $0x2b8] sm:%s210]
                %440 = vst [vmem:[%s218 + $0x1b8] sm:%s210] %v439
                %v441 = vld [vmem:[%s217 + $0x2bc] sm:%s210]
                %442 = vst [vmem:[%s218 + $0x1bc] sm:%s210] %v441
                %v443 = vld [vmem:[%s217 + $0x2c0] sm:%s210]
                %444 = vst [vmem:[%s218 + $0x1c0] sm:%s210] %v443
                %v445 = vld [vmem:[%s217 + $0x2c4] sm:%s210]
                %446 = vst [vmem:[%s218 + $0x1c4] sm:%s210] %v445
                %v447 = vld [vmem:[%s217 + $0x2c8] sm:%s210]
                %448 = vst [vmem:[%s218 + $0x1c8] sm:%s210] %v447
                %v449 = vld [vmem:[%s217 + $0x2cc] sm:%s210]
                %450 = vst [vmem:[%s218 + $0x1cc] sm:%s210] %v449
                %v451 = vld [vmem:[%s217 + $0x2d0] sm:%s210]
                %452 = vst [vmem:[%s218 + $0x1d0] sm:%s210] %v451
                %v453 = vld [vmem:[%s217 + $0x2d4] sm:%s210]
                %454 = vst [vmem:[%s218 + $0x1d4] sm:%s210] %v453
                %v455 = vld [vmem:[%s217 + $0x2d8] sm:%s210]
                %456 = vst [vmem:[%s218 + $0x1d8] sm:%s210] %v455
                %v457 = vld [vmem:[%s217 + $0x2dc] sm:%s210]
                %458 = vst [vmem:[%s218 + $0x1dc] sm:%s210] %v457
                %v459 = vld [vmem:[%s217 + $0x2e0] sm:%s210]
                %460 = vst [vmem:[%s218 + $0x1e0] sm:%s210] %v459
                %v461 = vld [vmem:[%s217 + $0x2e4] sm:%s210]
                %462 = vst [vmem:[%s218 + $0x1e4] sm:%s210] %v461
                %v463 = vld [vmem:[%s217 + $0x2e8] sm:%s210]
                %464 = vst [vmem:[%s218 + $0x1e8] sm:%s210] %v463
                %v465 = vld [vmem:[%s217 + $0x2ec] sm:%s210]
                %466 = vst [vmem:[%s218 + $0x1ec] sm:%s210] %v465
                %v467 = vld [vmem:[%s217 + $0x2f0] sm:%s210]
                %468 = vst [vmem:[%s218 + $0x1f0] sm:%s210] %v467
                %v469 = vld [vmem:[%s217 + $0x2f4] sm:%s210]
                %470 = vst [vmem:[%s218 + $0x1f4] sm:%s210] %v469
                %v471 = vld [vmem:[%s217 + $0x2f8] sm:%s210]
                %472 = vst [vmem:[%s218 + $0x1f8] sm:%s210] %v471
                %v473 = vld [vmem:[%s217 + $0x2fc] sm:%s210]
                %474 = vst [vmem:[%s218 + $0x1fc] sm:%s210] %v473
              $region53: #{effnet_melanoma_forward.2} parent=47 // loop_footer
                %s216 = sadd.s32 1, %s212
              $region54: #{effnet_melanoma_forward.2} parent=47 // loop_footer_branch
                %211 = sbr.rel target = $region50
              $region55: #{effnet_melanoma_forward.2} parent=47 // loop_exit
                _
            $region48: #{effnet_melanoma_forward.2} parent=39 // pred_fallthru
              _
          $region40: #{effnet_melanoma_forward.2} parent=35 // pred_fallthru
            _
          %751 = vnop
        $region36: #{effnet_melanoma_forward.2} parent=31 // pred_fallthru
          _
      $region32: #{effnet_melanoma_forward.2} parent=5 // pred_fallthru
        _
      %p752 = scmp.le.s32.totalorder 1, %s11
      %p753 = scmp.lt.s32.totalorder %s11, 3
      %p754 = pnand %p752, %p753
      %p755 = pneg %p754
      // Predicated region
      $region74: #{effnet_melanoma_forward.2} parent=5 // pred_check
        _
      $region75: #{effnet_melanoma_forward.2} parent=5 // pred_check_branch
        %757 = sbr.rel (%p754) target = $region77
      $region76: #{effnet_melanoma_forward.2} parent=5 // pred_region
        %s758 = ssub.s32 %s11, 1
        %s759 = sand.u32 %s38, 1
        %s760 = sand.u32 %s38, 1
        %s761 = smul.addr %s760, 512
        %s762 = scalar_lea.vmem [#allocation3], %s761
        // Predicated region
        $region78: #{effnet_melanoma_forward.2} parent=76 // pred_check
          %p763 = pneg %p51
        $region79: #{effnet_melanoma_forward.2} parent=76 // pred_check_branch
          %765 = sbr.rel (%p763) target = $region81
        $region80: #{effnet_melanoma_forward.2} parent=76 // pred_region
          _
        $region81: #{effnet_melanoma_forward.2} parent=76 // pred_fallthru
          _
        %s766 = sand.u32 %s38, 1
        %s767 = sand.u32 %s38, 1
        %s768 = smul.addr %s767, 512
        %s769 = scalar_lea.vmem [#allocation3], %s768
        %p770 = pneg %p51
        %p771 = pneg %p48
        %p772 = pneg %p72
        %p773 = pneg %p69
        %p774 = pneg %p93
        %p775 = pneg %p90
        %p776 = pneg %p114
        %p777 = pneg %p111
        %p778 = pneg %p135
        %p779 = pneg %p132
        %p780 = pneg %p161
        %p781 = pneg %p158
        %p782 = scmp.lt.s32.totalorder %s20, 1
        %s783 = scalar_select %p782, %s20, 1
        %s784 = smul.addr %s783, 2
        %s785 = scalar_lea.vmem %s5, %s784
        %s786 = sadd.s32 %s20, %s21
        %s787 = smul.u32 64, %s786
        %p788 = scmp.lt.s32.totalorder %s20, 1
        %s789 = scalar_select %p788, %s20, 1
        %s790 = smul.addr %s789, 2
        %s791 = scalar_lea.vmem %s5, %s790
        %p793 = scmp.eq.s32.totalorder %s21, 0
        // Predicated region
        $region82: #{effnet_melanoma_forward.2} parent=76 // pred_check
          %p794 = pneg %p793
        $region83: #{effnet_melanoma_forward.2} parent=76 // pred_check_branch
          %796 = sbr.rel (%p794) target = $region85
        $region84: #{effnet_melanoma_forward.2} parent=76 // pred_region
          %797 = vst [vmem:[#allocation2] sm:$0x3] 0.0
        $region85: #{effnet_melanoma_forward.2} parent=76 // pred_fallthru
          _
        %v798 = vld [vmem:[%s762] sm:$0xf]
        %v799 = vld [vmem:[%s762 + $0x4] sm:$0xf]
        %v800 = vld [vmem:[%s762 + $0x8] sm:$0xf]
        %v801 = vld [vmem:[%s762 + $0xc] sm:$0xf]
        %v802 = vld [vmem:[%s762 + $0x10] sm:$0xf]
        %v803 = vld [vmem:[%s762 + $0x14] sm:$0xf]
        %v804 = vld [vmem:[%s762 + $0x18] sm:$0xf]
        %v805 = vld [vmem:[%s762 + $0x1c] sm:$0xf]
        %v806 = vld [vmem:[%s762 + $0x20] sm:$0xf]
        %v807 = vld [vmem:[%s762 + $0x24] sm:$0xf]
        %v808 = vld [vmem:[%s762 + $0x28] sm:$0xf]
        %v809 = vld [vmem:[%s762 + $0x2c] sm:$0xf]
        %v810 = vld [vmem:[%s762 + $0x30] sm:$0xf]
        %v811 = vld [vmem:[%s762 + $0x34] sm:$0xf]
        %v812 = vld [vmem:[%s762 + $0x38] sm:$0xf]
        %v813 = vld [vmem:[%s762 + $0x3c] sm:$0xf]
        %v814 = vld [vmem:[%s762 + $0x40] sm:$0xf]
        %v815 = vld [vmem:[%s762 + $0x44] sm:$0xf]
        %v816 = vld [vmem:[%s762 + $0x48] sm:$0xf]
        %v817 = vld [vmem:[%s762 + $0x4c] sm:$0xf]
        %v818 = vld [vmem:[%s762 + $0x50] sm:$0xf]
        %v819 = vld [vmem:[%s762 + $0x54] sm:$0xf]
        %v820 = vld [vmem:[%s762 + $0x58] sm:$0xf]
        %v821 = vld [vmem:[%s762 + $0x5c] sm:$0xf]
        %v822 = vld [vmem:[%s762 + $0x60] sm:$0xf]
        %v823 = vld [vmem:[%s762 + $0x64] sm:$0xf]
        %v824 = vld [vmem:[%s762 + $0x68] sm:$0xf]
        %v825 = vld [vmem:[%s762 + $0x6c] sm:$0xf]
        %v826 = vld [vmem:[%s762 + $0x70] sm:$0xf]
        %v827 = vld [vmem:[%s762 + $0x74] sm:$0xf]
        %v828 = vld [vmem:[%s762 + $0x78] sm:$0xf]
        %v829 = vld [vmem:[%s762 + $0x7c] sm:$0xf]
        %v830 = vld [vmem:[%s762 + $0x80] sm:$0xf]
        %v831 = vld [vmem:[%s762 + $0x84] sm:$0xf]
        %v832 = vld [vmem:[%s762 + $0x88] sm:$0xf]
        %v833 = vld [vmem:[%s762 + $0x8c] sm:$0xf]
        %v834 = vld [vmem:[%s762 + $0x90] sm:$0xf]
        %v835 = vld [vmem:[%s762 + $0x94] sm:$0xf]
        %v836 = vld [vmem:[%s762 + $0x98] sm:$0xf]
        %v837 = vld [vmem:[%s762 + $0x9c] sm:$0xf]
        %v838 = vld [vmem:[%s762 + $0xa0] sm:$0xf]
        %v839 = vld [vmem:[%s762 + $0xa4] sm:$0xf]
        %v840 = vld [vmem:[%s762 + $0xa8] sm:$0xf]
        %v841 = vld [vmem:[%s762 + $0xac] sm:$0xf]
        %v842 = vld [vmem:[%s762 + $0xb0] sm:$0xf]
        %v843 = vld [vmem:[%s762 + $0xb4] sm:$0xf]
        %v844 = vld [vmem:[%s762 + $0xb8] sm:$0xf]
        %v845 = vld [vmem:[%s762 + $0xbc] sm:$0xf]
        %v846 = vld [vmem:[%s762 + $0xc0] sm:$0xf]
        %v847 = vld [vmem:[%s762 + $0xc4] sm:$0xf]
        %v848 = vld [vmem:[%s762 + $0xc8] sm:$0xf]
        %v849 = vld [vmem:[%s762 + $0xcc] sm:$0xf]
        %v850 = vld [vmem:[%s762 + $0xd0] sm:$0xf]
        %v851 = vld [vmem:[%s762 + $0xd4] sm:$0xf]
        %v852 = vld [vmem:[%s762 + $0xd8] sm:$0xf]
        %v853 = vld [vmem:[%s762 + $0xdc] sm:$0xf]
        %v854 = vld [vmem:[%s762 + $0xe0] sm:$0xf]
        %v855 = vld [vmem:[%s762 + $0xe4] sm:$0xf]
        %v856 = vld [vmem:[%s762 + $0xe8] sm:$0xf]
        %v857 = vld [vmem:[%s762 + $0xec] sm:$0xf]
        %v858 = vld [vmem:[%s762 + $0xf0] sm:$0xf]
        %v859 = vld [vmem:[%s762 + $0xf4] sm:$0xf]
        %v860 = vld [vmem:[%s762 + $0xf8] sm:$0xf]
        %v861 = vld [vmem:[%s762 + $0xfc] sm:$0xf]
        %v862 = vld [vmem:[%s762 + $0x100] sm:$0xf]
        %v863 = vld [vmem:[%s762 + $0x104] sm:$0xf]
        %v864 = vld [vmem:[%s762 + $0x108] sm:$0xf]
        %v865 = vld [vmem:[%s762 + $0x10c] sm:$0xf]
        %v866 = vld [vmem:[%s762 + $0x110] sm:$0xf]
        %v867 = vld [vmem:[%s762 + $0x114] sm:$0xf]
        %v868 = vld [vmem:[%s762 + $0x118] sm:$0xf]
        %v869 = vld [vmem:[%s762 + $0x11c] sm:$0xf]
        %v870 = vld [vmem:[%s762 + $0x120] sm:$0xf]
        %v871 = vld [vmem:[%s762 + $0x124] sm:$0xf]
        %v872 = vld [vmem:[%s762 + $0x128] sm:$0xf]
        %v873 = vld [vmem:[%s762 + $0x12c] sm:$0xf]
        %v874 = vld [vmem:[%s762 + $0x130] sm:$0xf]
        %v875 = vld [vmem:[%s762 + $0x134] sm:$0xf]
        %v876 = vld [vmem:[%s762 + $0x138] sm:$0xf]
        %v877 = vld [vmem:[%s762 + $0x13c] sm:$0xf]
        %v878 = vld [vmem:[%s762 + $0x140] sm:$0xf]
        %v879 = vld [vmem:[%s762 + $0x144] sm:$0xf]
        %v880 = vld [vmem:[%s762 + $0x148] sm:$0xf]
        %v881 = vld [vmem:[%s762 + $0x14c] sm:$0xf]
        %v882 = vld [vmem:[%s762 + $0x150] sm:$0xf]
        %v883 = vld [vmem:[%s762 + $0x154] sm:$0xf]
        %v884 = vld [vmem:[%s762 + $0x158] sm:$0xf]
        %v885 = vld [vmem:[%s762 + $0x15c] sm:$0xf]
        %v886 = vld [vmem:[%s762 + $0x160] sm:$0xf]
        %v887 = vld [vmem:[%s762 + $0x164] sm:$0xf]
        %v888 = vld [vmem:[%s762 + $0x168] sm:$0xf]
        %v889 = vld [vmem:[%s762 + $0x16c] sm:$0xf]
        %v890 = vld [vmem:[%s762 + $0x170] sm:$0xf]
        %v891 = vld [vmem:[%s762 + $0x174] sm:$0xf]
        %v892 = vld [vmem:[%s762 + $0x178] sm:$0xf]
        %v893 = vld [vmem:[%s762 + $0x17c] sm:$0xf]
        %v894 = vld [vmem:[%s762 + $0x180] sm:$0xf]
        %v895 = vld [vmem:[%s762 + $0x184] sm:$0xf]
        %v896 = vld [vmem:[%s762 + $0x188] sm:$0xf]
        %v897 = vld [vmem:[%s762 + $0x18c] sm:$0xf]
        %v898 = vld [vmem:[%s762 + $0x190] sm:$0xf]
        %v899 = vld [vmem:[%s762 + $0x194] sm:$0xf]
        %v900 = vld [vmem:[%s762 + $0x198] sm:$0xf]
        %v901 = vld [vmem:[%s762 + $0x19c] sm:$0xf]
        %v902 = vld [vmem:[%s762 + $0x1a0] sm:$0xf]
        %v903 = vld [vmem:[%s762 + $0x1a4] sm:$0xf]
        %v904 = vld [vmem:[%s762 + $0x1a8] sm:$0xf]
        %v905 = vld [vmem:[%s762 + $0x1ac] sm:$0xf]
        %v906 = vld [vmem:[%s762 + $0x1b0] sm:$0xf]
        %v907 = vld [vmem:[%s762 + $0x1b4] sm:$0xf]
        %v908 = vld [vmem:[%s762 + $0x1b8] sm:$0xf]
        %v909 = vld [vmem:[%s762 + $0x1bc] sm:$0xf]
        %v910 = vld [vmem:[%s762 + $0x1c0] sm:$0xf]
        %v911 = vld [vmem:[%s762 + $0x1c4] sm:$0xf]
        %v912 = vld [vmem:[%s762 + $0x1c8] sm:$0xf]
        %v913 = vld [vmem:[%s762 + $0x1cc] sm:$0xf]
        %v914 = vld [vmem:[%s762 + $0x1d0] sm:$0xf]
        %v915 = vld [vmem:[%s762 + $0x1d4] sm:$0xf]
        %v916 = vld [vmem:[%s762 + $0x1d8] sm:$0xf]
        %v917 = vld [vmem:[%s762 + $0x1dc] sm:$0xf]
        %v918 = vld [vmem:[%s762 + $0x1e0] sm:$0xf]
        %v919 = vld [vmem:[%s762 + $0x1e4] sm:$0xf]
        %v920 = vld [vmem:[%s762 + $0x1e8] sm:$0xf]
        %v921 = vld [vmem:[%s762 + $0x1ec] sm:$0xf]
        %v922 = vld [vmem:[%s762 + $0x1f0] sm:$0xf]
        %v923 = vld [vmem:[%s762 + $0x1f4] sm:$0xf]
        %v924 = vld [vmem:[%s762 + $0x1f8] sm:$0xf]
        %v925 = vld [vmem:[%s762 + $0x1fc] sm:$0xf]
        %v926 = vld [vmem:[%s1] sm:$0xf]
        %v927 = vld [vmem:[%s1 + $0x4] sm:$0xf]
        %v928 = vld [vmem:[%s1 + $0x8] sm:$0xf]
        %v929 = vld [vmem:[%s1 + $0xc] sm:$0xf]
        %v930 = vld [vmem:[%s2] sm:$0x1]
        %v932 = vlaneseq
        %v933 = vshrl.u32 %v932, 7
        %v934 = vsub.s32 0, %v933
        %v935 = vrot.slane %v930, %v934
        %v1065 = vunpack.c.l.b16 %v798
        %v1066 = vunpack.c.l.b16 %v799
        %v1067 = vunpack.c.l.b16 %v800
        %v1068 = vunpack.c.l.b16 %v801
        %v1069 = vunpack.c.l.b16 %v802
        %v1070 = vunpack.c.l.b16 %v803
        %v1071 = vunpack.c.l.b16 %v804
        %v1072 = vunpack.c.l.b16 %v805
        %v1073 = vunpack.c.l.b16 %v806
        %v1074 = vunpack.c.l.b16 %v807
        %v1075 = vunpack.c.l.b16 %v808
        %v1076 = vunpack.c.l.b16 %v809
        %v1077 = vunpack.c.l.b16 %v810
        %v1078 = vunpack.c.l.b16 %v811
        %v1079 = vunpack.c.l.b16 %v812
        %v1080 = vunpack.c.l.b16 %v813
        %v1081 = vunpack.c.l.b16 %v814
        %v1082 = vunpack.c.l.b16 %v815
        %v1083 = vunpack.c.l.b16 %v816
        %v1084 = vunpack.c.l.b16 %v817
        %v1085 = vunpack.c.l.b16 %v818
        %v1086 = vunpack.c.l.b16 %v819
        %v1087 = vunpack.c.l.b16 %v820
        %v1088 = vunpack.c.l.b16 %v821
        %v1089 = vunpack.c.l.b16 %v822
        %v1090 = vunpack.c.l.b16 %v823
        %v1091 = vunpack.c.l.b16 %v824
        %v1092 = vunpack.c.l.b16 %v825
        %v1093 = vunpack.c.l.b16 %v826
        %v1094 = vunpack.c.l.b16 %v827
        %v1095 = vunpack.c.l.b16 %v828
        %v1096 = vunpack.c.l.b16 %v829
        %v1097 = vunpack.c.l.b16 %v830
        %v1098 = vunpack.c.l.b16 %v831
        %v1099 = vunpack.c.l.b16 %v832
        %v1100 = vunpack.c.l.b16 %v833
        %v1101 = vunpack.c.l.b16 %v834
        %v1102 = vunpack.c.l.b16 %v835
        %v1103 = vunpack.c.l.b16 %v836
        %v1104 = vunpack.c.l.b16 %v837
        %v1105 = vunpack.c.l.b16 %v838
        %v1106 = vunpack.c.l.b16 %v839
        %v1107 = vunpack.c.l.b16 %v840
        %v1108 = vunpack.c.l.b16 %v841
        %v1109 = vunpack.c.l.b16 %v842
        %v1110 = vunpack.c.l.b16 %v843
        %v1111 = vunpack.c.l.b16 %v844
        %v1112 = vunpack.c.l.b16 %v845
        %v1113 = vunpack.c.l.b16 %v846
        %v1114 = vunpack.c.l.b16 %v847
        %v1115 = vunpack.c.l.b16 %v848
        %v1116 = vunpack.c.l.b16 %v849
        %v1117 = vunpack.c.l.b16 %v850
        %v1118 = vunpack.c.l.b16 %v851
        %v1119 = vunpack.c.l.b16 %v852
        %v1120 = vunpack.c.l.b16 %v853
        %v1121 = vunpack.c.l.b16 %v854
        %v1122 = vunpack.c.l.b16 %v855
        %v1123 = vunpack.c.l.b16 %v856
        %v1124 = vunpack.c.l.b16 %v857
        %v1125 = vunpack.c.l.b16 %v858
        %v1126 = vunpack.c.l.b16 %v859
        %v1127 = vunpack.c.l.b16 %v860
        %v1128 = vunpack.c.l.b16 %v861
        %v1129 = vunpack.c.l.b16 %v862
        %v1130 = vunpack.c.l.b16 %v863
        %v1131 = vunpack.c.l.b16 %v864
        %v1132 = vunpack.c.l.b16 %v865
        %v1133 = vunpack.c.l.b16 %v866
        %v1134 = vunpack.c.l.b16 %v867
        %v1135 = vunpack.c.l.b16 %v868
        %v1136 = vunpack.c.l.b16 %v869
        %v1137 = vunpack.c.l.b16 %v870
        %v1138 = vunpack.c.l.b16 %v871
        %v1139 = vunpack.c.l.b16 %v872
        %v1140 = vunpack.c.l.b16 %v873
        %v1141 = vunpack.c.l.b16 %v874
        %v1142 = vunpack.c.l.b16 %v875
        %v1143 = vunpack.c.l.b16 %v876
        %v1144 = vunpack.c.l.b16 %v877
        %v1145 = vunpack.c.l.b16 %v878
        %v1146 = vunpack.c.l.b16 %v879
        %v1147 = vunpack.c.l.b16 %v880
        %v1148 = vunpack.c.l.b16 %v881
        %v1149 = vunpack.c.l.b16 %v882
        %v1150 = vunpack.c.l.b16 %v883
        %v1151 = vunpack.c.l.b16 %v884
        %v1152 = vunpack.c.l.b16 %v885
        %v1153 = vunpack.c.l.b16 %v886
        %v1154 = vunpack.c.l.b16 %v887
        %v1155 = vunpack.c.l.b16 %v888
        %v1156 = vunpack.c.l.b16 %v889
        %v1157 = vunpack.c.l.b16 %v890
        %v1158 = vunpack.c.l.b16 %v891
        %v1159 = vunpack.c.l.b16 %v892
        %v1160 = vunpack.c.l.b16 %v893
        %v1161 = vunpack.c.l.b16 %v894
        %v1162 = vunpack.c.l.b16 %v895
        %v1163 = vunpack.c.l.b16 %v896
        %v1164 = vunpack.c.l.b16 %v897
        %v1165 = vunpack.c.l.b16 %v898
        %v1166 = vunpack.c.l.b16 %v899
        %v1167 = vunpack.c.l.b16 %v900
        %v1168 = vunpack.c.l.b16 %v901
        %v1169 = vunpack.c.l.b16 %v902
        %v1170 = vunpack.c.l.b16 %v903
        %v1171 = vunpack.c.l.b16 %v904
        %v1172 = vunpack.c.l.b16 %v905
        %v1173 = vunpack.c.l.b16 %v906
        %v1174 = vunpack.c.l.b16 %v907
        %v1175 = vunpack.c.l.b16 %v908
        %v1176 = vunpack.c.l.b16 %v909
        %v1177 = vunpack.c.l.b16 %v910
        %v1178 = vunpack.c.l.b16 %v911
        %v1179 = vunpack.c.l.b16 %v912
        %v1180 = vunpack.c.l.b16 %v913
        %v1181 = vunpack.c.l.b16 %v914
        %v1182 = vunpack.c.l.b16 %v915
        %v1183 = vunpack.c.l.b16 %v916
        %v1184 = vunpack.c.l.b16 %v917
        %v1185 = vunpack.c.l.b16 %v918
        %v1186 = vunpack.c.l.b16 %v919
        %v1187 = vunpack.c.l.b16 %v920
        %v1188 = vunpack.c.l.b16 %v921
        %v1189 = vunpack.c.l.b16 %v922
        %v1190 = vunpack.c.l.b16 %v923
        %v1191 = vunpack.c.l.b16 %v924
        %v1192 = vunpack.c.l.b16 %v925
        %v1193 = vpack.c.b16 %v1066, %v1065
        %v1194 = vpack.c.b16 %v1068, %v1067
        %v1195 = vpack.c.b16 %v1070, %v1069
        %v1196 = vpack.c.b16 %v1072, %v1071
        %v1197 = vpack.c.b16 %v1074, %v1073
        %v1198 = vpack.c.b16 %v1076, %v1075
        %v1199 = vpack.c.b16 %v1078, %v1077
        %v1200 = vpack.c.b16 %v1080, %v1079
        %v1201 = vpack.c.b16 %v1082, %v1081
        %v1202 = vpack.c.b16 %v1084, %v1083
        %v1203 = vpack.c.b16 %v1086, %v1085
        %v1204 = vpack.c.b16 %v1088, %v1087
        %v1205 = vpack.c.b16 %v1090, %v1089
        %v1206 = vpack.c.b16 %v1092, %v1091
        %v1207 = vpack.c.b16 %v1094, %v1093
        %v1208 = vpack.c.b16 %v1096, %v1095
        %v1209 = vpack.c.b16 %v1098, %v1097
        %v1210 = vpack.c.b16 %v1100, %v1099
        %v1211 = vpack.c.b16 %v1102, %v1101
        %v1212 = vpack.c.b16 %v1104, %v1103
        %v1213 = vpack.c.b16 %v1106, %v1105
        %v1214 = vpack.c.b16 %v1108, %v1107
        %v1215 = vpack.c.b16 %v1110, %v1109
        %v1216 = vpack.c.b16 %v1112, %v1111
        %v1217 = vpack.c.b16 %v1114, %v1113
        %v1218 = vpack.c.b16 %v1116, %v1115
        %v1219 = vpack.c.b16 %v1118, %v1117
        %v1220 = vpack.c.b16 %v1120, %v1119
        %v1221 = vpack.c.b16 %v1122, %v1121
        %v1222 = vpack.c.b16 %v1124, %v1123
        %v1223 = vpack.c.b16 %v1126, %v1125
        %v1224 = vpack.c.b16 %v1128, %v1127
        %v1225 = vpack.c.b16 %v1130, %v1129
        %v1226 = vpack.c.b16 %v1132, %v1131
        %v1227 = vpack.c.b16 %v1134, %v1133
        %v1228 = vpack.c.b16 %v1136, %v1135
        %v1229 = vpack.c.b16 %v1138, %v1137
        %v1230 = vpack.c.b16 %v1140, %v1139
        %v1231 = vpack.c.b16 %v1142, %v1141
        %v1232 = vpack.c.b16 %v1144, %v1143
        %v1233 = vpack.c.b16 %v1146, %v1145
        %v1234 = vpack.c.b16 %v1148, %v1147
        %v1235 = vpack.c.b16 %v1150, %v1149
        %v1236 = vpack.c.b16 %v1152, %v1151
        %v1237 = vpack.c.b16 %v1154, %v1153
        %v1238 = vpack.c.b16 %v1156, %v1155
        %v1239 = vpack.c.b16 %v1158, %v1157
        %v1240 = vpack.c.b16 %v1160, %v1159
        %v1241 = vpack.c.b16 %v1162, %v1161
        %v1242 = vpack.c.b16 %v1164, %v1163
        %v1243 = vpack.c.b16 %v1166, %v1165
        %v1244 = vpack.c.b16 %v1168, %v1167
        %v1245 = vpack.c.b16 %v1170, %v1169
        %v1246 = vpack.c.b16 %v1172, %v1171
        %v1247 = vpack.c.b16 %v1174, %v1173
        %v1248 = vpack.c.b16 %v1176, %v1175
        %v1249 = vpack.c.b16 %v1178, %v1177
        %v1250 = vpack.c.b16 %v1180, %v1179
        %v1251 = vpack.c.b16 %v1182, %v1181
        %v1252 = vpack.c.b16 %v1184, %v1183
        %v1253 = vpack.c.b16 %v1186, %v1185
        %v1254 = vpack.c.b16 %v1188, %v1187
        %v1255 = vpack.c.b16 %v1190, %v1189
        %v1256 = vpack.c.b16 %v1192, %v1191
        %v1261 = vunpack.c.l.b16 %v926
        %v1262 = vunpack.c.l.b16 %v927
        %v1263 = vunpack.c.l.b16 %v928
        %v1264 = vunpack.c.l.b16 %v929
        %v1265 = vpack.c.b16 %v1262, %v1261
        %v1266 = vpack.c.b16 %v1264, %v1263
        %vm1269 = vcmask 261120
        %v1271 = vsel %vm1269, %v1193, 0
        %v1274 = vsel %vm1269, %v1194, 0
        %v1277 = vsel %vm1269, %v1195, 0
        %v1280 = vsel %vm1269, %v1196, 0
        %v1283 = vsel %vm1269, %v1197, 0
        %v1286 = vsel %vm1269, %v1198, 0
        %v1289 = vsel %vm1269, %v1199, 0
        %v1292 = vsel %vm1269, %v1200, 0
        %v1295 = vsel %vm1269, %v1201, 0
        %v1298 = vsel %vm1269, %v1202, 0
        %v1301 = vsel %vm1269, %v1203, 0
        %v1304 = vsel %vm1269, %v1204, 0
        %v1307 = vsel %vm1269, %v1205, 0
        %v1310 = vsel %vm1269, %v1206, 0
        %v1313 = vsel %vm1269, %v1207, 0
        %v1316 = vsel %vm1269, %v1208, 0
        %v1319 = vsel %vm1269, %v1209, 0
        %v1322 = vsel %vm1269, %v1210, 0
        %v1325 = vsel %vm1269, %v1211, 0
        %v1328 = vsel %vm1269, %v1212, 0
        %v1331 = vsel %vm1269, %v1213, 0
        %v1334 = vsel %vm1269, %v1214, 0
        %v1337 = vsel %vm1269, %v1215, 0
        %v1340 = vsel %vm1269, %v1216, 0
        %v1343 = vsel %vm1269, %v1217, 0
        %v1346 = vsel %vm1269, %v1218, 0
        %v1349 = vsel %vm1269, %v1219, 0
        %v1352 = vsel %vm1269, %v1220, 0
        %v1355 = vsel %vm1269, %v1221, 0
        %v1358 = vsel %vm1269, %v1222, 0
        %v1361 = vsel %vm1269, %v1223, 0
        %v1364 = vsel %vm1269, %v1224, 0
        %v1367 = vsel %vm1269, %v1225, 0
        %v1370 = vsel %vm1269, %v1226, 0
        %v1373 = vsel %vm1269, %v1227, 0
        %v1376 = vsel %vm1269, %v1228, 0
        %v1379 = vsel %vm1269, %v1229, 0
        %v1382 = vsel %vm1269, %v1230, 0
        %v1385 = vsel %vm1269, %v1231, 0
        %v1388 = vsel %vm1269, %v1232, 0
        %v1391 = vsel %vm1269, %v1233, 0
        %v1394 = vsel %vm1269, %v1234, 0
        %v1397 = vsel %vm1269, %v1235, 0
        %v1400 = vsel %vm1269, %v1236, 0
        %v1403 = vsel %vm1269, %v1237, 0
        %v1406 = vsel %vm1269, %v1238, 0
        %v1409 = vsel %vm1269, %v1239, 0
        %v1412 = vsel %vm1269, %v1240, 0
        %v1415 = vsel %vm1269, %v1241, 0
        %v1418 = vsel %vm1269, %v1242, 0
        %v1421 = vsel %vm1269, %v1243, 0
        %v1424 = vsel %vm1269, %v1244, 0
        %v1427 = vsel %vm1269, %v1245, 0
        %v1430 = vsel %vm1269, %v1246, 0
        %v1433 = vsel %vm1269, %v1247, 0
        %v1436 = vsel %vm1269, %v1248, 0
        %v1439 = vsel %vm1269, %v1249, 0
        %v1442 = vsel %vm1269, %v1250, 0
        %v1445 = vsel %vm1269, %v1251, 0
        %v1448 = vsel %vm1269, %v1252, 0
        %v1451 = vsel %vm1269, %v1253, 0
        %v1454 = vsel %vm1269, %v1254, 0
        %v1457 = vsel %vm1269, %v1255, 0
        %v1460 = vsel %vm1269, %v1256, 0
        %1462 = vmatprep.subr.bf16.mxu0 0
        %1463 = vmatpush1.bf16.msra.mxu0 0
        %1464 = vmatprep.subr.bf16.mxu0 0
        %1465 = vmatpush1.bf16.msra.mxu0 0
        %1466 = vmatprep.subr.bf16.mxu0 0
        %1467 = vmatpush1.bf16.msra.mxu0 0
        %1468 = vmatprep.subr.bf16.mxu0 0
        %1469 = vmatpush1.bf16.msra.mxu0 0
        %1470 = vmatprep.subr.bf16.mxu0 0
        %1471 = vmatpush1.bf16.msra.mxu0 0
        %1472 = vmatprep.subr.bf16.mxu0 0
        %1473 = vmatpush1.bf16.msra.mxu0 0
        %1474 = vmatprep.subr.bf16.mxu0 0
        %1475 = vmatpush1.bf16.msra.mxu0 %v1266
        %1476 = vmatprep.subr.bf16.mxu0 0
        %1477 = vmatpush1.bf16.msra.mxu0 %v1265
        %1478 = vmatprep.subr.bf16.mxu0 0
        %1479 = vmatpush2.bf16.msra.mxu0 0
        %1480 = vmatprep.subr.bf16.mxu0 0
        %1481 = vmatpush2.bf16.msra.mxu0 0
        %1482 = vmatprep.subr.bf16.mxu0 0
        %1483 = vmatpush2.bf16.msra.mxu0 0
        %1484 = vmatprep.subr.bf16.mxu0 0
        %1485 = vmatpush2.bf16.msra.mxu0 0
        %1486 = vmatprep.subr.bf16.mxu0 0
        %1487 = vmatpush2.bf16.msra.mxu0 0
        %1488 = vmatprep.subr.bf16.mxu0 0
        %1489 = vmatpush2.bf16.msra.mxu0 0
        %1490 = vmatprep.subr.bf16.mxu0 0
        %1491 = vmatpush2.bf16.msra.mxu0 0
        %1492 = vmatprep.subr.bf16.mxu0 0
        %1493 = vmatpush2.bf16.msra.mxu0 0
        %1494 = vmatprep.mubr.bf16.mxu0 0
        %1495 = vmatmul.mubr.bf16.gmra.mxu0 %v1271
        %v1496 = vpop.f32.mrf.mxu0
        %v1497 = vadd.f32 %v935, %v1496
        %v1498 = vpop.f32.mrf.mxu0
        %v1499 = vpop.f32.mrf.mxu0
        %v1500 = vadd.f32 %v935, %v1499
        %v1501 = vpop.f32.mrf.mxu0
        %1502 = vmatprep.mubr.bf16.mxu0 0
        %1503 = vmatmul.mubr.bf16.gmra.mxu0 %v1274
        %v1504 = vpop.f32.mrf.mxu0
        %v1505 = vadd.f32 %v935, %v1504
        %v1506 = vpop.f32.mrf.mxu0
        %v1507 = vpop.f32.mrf.mxu0
        %v1508 = vadd.f32 %v935, %v1507
        %v1509 = vpop.f32.mrf.mxu0
        %1510 = vmatprep.mubr.bf16.mxu0 0
        %1511 = vmatmul.mubr.bf16.gmra.mxu0 %v1277
        %v1512 = vpop.f32.mrf.mxu0
        %v1513 = vadd.f32 %v935, %v1512
        %v1514 = vpop.f32.mrf.mxu0
        %v1515 = vpop.f32.mrf.mxu0
        %v1516 = vadd.f32 %v935, %v1515
        %v1517 = vpop.f32.mrf.mxu0
        %1518 = vmatprep.mubr.bf16.mxu0 0
        %1519 = vmatmul.mubr.bf16.gmra.mxu0 %v1280
        %v1520 = vpop.f32.mrf.mxu0
        %v1521 = vadd.f32 %v935, %v1520
        %v1522 = vpop.f32.mrf.mxu0
        %v1523 = vpop.f32.mrf.mxu0
        %v1524 = vadd.f32 %v935, %v1523
        %v1525 = vpop.f32.mrf.mxu0
        %1526 = vmatprep.mubr.bf16.mxu0 0
        %1527 = vmatmul.mubr.bf16.gmra.mxu0 %v1283
        %v1528 = vpop.f32.mrf.mxu0
        %v1529 = vadd.f32 %v935, %v1528
        %v1530 = vpop.f32.mrf.mxu0
        %v1531 = vpop.f32.mrf.mxu0
        %v1532 = vadd.f32 %v935, %v1531
        %v1533 = vpop.f32.mrf.mxu0
        %1534 = vmatprep.mubr.bf16.mxu0 0
        %1535 = vmatmul.mubr.bf16.gmra.mxu0 %v1286
        %v1536 = vpop.f32.mrf.mxu0
        %v1537 = vadd.f32 %v935, %v1536
        %v1538 = vpop.f32.mrf.mxu0
        %v1539 = vpop.f32.mrf.mxu0
        %v1540 = vadd.f32 %v935, %v1539
        %v1541 = vpop.f32.mrf.mxu0
        %1542 = vmatprep.mubr.bf16.mxu0 0
        %1543 = vmatmul.mubr.bf16.gmra.mxu0 %v1289
        %v1544 = vpop.f32.mrf.mxu0
        %v1545 = vadd.f32 %v935, %v1544
        %v1546 = vpop.f32.mrf.mxu0
        %v1547 = vpop.f32.mrf.mxu0
        %v1548 = vadd.f32 %v935, %v1547
        %v1549 = vpop.f32.mrf.mxu0
        %1550 = vmatprep.mubr.bf16.mxu0 0
        %1551 = vmatmul.mubr.bf16.gmra.mxu0 %v1292
        %v1552 = vpop.f32.mrf.mxu0
        %v1553 = vadd.f32 %v935, %v1552
        %v1554 = vpop.f32.mrf.mxu0
        %v1555 = vpop.f32.mrf.mxu0
        %v1556 = vadd.f32 %v935, %v1555
        %v1557 = vpop.f32.mrf.mxu0
        %1558 = vmatprep.mubr.bf16.mxu0 0
        %1559 = vmatmul.mubr.bf16.gmra.mxu0 %v1295
        %v1560 = vpop.f32.mrf.mxu0
        %v1561 = vadd.f32 %v935, %v1560
        %v1562 = vpop.f32.mrf.mxu0
        %v1563 = vpop.f32.mrf.mxu0
        %v1564 = vadd.f32 %v935, %v1563
        %v1565 = vpop.f32.mrf.mxu0
        %1566 = vmatprep.mubr.bf16.mxu0 0
        %1567 = vmatmul.mubr.bf16.gmra.mxu0 %v1298
        %v1568 = vpop.f32.mrf.mxu0
        %v1569 = vadd.f32 %v935, %v1568
        %v1570 = vpop.f32.mrf.mxu0
        %v1571 = vpop.f32.mrf.mxu0
        %v1572 = vadd.f32 %v935, %v1571
        %v1573 = vpop.f32.mrf.mxu0
        %1574 = vmatprep.mubr.bf16.mxu0 0
        %1575 = vmatmul.mubr.bf16.gmra.mxu0 %v1301
        %v1576 = vpop.f32.mrf.mxu0
        %v1577 = vadd.f32 %v935, %v1576
        %v1578 = vpop.f32.mrf.mxu0
        %v1579 = vpop.f32.mrf.mxu0
        %v1580 = vadd.f32 %v935, %v1579
        %v1581 = vpop.f32.mrf.mxu0
        %1582 = vmatprep.mubr.bf16.mxu0 0
        %1583 = vmatmul.mubr.bf16.gmra.mxu0 %v1304
        %v1584 = vpop.f32.mrf.mxu0
        %v1585 = vadd.f32 %v935, %v1584
        %v1586 = vpop.f32.mrf.mxu0
        %v1587 = vpop.f32.mrf.mxu0
        %v1588 = vadd.f32 %v935, %v1587
        %v1589 = vpop.f32.mrf.mxu0
        %1590 = vmatprep.mubr.bf16.mxu0 0
        %1591 = vmatmul.mubr.bf16.gmra.mxu0 %v1307
        %v1592 = vpop.f32.mrf.mxu0
        %v1593 = vadd.f32 %v935, %v1592
        %v1594 = vpop.f32.mrf.mxu0
        %v1595 = vpop.f32.mrf.mxu0
        %v1596 = vadd.f32 %v935, %v1595
        %v1597 = vpop.f32.mrf.mxu0
        %1598 = vmatprep.mubr.bf16.mxu0 0
        %1599 = vmatmul.mubr.bf16.gmra.mxu0 %v1310
        %v1600 = vpop.f32.mrf.mxu0
        %v1601 = vadd.f32 %v935, %v1600
        %v1602 = vpop.f32.mrf.mxu0
        %v1603 = vpop.f32.mrf.mxu0
        %v1604 = vadd.f32 %v935, %v1603
        %v1605 = vpop.f32.mrf.mxu0
        %1606 = vmatprep.mubr.bf16.mxu0 0
        %1607 = vmatmul.mubr.bf16.gmra.mxu0 %v1313
        %v1608 = vpop.f32.mrf.mxu0
        %v1609 = vadd.f32 %v935, %v1608
        %v1610 = vpop.f32.mrf.mxu0
        %v1611 = vpop.f32.mrf.mxu0
        %v1612 = vadd.f32 %v935, %v1611
        %v1613 = vpop.f32.mrf.mxu0
        %1614 = vmatprep.mubr.bf16.mxu0 0
        %1615 = vmatmul.mubr.bf16.gmra.mxu0 %v1316
        %v1616 = vpop.f32.mrf.mxu0
        %v1617 = vadd.f32 %v935, %v1616
        %v1618 = vpop.f32.mrf.mxu0
        %v1619 = vpop.f32.mrf.mxu0
        %v1620 = vadd.f32 %v935, %v1619
        %v1621 = vpop.f32.mrf.mxu0
        %1622 = vmatprep.mubr.bf16.mxu0 0
        %1623 = vmatmul.mubr.bf16.gmra.mxu0 %v1319
        %v1624 = vpop.f32.mrf.mxu0
        %v1625 = vadd.f32 %v935, %v1624
        %v1626 = vpop.f32.mrf.mxu0
        %v1627 = vpop.f32.mrf.mxu0
        %v1628 = vadd.f32 %v935, %v1627
        %v1629 = vpop.f32.mrf.mxu0
        %1630 = vmatprep.mubr.bf16.mxu0 0
        %1631 = vmatmul.mubr.bf16.gmra.mxu0 %v1322
        %v1632 = vpop.f32.mrf.mxu0
        %v1633 = vadd.f32 %v935, %v1632
        %v1634 = vpop.f32.mrf.mxu0
        %v1635 = vpop.f32.mrf.mxu0
        %v1636 = vadd.f32 %v935, %v1635
        %v1637 = vpop.f32.mrf.mxu0
        %1638 = vmatprep.mubr.bf16.mxu0 0
        %1639 = vmatmul.mubr.bf16.gmra.mxu0 %v1325
        %v1640 = vpop.f32.mrf.mxu0
        %v1641 = vadd.f32 %v935, %v1640
        %v1642 = vpop.f32.mrf.mxu0
        %v1643 = vpop.f32.mrf.mxu0
        %v1644 = vadd.f32 %v935, %v1643
        %v1645 = vpop.f32.mrf.mxu0
        %1646 = vmatprep.mubr.bf16.mxu0 0
        %1647 = vmatmul.mubr.bf16.gmra.mxu0 %v1328
        %v1648 = vpop.f32.mrf.mxu0
        %v1649 = vadd.f32 %v935, %v1648
        %v1650 = vpop.f32.mrf.mxu0
        %v1651 = vpop.f32.mrf.mxu0
        %v1652 = vadd.f32 %v935, %v1651
        %v1653 = vpop.f32.mrf.mxu0
        %1654 = vmatprep.mubr.bf16.mxu0 0
        %1655 = vmatmul.mubr.bf16.gmra.mxu0 %v1331
        %v1656 = vpop.f32.mrf.mxu0
        %v1657 = vadd.f32 %v935, %v1656
        %v1658 = vpop.f32.mrf.mxu0
        %v1659 = vpop.f32.mrf.mxu0
        %v1660 = vadd.f32 %v935, %v1659
        %v1661 = vpop.f32.mrf.mxu0
        %1662 = vmatprep.mubr.bf16.mxu0 0
        %1663 = vmatmul.mubr.bf16.gmra.mxu0 %v1334
        %v1664 = vpop.f32.mrf.mxu0
        %v1665 = vadd.f32 %v935, %v1664
        %v1666 = vpop.f32.mrf.mxu0
        %v1667 = vpop.f32.mrf.mxu0
        %v1668 = vadd.f32 %v935, %v1667
        %v1669 = vpop.f32.mrf.mxu0
        %1670 = vmatprep.mubr.bf16.mxu0 0
        %1671 = vmatmul.mubr.bf16.gmra.mxu0 %v1337
        %v1672 = vpop.f32.mrf.mxu0
        %v1673 = vadd.f32 %v935, %v1672
        %v1674 = vpop.f32.mrf.mxu0
        %v1675 = vpop.f32.mrf.mxu0
        %v1676 = vadd.f32 %v935, %v1675
        %v1677 = vpop.f32.mrf.mxu0
        %1678 = vmatprep.mubr.bf16.mxu0 0
        %1679 = vmatmul.mubr.bf16.gmra.mxu0 %v1340
        %v1680 = vpop.f32.mrf.mxu0
        %v1681 = vadd.f32 %v935, %v1680
        %v1682 = vpop.f32.mrf.mxu0
        %v1683 = vpop.f32.mrf.mxu0
        %v1684 = vadd.f32 %v935, %v1683
        %v1685 = vpop.f32.mrf.mxu0
        %1686 = vmatprep.mubr.bf16.mxu0 0
        %1687 = vmatmul.mubr.bf16.gmra.mxu0 %v1343
        %v1688 = vpop.f32.mrf.mxu0
        %v1689 = vadd.f32 %v935, %v1688
        %v1690 = vpop.f32.mrf.mxu0
        %v1691 = vpop.f32.mrf.mxu0
        %v1692 = vadd.f32 %v935, %v1691
        %v1693 = vpop.f32.mrf.mxu0
        %1694 = vmatprep.mubr.bf16.mxu0 0
        %1695 = vmatmul.mubr.bf16.gmra.mxu0 %v1346
        %v1696 = vpop.f32.mrf.mxu0
        %v1697 = vadd.f32 %v935, %v1696
        %v1698 = vpop.f32.mrf.mxu0
        %v1699 = vpop.f32.mrf.mxu0
        %v1700 = vadd.f32 %v935, %v1699
        %v1701 = vpop.f32.mrf.mxu0
        %1702 = vmatprep.mubr.bf16.mxu0 0
        %1703 = vmatmul.mubr.bf16.gmra.mxu0 %v1349
        %v1704 = vpop.f32.mrf.mxu0
        %v1705 = vadd.f32 %v935, %v1704
        %v1706 = vpop.f32.mrf.mxu0
        %v1707 = vpop.f32.mrf.mxu0
        %v1708 = vadd.f32 %v935, %v1707
        %v1709 = vpop.f32.mrf.mxu0
        %1710 = vmatprep.mubr.bf16.mxu0 0
        %1711 = vmatmul.mubr.bf16.gmra.mxu0 %v1352
        %v1712 = vpop.f32.mrf.mxu0
        %v1713 = vadd.f32 %v935, %v1712
        %v1714 = vpop.f32.mrf.mxu0
        %v1715 = vpop.f32.mrf.mxu0
        %v1716 = vadd.f32 %v935, %v1715
        %v1717 = vpop.f32.mrf.mxu0
        %1718 = vmatprep.mubr.bf16.mxu0 0
        %1719 = vmatmul.mubr.bf16.gmra.mxu0 %v1355
        %v1720 = vpop.f32.mrf.mxu0
        %v1721 = vadd.f32 %v935, %v1720
        %v1722 = vpop.f32.mrf.mxu0
        %v1723 = vpop.f32.mrf.mxu0
        %v1724 = vadd.f32 %v935, %v1723
        %v1725 = vpop.f32.mrf.mxu0
        %1726 = vmatprep.mubr.bf16.mxu0 0
        %1727 = vmatmul.mubr.bf16.gmra.mxu0 %v1358
        %v1728 = vpop.f32.mrf.mxu0
        %v1729 = vadd.f32 %v935, %v1728
        %v1730 = vpop.f32.mrf.mxu0
        %v1731 = vpop.f32.mrf.mxu0
        %v1732 = vadd.f32 %v935, %v1731
        %v1733 = vpop.f32.mrf.mxu0
        %1734 = vmatprep.mubr.bf16.mxu0 0
        %1735 = vmatmul.mubr.bf16.gmra.mxu0 %v1361
        %v1736 = vpop.f32.mrf.mxu0
        %v1737 = vadd.f32 %v935, %v1736
        %v1738 = vpop.f32.mrf.mxu0
        %v1739 = vpop.f32.mrf.mxu0
        %v1740 = vadd.f32 %v935, %v1739
        %v1741 = vpop.f32.mrf.mxu0
        %1742 = vmatprep.mubr.bf16.mxu0 0
        %1743 = vmatmul.mubr.bf16.gmra.mxu0 %v1364
        %v1744 = vpop.f32.mrf.mxu0
        %v1745 = vadd.f32 %v935, %v1744
        %v1746 = vpop.f32.mrf.mxu0
        %v1747 = vpop.f32.mrf.mxu0
        %v1748 = vadd.f32 %v935, %v1747
        %v1749 = vpop.f32.mrf.mxu0
        %1750 = vmatprep.mubr.bf16.mxu0 0
        %1751 = vmatmul.mubr.bf16.gmra.mxu0 %v1367
        %v1752 = vpop.f32.mrf.mxu0
        %v1753 = vadd.f32 %v935, %v1752
        %v1754 = vpop.f32.mrf.mxu0
        %v1755 = vpop.f32.mrf.mxu0
        %v1756 = vadd.f32 %v935, %v1755
        %v1757 = vpop.f32.mrf.mxu0
        %1758 = vmatprep.mubr.bf16.mxu0 0
        %1759 = vmatmul.mubr.bf16.gmra.mxu0 %v1370
        %v1760 = vpop.f32.mrf.mxu0
        %v1761 = vadd.f32 %v935, %v1760
        %v1762 = vpop.f32.mrf.mxu0
        %v1763 = vpop.f32.mrf.mxu0
        %v1764 = vadd.f32 %v935, %v1763
        %v1765 = vpop.f32.mrf.mxu0
        %1766 = vmatprep.mubr.bf16.mxu0 0
        %1767 = vmatmul.mubr.bf16.gmra.mxu0 %v1373
        %v1768 = vpop.f32.mrf.mxu0
        %v1769 = vadd.f32 %v935, %v1768
        %v1770 = vpop.f32.mrf.mxu0
        %v1771 = vpop.f32.mrf.mxu0
        %v1772 = vadd.f32 %v935, %v1771
        %v1773 = vpop.f32.mrf.mxu0
        %1774 = vmatprep.mubr.bf16.mxu0 0
        %1775 = vmatmul.mubr.bf16.gmra.mxu0 %v1376
        %v1776 = vpop.f32.mrf.mxu0
        %v1777 = vadd.f32 %v935, %v1776
        %v1778 = vpop.f32.mrf.mxu0
        %v1779 = vpop.f32.mrf.mxu0
        %v1780 = vadd.f32 %v935, %v1779
        %v1781 = vpop.f32.mrf.mxu0
        %1782 = vmatprep.mubr.bf16.mxu0 0
        %1783 = vmatmul.mubr.bf16.gmra.mxu0 %v1379
        %v1784 = vpop.f32.mrf.mxu0
        %v1785 = vadd.f32 %v935, %v1784
        %v1786 = vpop.f32.mrf.mxu0
        %v1787 = vpop.f32.mrf.mxu0
        %v1788 = vadd.f32 %v935, %v1787
        %v1789 = vpop.f32.mrf.mxu0
        %1790 = vmatprep.mubr.bf16.mxu0 0
        %1791 = vmatmul.mubr.bf16.gmra.mxu0 %v1382
        %v1792 = vpop.f32.mrf.mxu0
        %v1793 = vadd.f32 %v935, %v1792
        %v1794 = vpop.f32.mrf.mxu0
        %v1795 = vpop.f32.mrf.mxu0
        %v1796 = vadd.f32 %v935, %v1795
        %v1797 = vpop.f32.mrf.mxu0
        %1798 = vmatprep.mubr.bf16.mxu0 0
        %1799 = vmatmul.mubr.bf16.gmra.mxu0 %v1385
        %v1800 = vpop.f32.mrf.mxu0
        %v1801 = vadd.f32 %v935, %v1800
        %v1802 = vpop.f32.mrf.mxu0
        %v1803 = vpop.f32.mrf.mxu0
        %v1804 = vadd.f32 %v935, %v1803
        %v1805 = vpop.f32.mrf.mxu0
        %1806 = vmatprep.mubr.bf16.mxu0 0
        %1807 = vmatmul.mubr.bf16.gmra.mxu0 %v1388
        %v1808 = vpop.f32.mrf.mxu0
        %v1809 = vadd.f32 %v935, %v1808
        %v1810 = vpop.f32.mrf.mxu0
        %v1811 = vpop.f32.mrf.mxu0
        %v1812 = vadd.f32 %v935, %v1811
        %v1813 = vpop.f32.mrf.mxu0
        %1814 = vmatprep.mubr.bf16.mxu0 0
        %1815 = vmatmul.mubr.bf16.gmra.mxu0 %v1391
        %v1816 = vpop.f32.mrf.mxu0
        %v1817 = vadd.f32 %v935, %v1816
        %v1818 = vpop.f32.mrf.mxu0
        %v1819 = vpop.f32.mrf.mxu0
        %v1820 = vadd.f32 %v935, %v1819
        %v1821 = vpop.f32.mrf.mxu0
        %1822 = vmatprep.mubr.bf16.mxu0 0
        %1823 = vmatmul.mubr.bf16.gmra.mxu0 %v1394
        %v1824 = vpop.f32.mrf.mxu0
        %v1825 = vadd.f32 %v935, %v1824
        %v1826 = vpop.f32.mrf.mxu0
        %v1827 = vpop.f32.mrf.mxu0
        %v1828 = vadd.f32 %v935, %v1827
        %v1829 = vpop.f32.mrf.mxu0
        %1830 = vmatprep.mubr.bf16.mxu0 0
        %1831 = vmatmul.mubr.bf16.gmra.mxu0 %v1397
        %v1832 = vpop.f32.mrf.mxu0
        %v1833 = vadd.f32 %v935, %v1832
        %v1834 = vpop.f32.mrf.mxu0
        %v1835 = vpop.f32.mrf.mxu0
        %v1836 = vadd.f32 %v935, %v1835
        %v1837 = vpop.f32.mrf.mxu0
        %1838 = vmatprep.mubr.bf16.mxu0 0
        %1839 = vmatmul.mubr.bf16.gmra.mxu0 %v1400
        %v1840 = vpop.f32.mrf.mxu0
        %v1841 = vadd.f32 %v935, %v1840
        %v1842 = vpop.f32.mrf.mxu0
        %v1843 = vpop.f32.mrf.mxu0
        %v1844 = vadd.f32 %v935, %v1843
        %v1845 = vpop.f32.mrf.mxu0
        %1846 = vmatprep.mubr.bf16.mxu0 0
        %1847 = vmatmul.mubr.bf16.gmra.mxu0 %v1403
        %v1848 = vpop.f32.mrf.mxu0
        %v1849 = vadd.f32 %v935, %v1848
        %v1850 = vpop.f32.mrf.mxu0
        %v1851 = vpop.f32.mrf.mxu0
        %v1852 = vadd.f32 %v935, %v1851
        %v1853 = vpop.f32.mrf.mxu0
        %1854 = vmatprep.mubr.bf16.mxu0 0
        %1855 = vmatmul.mubr.bf16.gmra.mxu0 %v1406
        %v1856 = vpop.f32.mrf.mxu0
        %v1857 = vadd.f32 %v935, %v1856
        %v1858 = vpop.f32.mrf.mxu0
        %v1859 = vpop.f32.mrf.mxu0
        %v1860 = vadd.f32 %v935, %v1859
        %v1861 = vpop.f32.mrf.mxu0
        %1862 = vmatprep.mubr.bf16.mxu0 0
        %1863 = vmatmul.mubr.bf16.gmra.mxu0 %v1409
        %v1864 = vpop.f32.mrf.mxu0
        %v1865 = vadd.f32 %v935, %v1864
        %v1866 = vpop.f32.mrf.mxu0
        %v1867 = vpop.f32.mrf.mxu0
        %v1868 = vadd.f32 %v935, %v1867
        %v1869 = vpop.f32.mrf.mxu0
        %1870 = vmatprep.mubr.bf16.mxu0 0
        %1871 = vmatmul.mubr.bf16.gmra.mxu0 %v1412
        %v1872 = vpop.f32.mrf.mxu0
        %v1873 = vadd.f32 %v935, %v1872
        %v1874 = vpop.f32.mrf.mxu0
        %v1875 = vpop.f32.mrf.mxu0
        %v1876 = vadd.f32 %v935, %v1875
        %v1877 = vpop.f32.mrf.mxu0
        %1878 = vmatprep.mubr.bf16.mxu0 0
        %1879 = vmatmul.mubr.bf16.gmra.mxu0 %v1415
        %v1880 = vpop.f32.mrf.mxu0
        %v1881 = vadd.f32 %v935, %v1880
        %v1882 = vpop.f32.mrf.mxu0
        %v1883 = vpop.f32.mrf.mxu0
        %v1884 = vadd.f32 %v935, %v1883
        %v1885 = vpop.f32.mrf.mxu0
        %1886 = vmatprep.mubr.bf16.mxu0 0
        %1887 = vmatmul.mubr.bf16.gmra.mxu0 %v1418
        %v1888 = vpop.f32.mrf.mxu0
        %v1889 = vadd.f32 %v935, %v1888
        %v1890 = vpop.f32.mrf.mxu0
        %v1891 = vpop.f32.mrf.mxu0
        %v1892 = vadd.f32 %v935, %v1891
        %v1893 = vpop.f32.mrf.mxu0
        %1894 = vmatprep.mubr.bf16.mxu0 0
        %1895 = vmatmul.mubr.bf16.gmra.mxu0 %v1421
        %v1896 = vpop.f32.mrf.mxu0
        %v1897 = vadd.f32 %v935, %v1896
        %v1898 = vpop.f32.mrf.mxu0
        %v1899 = vpop.f32.mrf.mxu0
        %v1900 = vadd.f32 %v935, %v1899
        %v1901 = vpop.f32.mrf.mxu0
        %1902 = vmatprep.mubr.bf16.mxu0 0
        %1903 = vmatmul.mubr.bf16.gmra.mxu0 %v1424
        %v1904 = vpop.f32.mrf.mxu0
        %v1905 = vadd.f32 %v935, %v1904
        %v1906 = vpop.f32.mrf.mxu0
        %v1907 = vpop.f32.mrf.mxu0
        %v1908 = vadd.f32 %v935, %v1907
        %v1909 = vpop.f32.mrf.mxu0
        %1910 = vmatprep.mubr.bf16.mxu0 0
        %1911 = vmatmul.mubr.bf16.gmra.mxu0 %v1427
        %v1912 = vpop.f32.mrf.mxu0
        %v1913 = vadd.f32 %v935, %v1912
        %v1914 = vpop.f32.mrf.mxu0
        %v1915 = vpop.f32.mrf.mxu0
        %v1916 = vadd.f32 %v935, %v1915
        %v1917 = vpop.f32.mrf.mxu0
        %1918 = vmatprep.mubr.bf16.mxu0 0
        %1919 = vmatmul.mubr.bf16.gmra.mxu0 %v1430
        %v1920 = vpop.f32.mrf.mxu0
        %v1921 = vadd.f32 %v935, %v1920
        %v1922 = vpop.f32.mrf.mxu0
        %v1923 = vpop.f32.mrf.mxu0
        %v1924 = vadd.f32 %v935, %v1923
        %v1925 = vpop.f32.mrf.mxu0
        %1926 = vmatprep.mubr.bf16.mxu0 0
        %1927 = vmatmul.mubr.bf16.gmra.mxu0 %v1433
        %v1928 = vpop.f32.mrf.mxu0
        %v1929 = vadd.f32 %v935, %v1928
        %v1930 = vpop.f32.mrf.mxu0
        %v1931 = vpop.f32.mrf.mxu0
        %v1932 = vadd.f32 %v935, %v1931
        %v1933 = vpop.f32.mrf.mxu0
        %1934 = vmatprep.mubr.bf16.mxu0 0
        %1935 = vmatmul.mubr.bf16.gmra.mxu0 %v1436
        %v1936 = vpop.f32.mrf.mxu0
        %v1937 = vadd.f32 %v935, %v1936
        %v1938 = vpop.f32.mrf.mxu0
        %v1939 = vpop.f32.mrf.mxu0
        %v1940 = vadd.f32 %v935, %v1939
        %v1941 = vpop.f32.mrf.mxu0
        %1942 = vmatprep.mubr.bf16.mxu0 0
        %1943 = vmatmul.mubr.bf16.gmra.mxu0 %v1439
        %v1944 = vpop.f32.mrf.mxu0
        %v1945 = vadd.f32 %v935, %v1944
        %v1946 = vpop.f32.mrf.mxu0
        %v1947 = vpop.f32.mrf.mxu0
        %v1948 = vadd.f32 %v935, %v1947
        %v1949 = vpop.f32.mrf.mxu0
        %1950 = vmatprep.mubr.bf16.mxu0 0
        %1951 = vmatmul.mubr.bf16.gmra.mxu0 %v1442
        %v1952 = vpop.f32.mrf.mxu0
        %v1953 = vadd.f32 %v935, %v1952
        %v1954 = vpop.f32.mrf.mxu0
        %v1955 = vpop.f32.mrf.mxu0
        %v1956 = vadd.f32 %v935, %v1955
        %v1957 = vpop.f32.mrf.mxu0
        %1958 = vmatprep.mubr.bf16.mxu0 0
        %1959 = vmatmul.mubr.bf16.gmra.mxu0 %v1445
        %v1960 = vpop.f32.mrf.mxu0
        %v1961 = vadd.f32 %v935, %v1960
        %v1962 = vpop.f32.mrf.mxu0
        %v1963 = vpop.f32.mrf.mxu0
        %v1964 = vadd.f32 %v935, %v1963
        %v1965 = vpop.f32.mrf.mxu0
        %1966 = vmatprep.mubr.bf16.mxu0 0
        %1967 = vmatmul.mubr.bf16.gmra.mxu0 %v1448
        %v1968 = vpop.f32.mrf.mxu0
        %v1969 = vadd.f32 %v935, %v1968
        %v1970 = vpop.f32.mrf.mxu0
        %v1971 = vpop.f32.mrf.mxu0
        %v1972 = vadd.f32 %v935, %v1971
        %v1973 = vpop.f32.mrf.mxu0
        %1974 = vmatprep.mubr.bf16.mxu0 0
        %1975 = vmatmul.mubr.bf16.gmra.mxu0 %v1451
        %v1976 = vpop.f32.mrf.mxu0
        %v1977 = vadd.f32 %v935, %v1976
        %v1978 = vpop.f32.mrf.mxu0
        %v1979 = vpop.f32.mrf.mxu0
        %v1980 = vadd.f32 %v935, %v1979
        %v1981 = vpop.f32.mrf.mxu0
        %1982 = vmatprep.mubr.bf16.mxu0 0
        %1983 = vmatmul.mubr.bf16.gmra.mxu0 %v1454
        %v1984 = vpop.f32.mrf.mxu0
        %v1985 = vadd.f32 %v935, %v1984
        %v1986 = vpop.f32.mrf.mxu0
        %v1987 = vpop.f32.mrf.mxu0
        %v1988 = vadd.f32 %v935, %v1987
        %v1989 = vpop.f32.mrf.mxu0
        %1990 = vmatprep.mubr.bf16.mxu0 0
        %1991 = vmatmul.mubr.bf16.gmra.mxu0 %v1457
        %v1992 = vpop.f32.mrf.mxu0
        %v1993 = vadd.f32 %v935, %v1992
        %v1994 = vpop.f32.mrf.mxu0
        %v1995 = vpop.f32.mrf.mxu0
        %v1996 = vadd.f32 %v935, %v1995
        %v1997 = vpop.f32.mrf.mxu0
        %1998 = vmatprep.mubr.bf16.mxu0 0
        %1999 = vmatmul.mubr.bf16.gmra.mxu0 %v1460
        %v2000 = vpop.f32.mrf.mxu0
        %v2001 = vadd.f32 %v935, %v2000
        %v2002 = vpop.f32.mrf.mxu0
        %v2003 = vpop.f32.mrf.mxu0
        %v2004 = vadd.f32 %v935, %v2003
        %v2005 = vpop.f32.mrf.mxu0
        %2006 = vdwg.mxu0
        %v2007 = vsub.f32 0.0, %v1497
        %v2008 = vsub.f32 0.0, %v1500
        %v2009 = vsub.f32 0.0, %v1505
        %v2010 = vsub.f32 0.0, %v1508
        %v2011 = vsub.f32 0.0, %v1513
        %v2012 = vsub.f32 0.0, %v1516
        %v2013 = vsub.f32 0.0, %v1521
        %v2014 = vsub.f32 0.0, %v1524
        %v2015 = vsub.f32 0.0, %v1529
        %v2016 = vsub.f32 0.0, %v1532
        %v2017 = vsub.f32 0.0, %v1537
        %v2018 = vsub.f32 0.0, %v1540
        %v2019 = vsub.f32 0.0, %v1545
        %v2020 = vsub.f32 0.0, %v1548
        %v2021 = vsub.f32 0.0, %v1553
        %v2022 = vsub.f32 0.0, %v1556
        %v2023 = vsub.f32 0.0, %v1561
        %v2024 = vsub.f32 0.0, %v1564
        %v2025 = vsub.f32 0.0, %v1569
        %v2026 = vsub.f32 0.0, %v1572
        %v2027 = vsub.f32 0.0, %v1577
        %v2028 = vsub.f32 0.0, %v1580
        %v2029 = vsub.f32 0.0, %v1585
        %v2030 = vsub.f32 0.0, %v1588
        %v2031 = vsub.f32 0.0, %v1593
        %v2032 = vsub.f32 0.0, %v1596
        %v2033 = vsub.f32 0.0, %v1601
        %v2034 = vsub.f32 0.0, %v1604
        %v2035 = vsub.f32 0.0, %v1609
        %v2036 = vsub.f32 0.0, %v1612
        %v2037 = vsub.f32 0.0, %v1617
        %v2038 = vsub.f32 0.0, %v1620
        %v2039 = vsub.f32 0.0, %v1625
        %v2040 = vsub.f32 0.0, %v1628
        %v2041 = vsub.f32 0.0, %v1633
        %v2042 = vsub.f32 0.0, %v1636
        %v2043 = vsub.f32 0.0, %v1641
        %v2044 = vsub.f32 0.0, %v1644
        %v2045 = vsub.f32 0.0, %v1649
        %v2046 = vsub.f32 0.0, %v1652
        %v2047 = vsub.f32 0.0, %v1657
        %v2048 = vsub.f32 0.0, %v1660
        %v2049 = vsub.f32 0.0, %v1665
        %v2050 = vsub.f32 0.0, %v1668
        %v2051 = vsub.f32 0.0, %v1673
        %v2052 = vsub.f32 0.0, %v1676
        %v2053 = vsub.f32 0.0, %v1681
        %v2054 = vsub.f32 0.0, %v1684
        %v2055 = vsub.f32 0.0, %v1689
        %v2056 = vsub.f32 0.0, %v1692
        %v2057 = vsub.f32 0.0, %v1697
        %v2058 = vsub.f32 0.0, %v1700
        %v2059 = vsub.f32 0.0, %v1705
        %v2060 = vsub.f32 0.0, %v1708
        %v2061 = vsub.f32 0.0, %v1713
        %v2062 = vsub.f32 0.0, %v1716
        %v2063 = vsub.f32 0.0, %v1721
        %v2064 = vsub.f32 0.0, %v1724
        %v2065 = vsub.f32 0.0, %v1729
        %v2066 = vsub.f32 0.0, %v1732
        %v2067 = vsub.f32 0.0, %v1737
        %v2068 = vsub.f32 0.0, %v1740
        %v2069 = vsub.f32 0.0, %v1745
        %v2070 = vsub.f32 0.0, %v1748
        %v2071 = vsub.f32 0.0, %v1753
        %v2072 = vsub.f32 0.0, %v1756
        %v2073 = vsub.f32 0.0, %v1761
        %v2074 = vsub.f32 0.0, %v1764
        %v2075 = vsub.f32 0.0, %v1769
        %v2076 = vsub.f32 0.0, %v1772
        %v2077 = vsub.f32 0.0, %v1777
        %v2078 = vsub.f32 0.0, %v1780
        %v2079 = vsub.f32 0.0, %v1785
        %v2080 = vsub.f32 0.0, %v1788
        %v2081 = vsub.f32 0.0, %v1793
        %v2082 = vsub.f32 0.0, %v1796
        %v2083 = vsub.f32 0.0, %v1801
        %v2084 = vsub.f32 0.0, %v1804
        %v2085 = vsub.f32 0.0, %v1809
        %v2086 = vsub.f32 0.0, %v1812
        %v2087 = vsub.f32 0.0, %v1817
        %v2088 = vsub.f32 0.0, %v1820
        %v2089 = vsub.f32 0.0, %v1825
        %v2090 = vsub.f32 0.0, %v1828
        %v2091 = vsub.f32 0.0, %v1833
        %v2092 = vsub.f32 0.0, %v1836
        %v2093 = vsub.f32 0.0, %v1841
        %v2094 = vsub.f32 0.0, %v1844
        %v2095 = vsub.f32 0.0, %v1849
        %v2096 = vsub.f32 0.0, %v1852
        %v2097 = vsub.f32 0.0, %v1857
        %v2098 = vsub.f32 0.0, %v1860
        %v2099 = vsub.f32 0.0, %v1865
        %v2100 = vsub.f32 0.0, %v1868
        %v2101 = vsub.f32 0.0, %v1873
        %v2102 = vsub.f32 0.0, %v1876
        %v2103 = vsub.f32 0.0, %v1881
        %v2104 = vsub.f32 0.0, %v1884
        %v2105 = vsub.f32 0.0, %v1889
        %v2106 = vsub.f32 0.0, %v1892
        %v2107 = vsub.f32 0.0, %v1897
        %v2108 = vsub.f32 0.0, %v1900
        %v2109 = vsub.f32 0.0, %v1905
        %v2110 = vsub.f32 0.0, %v1908
        %v2111 = vsub.f32 0.0, %v1913
        %v2112 = vsub.f32 0.0, %v1916
        %v2113 = vsub.f32 0.0, %v1921
        %v2114 = vsub.f32 0.0, %v1924
        %v2115 = vsub.f32 0.0, %v1929
        %v2116 = vsub.f32 0.0, %v1932
        %v2117 = vsub.f32 0.0, %v1937
        %v2118 = vsub.f32 0.0, %v1940
        %v2119 = vsub.f32 0.0, %v1945
        %v2120 = vsub.f32 0.0, %v1948
        %v2121 = vsub.f32 0.0, %v1953
        %v2122 = vsub.f32 0.0, %v1956
        %v2123 = vsub.f32 0.0, %v1961
        %v2124 = vsub.f32 0.0, %v1964
        %v2125 = vsub.f32 0.0, %v1969
        %v2126 = vsub.f32 0.0, %v1972
        %v2127 = vsub.f32 0.0, %v1977
        %v2128 = vsub.f32 0.0, %v1980
        %v2129 = vsub.f32 0.0, %v1985
        %v2130 = vsub.f32 0.0, %v1988
        %v2131 = vsub.f32 0.0, %v1993
        %v2132 = vsub.f32 0.0, %v1996
        %v2133 = vsub.f32 0.0, %v2001
        %v2134 = vsub.f32 0.0, %v2004
        %v2135 = vmul.f32 %v2007, 1.442695
        %v2136 = vpow.pop %v2135
        %v2137 = vmul.f32 %v2008, 1.442695
        %v2138 = vpow.pop %v2137
        %v2139 = vmul.f32 %v2009, 1.442695
        %v2140 = vpow.pop %v2139
        %v2141 = vmul.f32 %v2010, 1.442695
        %v2142 = vpow.pop %v2141
        %v2143 = vmul.f32 %v2011, 1.442695
        %v2144 = vpow.pop %v2143
        %v2145 = vmul.f32 %v2012, 1.442695
        %v2146 = vpow.pop %v2145
        %v2147 = vmul.f32 %v2013, 1.442695
        %v2148 = vpow.pop %v2147
        %v2149 = vmul.f32 %v2014, 1.442695
        %v2150 = vpow.pop %v2149
        %v2151 = vmul.f32 %v2015, 1.442695
        %v2152 = vpow.pop %v2151
        %v2153 = vmul.f32 %v2016, 1.442695
        %v2154 = vpow.pop %v2153
        %v2155 = vmul.f32 %v2017, 1.442695
        %v2156 = vpow.pop %v2155
        %v2157 = vmul.f32 %v2018, 1.442695
        %v2158 = vpow.pop %v2157
        %v2159 = vmul.f32 %v2019, 1.442695
        %v2160 = vpow.pop %v2159
        %v2161 = vmul.f32 %v2020, 1.442695
        %v2162 = vpow.pop %v2161
        %v2163 = vmul.f32 %v2021, 1.442695
        %v2164 = vpow.pop %v2163
        %v2165 = vmul.f32 %v2022, 1.442695
        %v2166 = vpow.pop %v2165
        %v2167 = vmul.f32 %v2023, 1.442695
        %v2168 = vpow.pop %v2167
        %v2169 = vmul.f32 %v2024, 1.442695
        %v2170 = vpow.pop %v2169
        %v2171 = vmul.f32 %v2025, 1.442695
        %v2172 = vpow.pop %v2171
        %v2173 = vmul.f32 %v2026, 1.442695
        %v2174 = vpow.pop %v2173
        %v2175 = vmul.f32 %v2027, 1.442695
        %v2176 = vpow.pop %v2175
        %v2177 = vmul.f32 %v2028, 1.442695
        %v2178 = vpow.pop %v2177
        %v2179 = vmul.f32 %v2029, 1.442695
        %v2180 = vpow.pop %v2179
        %v2181 = vmul.f32 %v2030, 1.442695
        %v2182 = vpow.pop %v2181
        %v2183 = vmul.f32 %v2031, 1.442695
        %v2184 = vpow.pop %v2183
        %v2185 = vmul.f32 %v2032, 1.442695
        %v2186 = vpow.pop %v2185
        %v2187 = vmul.f32 %v2033, 1.442695
        %v2188 = vpow.pop %v2187
        %v2189 = vmul.f32 %v2034, 1.442695
        %v2190 = vpow.pop %v2189
        %v2191 = vmul.f32 %v2035, 1.442695
        %v2192 = vpow.pop %v2191
        %v2193 = vmul.f32 %v2036, 1.442695
        %v2194 = vpow.pop %v2193
        %v2195 = vmul.f32 %v2037, 1.442695
        %v2196 = vpow.pop %v2195
        %v2197 = vmul.f32 %v2038, 1.442695
        %v2198 = vpow.pop %v2197
        %v2199 = vmul.f32 %v2039, 1.442695
        %v2200 = vpow.pop %v2199
        %v2201 = vmul.f32 %v2040, 1.442695
        %v2202 = vpow.pop %v2201
        %v2203 = vmul.f32 %v2041, 1.442695
        %v2204 = vpow.pop %v2203
        %v2205 = vmul.f32 %v2042, 1.442695
        %v2206 = vpow.pop %v2205
        %v2207 = vmul.f32 %v2043, 1.442695
        %v2208 = vpow.pop %v2207
        %v2209 = vmul.f32 %v2044, 1.442695
        %v2210 = vpow.pop %v2209
        %v2211 = vmul.f32 %v2045, 1.442695
        %v2212 = vpow.pop %v2211
        %v2213 = vmul.f32 %v2046, 1.442695
        %v2214 = vpow.pop %v2213
        %v2215 = vmul.f32 %v2047, 1.442695
        %v2216 = vpow.pop %v2215
        %v2217 = vmul.f32 %v2048, 1.442695
        %v2218 = vpow.pop %v2217
        %v2219 = vmul.f32 %v2049, 1.442695
        %v2220 = vpow.pop %v2219
        %v2221 = vmul.f32 %v2050, 1.442695
        %v2222 = vpow.pop %v2221
        %v2223 = vmul.f32 %v2051, 1.442695
        %v2224 = vpow.pop %v2223
        %v2225 = vmul.f32 %v2052, 1.442695
        %v2226 = vpow.pop %v2225
        %v2227 = vmul.f32 %v2053, 1.442695
        %v2228 = vpow.pop %v2227
        %v2229 = vmul.f32 %v2054, 1.442695
        %v2230 = vpow.pop %v2229
        %v2231 = vmul.f32 %v2055, 1.442695
        %v2232 = vpow.pop %v2231
        %v2233 = vmul.f32 %v2056, 1.442695
        %v2234 = vpow.pop %v2233
        %v2235 = vmul.f32 %v2057, 1.442695
        %v2236 = vpow.pop %v2235
        %v2237 = vmul.f32 %v2058, 1.442695
        %v2238 = vpow.pop %v2237
        %v2239 = vmul.f32 %v2059, 1.442695
        %v2240 = vpow.pop %v2239
        %v2241 = vmul.f32 %v2060, 1.442695
        %v2242 = vpow.pop %v2241
        %v2243 = vmul.f32 %v2061, 1.442695
        %v2244 = vpow.pop %v2243
        %v2245 = vmul.f32 %v2062, 1.442695
        %v2246 = vpow.pop %v2245
        %v2247 = vmul.f32 %v2063, 1.442695
        %v2248 = vpow.pop %v2247
        %v2249 = vmul.f32 %v2064, 1.442695
        %v2250 = vpow.pop %v2249
        %v2251 = vmul.f32 %v2065, 1.442695
        %v2252 = vpow.pop %v2251
        %v2253 = vmul.f32 %v2066, 1.442695
        %v2254 = vpow.pop %v2253
        %v2255 = vmul.f32 %v2067, 1.442695
        %v2256 = vpow.pop %v2255
        %v2257 = vmul.f32 %v2068, 1.442695
        %v2258 = vpow.pop %v2257
        %v2259 = vmul.f32 %v2069, 1.442695
        %v2260 = vpow.pop %v2259
        %v2261 = vmul.f32 %v2070, 1.442695
        %v2262 = vpow.pop %v2261
        %v2263 = vmul.f32 %v2071, 1.442695
        %v2264 = vpow.pop %v2263
        %v2265 = vmul.f32 %v2072, 1.442695
        %v2266 = vpow.pop %v2265
        %v2267 = vmul.f32 %v2073, 1.442695
        %v2268 = vpow.pop %v2267
        %v2269 = vmul.f32 %v2074, 1.442695
        %v2270 = vpow.pop %v2269
        %v2271 = vmul.f32 %v2075, 1.442695
        %v2272 = vpow.pop %v2271
        %v2273 = vmul.f32 %v2076, 1.442695
        %v2274 = vpow.pop %v2273
        %v2275 = vmul.f32 %v2077, 1.442695
        %v2276 = vpow.pop %v2275
        %v2277 = vmul.f32 %v2078, 1.442695
        %v2278 = vpow.pop %v2277
        %v2279 = vmul.f32 %v2079, 1.442695
        %v2280 = vpow.pop %v2279
        %v2281 = vmul.f32 %v2080, 1.442695
        %v2282 = vpow.pop %v2281
        %v2283 = vmul.f32 %v2081, 1.442695
        %v2284 = vpow.pop %v2283
        %v2285 = vmul.f32 %v2082, 1.442695
        %v2286 = vpow.pop %v2285
        %v2287 = vmul.f32 %v2083, 1.442695
        %v2288 = vpow.pop %v2287
        %v2289 = vmul.f32 %v2084, 1.442695
        %v2290 = vpow.pop %v2289
        %v2291 = vmul.f32 %v2085, 1.442695
        %v2292 = vpow.pop %v2291
        %v2293 = vmul.f32 %v2086, 1.442695
        %v2294 = vpow.pop %v2293
        %v2295 = vmul.f32 %v2087, 1.442695
        %v2296 = vpow.pop %v2295
        %v2297 = vmul.f32 %v2088, 1.442695
        %v2298 = vpow.pop %v2297
        %v2299 = vmul.f32 %v2089, 1.442695
        %v2300 = vpow.pop %v2299
        %v2301 = vmul.f32 %v2090, 1.442695
        %v2302 = vpow.pop %v2301
        %v2303 = vmul.f32 %v2091, 1.442695
        %v2304 = vpow.pop %v2303
        %v2305 = vmul.f32 %v2092, 1.442695
        %v2306 = vpow.pop %v2305
        %v2307 = vmul.f32 %v2093, 1.442695
        %v2308 = vpow.pop %v2307
        %v2309 = vmul.f32 %v2094, 1.442695
        %v2310 = vpow.pop %v2309
        %v2311 = vmul.f32 %v2095, 1.442695
        %v2312 = vpow.pop %v2311
        %v2313 = vmul.f32 %v2096, 1.442695
        %v2314 = vpow.pop %v2313
        %v2315 = vmul.f32 %v2097, 1.442695
        %v2316 = vpow.pop %v2315
        %v2317 = vmul.f32 %v2098, 1.442695
        %v2318 = vpow.pop %v2317
        %v2319 = vmul.f32 %v2099, 1.442695
        %v2320 = vpow.pop %v2319
        %v2321 = vmul.f32 %v2100, 1.442695
        %v2322 = vpow.pop %v2321
        %v2323 = vmul.f32 %v2101, 1.442695
        %v2324 = vpow.pop %v2323
        %v2325 = vmul.f32 %v2102, 1.442695
        %v2326 = vpow.pop %v2325
        %v2327 = vmul.f32 %v2103, 1.442695
        %v2328 = vpow.pop %v2327
        %v2329 = vmul.f32 %v2104, 1.442695
        %v2330 = vpow.pop %v2329
        %v2331 = vmul.f32 %v2105, 1.442695
        %v2332 = vpow.pop %v2331
        %v2333 = vmul.f32 %v2106, 1.442695
        %v2334 = vpow.pop %v2333
        %v2335 = vmul.f32 %v2107, 1.442695
        %v2336 = vpow.pop %v2335
        %v2337 = vmul.f32 %v2108, 1.442695
        %v2338 = vpow.pop %v2337
        %v2339 = vmul.f32 %v2109, 1.442695
        %v2340 = vpow.pop %v2339
        %v2341 = vmul.f32 %v2110, 1.442695
        %v2342 = vpow.pop %v2341
        %v2343 = vmul.f32 %v2111, 1.442695
        %v2344 = vpow.pop %v2343
        %v2345 = vmul.f32 %v2112, 1.442695
        %v2346 = vpow.pop %v2345
        %v2347 = vmul.f32 %v2113, 1.442695
        %v2348 = vpow.pop %v2347
        %v2349 = vmul.f32 %v2114, 1.442695
        %v2350 = vpow.pop %v2349
        %v2351 = vmul.f32 %v2115, 1.442695
        %v2352 = vpow.pop %v2351
        %v2353 = vmul.f32 %v2116, 1.442695
        %v2354 = vpow.pop %v2353
        %v2355 = vmul.f32 %v2117, 1.442695
        %v2356 = vpow.pop %v2355
        %v2357 = vmul.f32 %v2118, 1.442695
        %v2358 = vpow.pop %v2357
        %v2359 = vmul.f32 %v2119, 1.442695
        %v2360 = vpow.pop %v2359
        %v2361 = vmul.f32 %v2120, 1.442695
        %v2362 = vpow.pop %v2361
        %v2363 = vmul.f32 %v2121, 1.442695
        %v2364 = vpow.pop %v2363
        %v2365 = vmul.f32 %v2122, 1.442695
        %v2366 = vpow.pop %v2365
        %v2367 = vmul.f32 %v2123, 1.442695
        %v2368 = vpow.pop %v2367
        %v2369 = vmul.f32 %v2124, 1.442695
        %v2370 = vpow.pop %v2369
        %v2371 = vmul.f32 %v2125, 1.442695
        %v2372 = vpow.pop %v2371
        %v2373 = vmul.f32 %v2126, 1.442695
        %v2374 = vpow.pop %v2373
        %v2375 = vmul.f32 %v2127, 1.442695
        %v2376 = vpow.pop %v2375
        %v2377 = vmul.f32 %v2128, 1.442695
        %v2378 = vpow.pop %v2377
        %v2379 = vmul.f32 %v2129, 1.442695
        %v2380 = vpow.pop %v2379
        %v2381 = vmul.f32 %v2130, 1.442695
        %v2382 = vpow.pop %v2381
        %v2383 = vmul.f32 %v2131, 1.442695
        %v2384 = vpow.pop %v2383
        %v2385 = vmul.f32 %v2132, 1.442695
        %v2386 = vpow.pop %v2385
        %v2387 = vmul.f32 %v2133, 1.442695
        %v2388 = vpow.pop %v2387
        %v2389 = vmul.f32 %v2134, 1.442695
        %v2390 = vpow.pop %v2389
        %v2391 = vadd.f32 %v2136, 1.0
        %v2392 = vadd.f32 %v2138, 1.0
        %v2393 = vadd.f32 %v2140, 1.0
        %v2394 = vadd.f32 %v2142, 1.0
        %v2395 = vadd.f32 %v2144, 1.0
        %v2396 = vadd.f32 %v2146, 1.0
        %v2397 = vadd.f32 %v2148, 1.0
        %v2398 = vadd.f32 %v2150, 1.0
        %v2399 = vadd.f32 %v2152, 1.0
        %v2400 = vadd.f32 %v2154, 1.0
        %v2401 = vadd.f32 %v2156, 1.0
        %v2402 = vadd.f32 %v2158, 1.0
        %v2403 = vadd.f32 %v2160, 1.0
        %v2404 = vadd.f32 %v2162, 1.0
        %v2405 = vadd.f32 %v2164, 1.0
        %v2406 = vadd.f32 %v2166, 1.0
        %v2407 = vadd.f32 %v2168, 1.0
        %v2408 = vadd.f32 %v2170, 1.0
        %v2409 = vadd.f32 %v2172, 1.0
        %v2410 = vadd.f32 %v2174, 1.0
        %v2411 = vadd.f32 %v2176, 1.0
        %v2412 = vadd.f32 %v2178, 1.0
        %v2413 = vadd.f32 %v2180, 1.0
        %v2414 = vadd.f32 %v2182, 1.0
        %v2415 = vadd.f32 %v2184, 1.0
        %v2416 = vadd.f32 %v2186, 1.0
        %v2417 = vadd.f32 %v2188, 1.0
        %v2418 = vadd.f32 %v2190, 1.0
        %v2419 = vadd.f32 %v2192, 1.0
        %v2420 = vadd.f32 %v2194, 1.0
        %v2421 = vadd.f32 %v2196, 1.0
        %v2422 = vadd.f32 %v2198, 1.0
        %v2423 = vadd.f32 %v2200, 1.0
        %v2424 = vadd.f32 %v2202, 1.0
        %v2425 = vadd.f32 %v2204, 1.0
        %v2426 = vadd.f32 %v2206, 1.0
        %v2427 = vadd.f32 %v2208, 1.0
        %v2428 = vadd.f32 %v2210, 1.0
        %v2429 = vadd.f32 %v2212, 1.0
        %v2430 = vadd.f32 %v2214, 1.0
        %v2431 = vadd.f32 %v2216, 1.0
        %v2432 = vadd.f32 %v2218, 1.0
        %v2433 = vadd.f32 %v2220, 1.0
        %v2434 = vadd.f32 %v2222, 1.0
        %v2435 = vadd.f32 %v2224, 1.0
        %v2436 = vadd.f32 %v2226, 1.0
        %v2437 = vadd.f32 %v2228, 1.0
        %v2438 = vadd.f32 %v2230, 1.0
        %v2439 = vadd.f32 %v2232, 1.0
        %v2440 = vadd.f32 %v2234, 1.0
        %v2441 = vadd.f32 %v2236, 1.0
        %v2442 = vadd.f32 %v2238, 1.0
        %v2443 = vadd.f32 %v2240, 1.0
        %v2444 = vadd.f32 %v2242, 1.0
        %v2445 = vadd.f32 %v2244, 1.0
        %v2446 = vadd.f32 %v2246, 1.0
        %v2447 = vadd.f32 %v2248, 1.0
        %v2448 = vadd.f32 %v2250, 1.0
        %v2449 = vadd.f32 %v2252, 1.0
        %v2450 = vadd.f32 %v2254, 1.0
        %v2451 = vadd.f32 %v2256, 1.0
        %v2452 = vadd.f32 %v2258, 1.0
        %v2453 = vadd.f32 %v2260, 1.0
        %v2454 = vadd.f32 %v2262, 1.0
        %v2455 = vadd.f32 %v2264, 1.0
        %v2456 = vadd.f32 %v2266, 1.0
        %v2457 = vadd.f32 %v2268, 1.0
        %v2458 = vadd.f32 %v2270, 1.0
        %v2459 = vadd.f32 %v2272, 1.0
        %v2460 = vadd.f32 %v2274, 1.0
        %v2461 = vadd.f32 %v2276, 1.0
        %v2462 = vadd.f32 %v2278, 1.0
        %v2463 = vadd.f32 %v2280, 1.0
        %v2464 = vadd.f32 %v2282, 1.0
        %v2465 = vadd.f32 %v2284, 1.0
        %v2466 = vadd.f32 %v2286, 1.0
        %v2467 = vadd.f32 %v2288, 1.0
        %v2468 = vadd.f32 %v2290, 1.0
        %v2469 = vadd.f32 %v2292, 1.0
        %v2470 = vadd.f32 %v2294, 1.0
        %v2471 = vadd.f32 %v2296, 1.0
        %v2472 = vadd.f32 %v2298, 1.0
        %v2473 = vadd.f32 %v2300, 1.0
        %v2474 = vadd.f32 %v2302, 1.0
        %v2475 = vadd.f32 %v2304, 1.0
        %v2476 = vadd.f32 %v2306, 1.0
        %v2477 = vadd.f32 %v2308, 1.0
        %v2478 = vadd.f32 %v2310, 1.0
        %v2479 = vadd.f32 %v2312, 1.0
        %v2480 = vadd.f32 %v2314, 1.0
        %v2481 = vadd.f32 %v2316, 1.0
        %v2482 = vadd.f32 %v2318, 1.0
        %v2483 = vadd.f32 %v2320, 1.0
        %v2484 = vadd.f32 %v2322, 1.0
        %v2485 = vadd.f32 %v2324, 1.0
        %v2486 = vadd.f32 %v2326, 1.0
        %v2487 = vadd.f32 %v2328, 1.0
        %v2488 = vadd.f32 %v2330, 1.0
        %v2489 = vadd.f32 %v2332, 1.0
        %v2490 = vadd.f32 %v2334, 1.0
        %v2491 = vadd.f32 %v2336, 1.0
        %v2492 = vadd.f32 %v2338, 1.0
        %v2493 = vadd.f32 %v2340, 1.0
        %v2494 = vadd.f32 %v2342, 1.0
        %v2495 = vadd.f32 %v2344, 1.0
        %v2496 = vadd.f32 %v2346, 1.0
        %v2497 = vadd.f32 %v2348, 1.0
        %v2498 = vadd.f32 %v2350, 1.0
        %v2499 = vadd.f32 %v2352, 1.0
        %v2500 = vadd.f32 %v2354, 1.0
        %v2501 = vadd.f32 %v2356, 1.0
        %v2502 = vadd.f32 %v2358, 1.0
        %v2503 = vadd.f32 %v2360, 1.0
        %v2504 = vadd.f32 %v2362, 1.0
        %v2505 = vadd.f32 %v2364, 1.0
        %v2506 = vadd.f32 %v2366, 1.0
        %v2507 = vadd.f32 %v2368, 1.0
        %v2508 = vadd.f32 %v2370, 1.0
        %v2509 = vadd.f32 %v2372, 1.0
        %v2510 = vadd.f32 %v2374, 1.0
        %v2511 = vadd.f32 %v2376, 1.0
        %v2512 = vadd.f32 %v2378, 1.0
        %v2513 = vadd.f32 %v2380, 1.0
        %v2514 = vadd.f32 %v2382, 1.0
        %v2515 = vadd.f32 %v2384, 1.0
        %v2516 = vadd.f32 %v2386, 1.0
        %v2517 = vadd.f32 %v2388, 1.0
        %v2518 = vadd.f32 %v2390, 1.0
        %v2519 = vrcp.pop %v2391
        %v2520 = vrcp.pop %v2392
        %v2521 = vrcp.pop %v2393
        %v2522 = vrcp.pop %v2394
        %v2523 = vrcp.pop %v2395
        %v2524 = vrcp.pop %v2396
        %v2525 = vrcp.pop %v2397
        %v2526 = vrcp.pop %v2398
        %v2527 = vrcp.pop %v2399
        %v2528 = vrcp.pop %v2400
        %v2529 = vrcp.pop %v2401
        %v2530 = vrcp.pop %v2402
        %v2531 = vrcp.pop %v2403
        %v2532 = vrcp.pop %v2404
        %v2533 = vrcp.pop %v2405
        %v2534 = vrcp.pop %v2406
        %v2535 = vrcp.pop %v2407
        %v2536 = vrcp.pop %v2408
        %v2537 = vrcp.pop %v2409
        %v2538 = vrcp.pop %v2410
        %v2539 = vrcp.pop %v2411
        %v2540 = vrcp.pop %v2412
        %v2541 = vrcp.pop %v2413
        %v2542 = vrcp.pop %v2414
        %v2543 = vrcp.pop %v2415
        %v2544 = vrcp.pop %v2416
        %v2545 = vrcp.pop %v2417
        %v2546 = vrcp.pop %v2418
        %v2547 = vrcp.pop %v2419
        %v2548 = vrcp.pop %v2420
        %v2549 = vrcp.pop %v2421
        %v2550 = vrcp.pop %v2422
        %v2551 = vrcp.pop %v2423
        %v2552 = vrcp.pop %v2424
        %v2553 = vrcp.pop %v2425
        %v2554 = vrcp.pop %v2426
        %v2555 = vrcp.pop %v2427
        %v2556 = vrcp.pop %v2428
        %v2557 = vrcp.pop %v2429
        %v2558 = vrcp.pop %v2430
        %v2559 = vrcp.pop %v2431
        %v2560 = vrcp.pop %v2432
        %v2561 = vrcp.pop %v2433
        %v2562 = vrcp.pop %v2434
        %v2563 = vrcp.pop %v2435
        %v2564 = vrcp.pop %v2436
        %v2565 = vrcp.pop %v2437
        %v2566 = vrcp.pop %v2438
        %v2567 = vrcp.pop %v2439
        %v2568 = vrcp.pop %v2440
        %v2569 = vrcp.pop %v2441
        %v2570 = vrcp.pop %v2442
        %v2571 = vrcp.pop %v2443
        %v2572 = vrcp.pop %v2444
        %v2573 = vrcp.pop %v2445
        %v2574 = vrcp.pop %v2446
        %v2575 = vrcp.pop %v2447
        %v2576 = vrcp.pop %v2448
        %v2577 = vrcp.pop %v2449
        %v2578 = vrcp.pop %v2450
        %v2579 = vrcp.pop %v2451
        %v2580 = vrcp.pop %v2452
        %v2581 = vrcp.pop %v2453
        %v2582 = vrcp.pop %v2454
        %v2583 = vrcp.pop %v2455
        %v2584 = vrcp.pop %v2456
        %v2585 = vrcp.pop %v2457
        %v2586 = vrcp.pop %v2458
        %v2587 = vrcp.pop %v2459
        %v2588 = vrcp.pop %v2460
        %v2589 = vrcp.pop %v2461
        %v2590 = vrcp.pop %v2462
        %v2591 = vrcp.pop %v2463
        %v2592 = vrcp.pop %v2464
        %v2593 = vrcp.pop %v2465
        %v2594 = vrcp.pop %v2466
        %v2595 = vrcp.pop %v2467
        %v2596 = vrcp.pop %v2468
        %v2597 = vrcp.pop %v2469
        %v2598 = vrcp.pop %v2470
        %v2599 = vrcp.pop %v2471
        %v2600 = vrcp.pop %v2472
        %v2601 = vrcp.pop %v2473
        %v2602 = vrcp.pop %v2474
        %v2603 = vrcp.pop %v2475
        %v2604 = vrcp.pop %v2476
        %v2605 = vrcp.pop %v2477
        %v2606 = vrcp.pop %v2478
        %v2607 = vrcp.pop %v2479
        %v2608 = vrcp.pop %v2480
        %v2609 = vrcp.pop %v2481
        %v2610 = vrcp.pop %v2482
        %v2611 = vrcp.pop %v2483
        %v2612 = vrcp.pop %v2484
        %v2613 = vrcp.pop %v2485
        %v2614 = vrcp.pop %v2486
        %v2615 = vrcp.pop %v2487
        %v2616 = vrcp.pop %v2488
        %v2617 = vrcp.pop %v2489
        %v2618 = vrcp.pop %v2490
        %v2619 = vrcp.pop %v2491
        %v2620 = vrcp.pop %v2492
        %v2621 = vrcp.pop %v2493
        %v2622 = vrcp.pop %v2494
        %v2623 = vrcp.pop %v2495
        %v2624 = vrcp.pop %v2496
        %v2625 = vrcp.pop %v2497
        %v2626 = vrcp.pop %v2498
        %v2627 = vrcp.pop %v2499
        %v2628 = vrcp.pop %v2500
        %v2629 = vrcp.pop %v2501
        %v2630 = vrcp.pop %v2502
        %v2631 = vrcp.pop %v2503
        %v2632 = vrcp.pop %v2504
        %v2633 = vrcp.pop %v2505
        %v2634 = vrcp.pop %v2506
        %v2635 = vrcp.pop %v2507
        %v2636 = vrcp.pop %v2508
        %v2637 = vrcp.pop %v2509
        %v2638 = vrcp.pop %v2510
        %v2639 = vrcp.pop %v2511
        %v2640 = vrcp.pop %v2512
        %v2641 = vrcp.pop %v2513
        %v2642 = vrcp.pop %v2514
        %v2643 = vrcp.pop %v2515
        %v2644 = vrcp.pop %v2516
        %v2645 = vrcp.pop %v2517
        %v2646 = vrcp.pop %v2518
        %v2647 = vmul.f32 %v1497, %v2519
        %v2648 = vmul.f32 %v1500, %v2520
        %v2649 = vmul.f32 %v1505, %v2521
        %v2650 = vmul.f32 %v1508, %v2522
        %v2651 = vmul.f32 %v1513, %v2523
        %v2652 = vmul.f32 %v1516, %v2524
        %v2653 = vmul.f32 %v1521, %v2525
        %v2654 = vmul.f32 %v1524, %v2526
        %v2655 = vmul.f32 %v1529, %v2527
        %v2656 = vmul.f32 %v1532, %v2528
        %v2657 = vmul.f32 %v1537, %v2529
        %v2658 = vmul.f32 %v1540, %v2530
        %v2659 = vmul.f32 %v1545, %v2531
        %v2660 = vmul.f32 %v1548, %v2532
        %v2661 = vmul.f32 %v1553, %v2533
        %v2662 = vmul.f32 %v1556, %v2534
        %v2663 = vmul.f32 %v1561, %v2535
        %v2664 = vmul.f32 %v1564, %v2536
        %v2665 = vmul.f32 %v1569, %v2537
        %v2666 = vmul.f32 %v1572, %v2538
        %v2667 = vmul.f32 %v1577, %v2539
        %v2668 = vmul.f32 %v1580, %v2540
        %v2669 = vmul.f32 %v1585, %v2541
        %v2670 = vmul.f32 %v1588, %v2542
        %v2671 = vmul.f32 %v1593, %v2543
        %v2672 = vmul.f32 %v1596, %v2544
        %v2673 = vmul.f32 %v1601, %v2545
        %v2674 = vmul.f32 %v1604, %v2546
        %v2675 = vmul.f32 %v1609, %v2547
        %v2676 = vmul.f32 %v1612, %v2548
        %v2677 = vmul.f32 %v1617, %v2549
        %v2678 = vmul.f32 %v1620, %v2550
        %v2679 = vmul.f32 %v1625, %v2551
        %v2680 = vmul.f32 %v1628, %v2552
        %v2681 = vmul.f32 %v1633, %v2553
        %v2682 = vmul.f32 %v1636, %v2554
        %v2683 = vmul.f32 %v1641, %v2555
        %v2684 = vmul.f32 %v1644, %v2556
        %v2685 = vmul.f32 %v1649, %v2557
        %v2686 = vmul.f32 %v1652, %v2558
        %v2687 = vmul.f32 %v1657, %v2559
        %v2688 = vmul.f32 %v1660, %v2560
        %v2689 = vmul.f32 %v1665, %v2561
        %v2690 = vmul.f32 %v1668, %v2562
        %v2691 = vmul.f32 %v1673, %v2563
        %v2692 = vmul.f32 %v1676, %v2564
        %v2693 = vmul.f32 %v1681, %v2565
        %v2694 = vmul.f32 %v1684, %v2566
        %v2695 = vmul.f32 %v1689, %v2567
        %v2696 = vmul.f32 %v1692, %v2568
        %v2697 = vmul.f32 %v1697, %v2569
        %v2698 = vmul.f32 %v1700, %v2570
        %v2699 = vmul.f32 %v1705, %v2571
        %v2700 = vmul.f32 %v1708, %v2572
        %v2701 = vmul.f32 %v1713, %v2573
        %v2702 = vmul.f32 %v1716, %v2574
        %v2703 = vmul.f32 %v1721, %v2575
        %v2704 = vmul.f32 %v1724, %v2576
        %v2705 = vmul.f32 %v1729, %v2577
        %v2706 = vmul.f32 %v1732, %v2578
        %v2707 = vmul.f32 %v1737, %v2579
        %v2708 = vmul.f32 %v1740, %v2580
        %v2709 = vmul.f32 %v1745, %v2581
        %v2710 = vmul.f32 %v1748, %v2582
        %v2711 = vmul.f32 %v1753, %v2583
        %v2712 = vmul.f32 %v1756, %v2584
        %v2713 = vmul.f32 %v1761, %v2585
        %v2714 = vmul.f32 %v1764, %v2586
        %v2715 = vmul.f32 %v1769, %v2587
        %v2716 = vmul.f32 %v1772, %v2588
        %v2717 = vmul.f32 %v1777, %v2589
        %v2718 = vmul.f32 %v1780, %v2590
        %v2719 = vmul.f32 %v1785, %v2591
        %v2720 = vmul.f32 %v1788, %v2592
        %v2721 = vmul.f32 %v1793, %v2593
        %v2722 = vmul.f32 %v1796, %v2594
        %v2723 = vmul.f32 %v1801, %v2595
        %v2724 = vmul.f32 %v1804, %v2596
        %v2725 = vmul.f32 %v1809, %v2597
        %v2726 = vmul.f32 %v1812, %v2598
        %v2727 = vmul.f32 %v1817, %v2599
        %v2728 = vmul.f32 %v1820, %v2600
        %v2729 = vmul.f32 %v1825, %v2601
        %v2730 = vmul.f32 %v1828, %v2602
        %v2731 = vmul.f32 %v1833, %v2603
        %v2732 = vmul.f32 %v1836, %v2604
        %v2733 = vmul.f32 %v1841, %v2605
        %v2734 = vmul.f32 %v1844, %v2606
        %v2735 = vmul.f32 %v1849, %v2607
        %v2736 = vmul.f32 %v1852, %v2608
        %v2737 = vmul.f32 %v1857, %v2609
        %v2738 = vmul.f32 %v1860, %v2610
        %v2739 = vmul.f32 %v1865, %v2611
        %v2740 = vmul.f32 %v1868, %v2612
        %v2741 = vmul.f32 %v1873, %v2613
        %v2742 = vmul.f32 %v1876, %v2614
        %v2743 = vmul.f32 %v1881, %v2615
        %v2744 = vmul.f32 %v1884, %v2616
        %v2745 = vmul.f32 %v1889, %v2617
        %v2746 = vmul.f32 %v1892, %v2618
        %v2747 = vmul.f32 %v1897, %v2619
        %v2748 = vmul.f32 %v1900, %v2620
        %v2749 = vmul.f32 %v1905, %v2621
        %v2750 = vmul.f32 %v1908, %v2622
        %v2751 = vmul.f32 %v1913, %v2623
        %v2752 = vmul.f32 %v1916, %v2624
        %v2753 = vmul.f32 %v1921, %v2625
        %v2754 = vmul.f32 %v1924, %v2626
        %v2755 = vmul.f32 %v1929, %v2627
        %v2756 = vmul.f32 %v1932, %v2628
        %v2757 = vmul.f32 %v1937, %v2629
        %v2758 = vmul.f32 %v1940, %v2630
        %v2759 = vmul.f32 %v1945, %v2631
        %v2760 = vmul.f32 %v1948, %v2632
        %v2761 = vmul.f32 %v1953, %v2633
        %v2762 = vmul.f32 %v1956, %v2634
        %v2763 = vmul.f32 %v1961, %v2635
        %v2764 = vmul.f32 %v1964, %v2636
        %v2765 = vmul.f32 %v1969, %v2637
        %v2766 = vmul.f32 %v1972, %v2638
        %v2767 = vmul.f32 %v1977, %v2639
        %v2768 = vmul.f32 %v1980, %v2640
        %v2769 = vmul.f32 %v1985, %v2641
        %v2770 = vmul.f32 %v1988, %v2642
        %v2771 = vmul.f32 %v1993, %v2643
        %v2772 = vmul.f32 %v1996, %v2644
        %v2773 = vmul.f32 %v2001, %v2645
        %v2774 = vmul.f32 %v2004, %v2646
        %v2775 = vpack.c.bf16 %v2648, %v2647
        %v2776 = vpack.c.bf16 %v2650, %v2649
        %v2777 = vpack.c.bf16 %v2652, %v2651
        %v2778 = vpack.c.bf16 %v2654, %v2653
        %v2779 = vpack.c.bf16 %v2656, %v2655
        %v2780 = vpack.c.bf16 %v2658, %v2657
        %v2781 = vpack.c.bf16 %v2660, %v2659
        %v2782 = vpack.c.bf16 %v2662, %v2661
        %v2783 = vpack.c.bf16 %v2664, %v2663
        %v2784 = vpack.c.bf16 %v2666, %v2665
        %v2785 = vpack.c.bf16 %v2668, %v2667
        %v2786 = vpack.c.bf16 %v2670, %v2669
        %v2787 = vpack.c.bf16 %v2672, %v2671
        %v2788 = vpack.c.bf16 %v2674, %v2673
        %v2789 = vpack.c.bf16 %v2676, %v2675
        %v2790 = vpack.c.bf16 %v2678, %v2677
        %v2791 = vpack.c.bf16 %v2680, %v2679
        %v2792 = vpack.c.bf16 %v2682, %v2681
        %v2793 = vpack.c.bf16 %v2684, %v2683
        %v2794 = vpack.c.bf16 %v2686, %v2685
        %v2795 = vpack.c.bf16 %v2688, %v2687
        %v2796 = vpack.c.bf16 %v2690, %v2689
        %v2797 = vpack.c.bf16 %v2692, %v2691
        %v2798 = vpack.c.bf16 %v2694, %v2693
        %v2799 = vpack.c.bf16 %v2696, %v2695
        %v2800 = vpack.c.bf16 %v2698, %v2697
        %v2801 = vpack.c.bf16 %v2700, %v2699
        %v2802 = vpack.c.bf16 %v2702, %v2701
        %v2803 = vpack.c.bf16 %v2704, %v2703
        %v2804 = vpack.c.bf16 %v2706, %v2705
        %v2805 = vpack.c.bf16 %v2708, %v2707
        %v2806 = vpack.c.bf16 %v2710, %v2709
        %v2807 = vpack.c.bf16 %v2712, %v2711
        %v2808 = vpack.c.bf16 %v2714, %v2713
        %v2809 = vpack.c.bf16 %v2716, %v2715
        %v2810 = vpack.c.bf16 %v2718, %v2717
        %v2811 = vpack.c.bf16 %v2720, %v2719
        %v2812 = vpack.c.bf16 %v2722, %v2721
        %v2813 = vpack.c.bf16 %v2724, %v2723
        %v2814 = vpack.c.bf16 %v2726, %v2725
        %v2815 = vpack.c.bf16 %v2728, %v2727
        %v2816 = vpack.c.bf16 %v2730, %v2729
        %v2817 = vpack.c.bf16 %v2732, %v2731
        %v2818 = vpack.c.bf16 %v2734, %v2733
        %v2819 = vpack.c.bf16 %v2736, %v2735
        %v2820 = vpack.c.bf16 %v2738, %v2737
        %v2821 = vpack.c.bf16 %v2740, %v2739
        %v2822 = vpack.c.bf16 %v2742, %v2741
        %v2823 = vpack.c.bf16 %v2744, %v2743
        %v2824 = vpack.c.bf16 %v2746, %v2745
        %v2825 = vpack.c.bf16 %v2748, %v2747
        %v2826 = vpack.c.bf16 %v2750, %v2749
        %v2827 = vpack.c.bf16 %v2752, %v2751
        %v2828 = vpack.c.bf16 %v2754, %v2753
        %v2829 = vpack.c.bf16 %v2756, %v2755
        %v2830 = vpack.c.bf16 %v2758, %v2757
        %v2831 = vpack.c.bf16 %v2760, %v2759
        %v2832 = vpack.c.bf16 %v2762, %v2761
        %v2833 = vpack.c.bf16 %v2764, %v2763
        %v2834 = vpack.c.bf16 %v2766, %v2765
        %v2835 = vpack.c.bf16 %v2768, %v2767
        %v2836 = vpack.c.bf16 %v2770, %v2769
        %v2837 = vpack.c.bf16 %v2772, %v2771
        %v2838 = vpack.c.bf16 %v2774, %v2773
        %v2839 = vld [vmem:[%s3] sm:$0xf]
        %v2840 = vld [vmem:[%s3 + $0x4] sm:$0xf]
        %v2841 = vld [vmem:[%s3 + $0x8] sm:$0xf]
        %v2842 = vld [vmem:[%s3 + $0xc] sm:$0xf]
        %v2843 = vld [vmem:[%s3 + $0x10] sm:$0xf]
        %v2844 = vld [vmem:[%s3 + $0x14] sm:$0xf]
        %v2845 = vld [vmem:[%s3 + $0x18] sm:$0xf]
        %v2846 = vld [vmem:[%s3 + $0x1c] sm:$0xf]
        %v2847 = vld [vmem:[%s3 + $0x20] sm:$0xf]
        %v2848 = vld [vmem:[%s3 + $0x24] sm:$0xf]
        %v2849 = vld [vmem:[%s3 + $0x28] sm:$0xf]
        %v2850 = vld [vmem:[%s3 + $0x2c] sm:$0xf]
        %v2851 = vld [vmem:[%s3 + $0x30] sm:$0xf]
        %v2852 = vld [vmem:[%s3 + $0x34] sm:$0xf]
        %v2853 = vld [vmem:[%s3 + $0x38] sm:$0xf]
        %v2854 = vld [vmem:[%s3 + $0x3c] sm:$0xf]
        %v2855 = vld [vmem:[%s4] sm:$0x1]
        %v2857 = vlaneseq
        %v2858 = vshrl.u32 %v2857, 7
        %v2859 = vsub.s32 0, %v2858
        %v2860 = vrot.slane %v2855, %v2859
        %v2878 = vunpack.c.l.b16 %v2839
        %v2879 = vunpack.c.l.b16 %v2840
        %v2880 = vunpack.c.l.b16 %v2841
        %v2881 = vunpack.c.l.b16 %v2842
        %v2882 = vunpack.c.l.b16 %v2843
        %v2883 = vunpack.c.l.b16 %v2844
        %v2884 = vunpack.c.l.b16 %v2845
        %v2885 = vunpack.c.l.b16 %v2846
        %v2886 = vunpack.c.l.b16 %v2847
        %v2887 = vunpack.c.l.b16 %v2848
        %v2888 = vunpack.c.l.b16 %v2849
        %v2889 = vunpack.c.l.b16 %v2850
        %v2890 = vunpack.c.l.b16 %v2851
        %v2891 = vunpack.c.l.b16 %v2852
        %v2892 = vunpack.c.l.b16 %v2853
        %v2893 = vunpack.c.l.b16 %v2854
        %v2894 = vpack.c.b16 %v2879, %v2878
        %v2895 = vpack.c.b16 %v2881, %v2880
        %v2896 = vpack.c.b16 %v2883, %v2882
        %v2897 = vpack.c.b16 %v2885, %v2884
        %v2898 = vpack.c.b16 %v2887, %v2886
        %v2899 = vpack.c.b16 %v2889, %v2888
        %v2900 = vpack.c.b16 %v2891, %v2890
        %v2901 = vpack.c.b16 %v2893, %v2892
        %2910 = vmatprep.subr.bf16.mxu0 0
        %2911 = vmatpush1.bf16.msra.mxu0 %v2901
        %2912 = vmatprep.subr.bf16.mxu0 0
        %2913 = vmatpush1.bf16.msra.mxu0 %v2900
        %2914 = vmatprep.subr.bf16.mxu0 0
        %2915 = vmatpush1.bf16.msra.mxu0 %v2899
        %2916 = vmatprep.subr.bf16.mxu0 0
        %2917 = vmatpush1.bf16.msra.mxu0 %v2898
        %2918 = vmatprep.subr.bf16.mxu0 0
        %2919 = vmatpush1.bf16.msra.mxu0 %v2897
        %2920 = vmatprep.subr.bf16.mxu0 0
        %2921 = vmatpush1.bf16.msra.mxu0 %v2896
        %2922 = vmatprep.subr.bf16.mxu0 0
        %2923 = vmatpush1.bf16.msra.mxu0 %v2895
        %2924 = vmatprep.subr.bf16.mxu0 0
        %2925 = vmatpush1.bf16.msra.mxu0 %v2894
        %2926 = vmatprep.subr.bf16.mxu0 0
        %2927 = vmatpush2.bf16.msra.mxu0 0
        %2928 = vmatprep.subr.bf16.mxu0 0
        %2929 = vmatpush2.bf16.msra.mxu0 0
        %2930 = vmatprep.subr.bf16.mxu0 0
        %2931 = vmatpush2.bf16.msra.mxu0 0
        %2932 = vmatprep.subr.bf16.mxu0 0
        %2933 = vmatpush2.bf16.msra.mxu0 0
        %2934 = vmatprep.subr.bf16.mxu0 0
        %2935 = vmatpush2.bf16.msra.mxu0 0
        %2936 = vmatprep.subr.bf16.mxu0 0
        %2937 = vmatpush2.bf16.msra.mxu0 0
        %2938 = vmatprep.subr.bf16.mxu0 0
        %2939 = vmatpush2.bf16.msra.mxu0 0
        %2940 = vmatprep.subr.bf16.mxu0 0
        %2941 = vmatpush2.bf16.msra.mxu0 0
        %2942 = vmatprep.mubr.bf16.mxu0 0
        %2943 = vmatmul.mubr.bf16.gmra.mxu0 %v2775
        %v2944 = vpop.f32.mrf.mxu0
        %v2945 = vadd.f32 %v2860, %v2944
        %v2946 = vpop.f32.mrf.mxu0
        %v2947 = vpop.f32.mrf.mxu0
        %v2948 = vadd.f32 %v2860, %v2947
        %v2949 = vpop.f32.mrf.mxu0
        %2950 = vmatprep.mubr.bf16.mxu0 0
        %2951 = vmatmul.mubr.bf16.gmra.mxu0 %v2776
        %v2952 = vpop.f32.mrf.mxu0
        %v2953 = vadd.f32 %v2860, %v2952
        %v2954 = vpop.f32.mrf.mxu0
        %v2955 = vpop.f32.mrf.mxu0
        %v2956 = vadd.f32 %v2860, %v2955
        %v2957 = vpop.f32.mrf.mxu0
        %2958 = vmatprep.mubr.bf16.mxu0 0
        %2959 = vmatmul.mubr.bf16.gmra.mxu0 %v2777
        %v2960 = vpop.f32.mrf.mxu0
        %v2961 = vadd.f32 %v2860, %v2960
        %v2962 = vpop.f32.mrf.mxu0
        %v2963 = vpop.f32.mrf.mxu0
        %v2964 = vadd.f32 %v2860, %v2963
        %v2965 = vpop.f32.mrf.mxu0
        %2966 = vmatprep.mubr.bf16.mxu0 0
        %2967 = vmatmul.mubr.bf16.gmra.mxu0 %v2778
        %v2968 = vpop.f32.mrf.mxu0
        %v2969 = vadd.f32 %v2860, %v2968
        %v2970 = vpop.f32.mrf.mxu0
        %v2971 = vpop.f32.mrf.mxu0
        %v2972 = vadd.f32 %v2860, %v2971
        %v2973 = vpop.f32.mrf.mxu0
        %2974 = vmatprep.mubr.bf16.mxu0 0
        %2975 = vmatmul.mubr.bf16.gmra.mxu0 %v2779
        %v2976 = vpop.f32.mrf.mxu0
        %v2977 = vadd.f32 %v2860, %v2976
        %v2978 = vpop.f32.mrf.mxu0
        %v2979 = vpop.f32.mrf.mxu0
        %v2980 = vadd.f32 %v2860, %v2979
        %v2981 = vpop.f32.mrf.mxu0
        %2982 = vmatprep.mubr.bf16.mxu0 0
        %2983 = vmatmul.mubr.bf16.gmra.mxu0 %v2780
        %v2984 = vpop.f32.mrf.mxu0
        %v2985 = vadd.f32 %v2860, %v2984
        %v2986 = vpop.f32.mrf.mxu0
        %v2987 = vpop.f32.mrf.mxu0
        %v2988 = vadd.f32 %v2860, %v2987
        %v2989 = vpop.f32.mrf.mxu0
        %2990 = vmatprep.mubr.bf16.mxu0 0
        %2991 = vmatmul.mubr.bf16.gmra.mxu0 %v2781
        %v2992 = vpop.f32.mrf.mxu0
        %v2993 = vadd.f32 %v2860, %v2992
        %v2994 = vpop.f32.mrf.mxu0
        %v2995 = vpop.f32.mrf.mxu0
        %v2996 = vadd.f32 %v2860, %v2995
        %v2997 = vpop.f32.mrf.mxu0
        %2998 = vmatprep.mubr.bf16.mxu0 0
        %2999 = vmatmul.mubr.bf16.gmra.mxu0 %v2782
        %v3000 = vpop.f32.mrf.mxu0
        %v3001 = vadd.f32 %v2860, %v3000
        %v3002 = vpop.f32.mrf.mxu0
        %v3003 = vpop.f32.mrf.mxu0
        %v3004 = vadd.f32 %v2860, %v3003
        %v3005 = vpop.f32.mrf.mxu0
        %3006 = vmatprep.mubr.bf16.mxu0 0
        %3007 = vmatmul.mubr.bf16.gmra.mxu0 %v2783
        %v3008 = vpop.f32.mrf.mxu0
        %v3009 = vadd.f32 %v2860, %v3008
        %v3010 = vpop.f32.mrf.mxu0
        %v3011 = vpop.f32.mrf.mxu0
        %v3012 = vadd.f32 %v2860, %v3011
        %v3013 = vpop.f32.mrf.mxu0
        %3014 = vmatprep.mubr.bf16.mxu0 0
        %3015 = vmatmul.mubr.bf16.gmra.mxu0 %v2784
        %v3016 = vpop.f32.mrf.mxu0
        %v3017 = vadd.f32 %v2860, %v3016
        %v3018 = vpop.f32.mrf.mxu0
        %v3019 = vpop.f32.mrf.mxu0
        %v3020 = vadd.f32 %v2860, %v3019
        %v3021 = vpop.f32.mrf.mxu0
        %3022 = vmatprep.mubr.bf16.mxu0 0
        %3023 = vmatmul.mubr.bf16.gmra.mxu0 %v2785
        %v3024 = vpop.f32.mrf.mxu0
        %v3025 = vadd.f32 %v2860, %v3024
        %v3026 = vpop.f32.mrf.mxu0
        %v3027 = vpop.f32.mrf.mxu0
        %v3028 = vadd.f32 %v2860, %v3027
        %v3029 = vpop.f32.mrf.mxu0
        %3030 = vmatprep.mubr.bf16.mxu0 0
        %3031 = vmatmul.mubr.bf16.gmra.mxu0 %v2786
        %v3032 = vpop.f32.mrf.mxu0
        %v3033 = vadd.f32 %v2860, %v3032
        %v3034 = vpop.f32.mrf.mxu0
        %v3035 = vpop.f32.mrf.mxu0
        %v3036 = vadd.f32 %v2860, %v3035
        %v3037 = vpop.f32.mrf.mxu0
        %3038 = vmatprep.mubr.bf16.mxu0 0
        %3039 = vmatmul.mubr.bf16.gmra.mxu0 %v2787
        %v3040 = vpop.f32.mrf.mxu0
        %v3041 = vadd.f32 %v2860, %v3040
        %v3042 = vpop.f32.mrf.mxu0
        %v3043 = vpop.f32.mrf.mxu0
        %v3044 = vadd.f32 %v2860, %v3043
        %v3045 = vpop.f32.mrf.mxu0
        %3046 = vmatprep.mubr.bf16.mxu0 0
        %3047 = vmatmul.mubr.bf16.gmra.mxu0 %v2788
        %v3048 = vpop.f32.mrf.mxu0
        %v3049 = vadd.f32 %v2860, %v3048
        %v3050 = vpop.f32.mrf.mxu0
        %v3051 = vpop.f32.mrf.mxu0
        %v3052 = vadd.f32 %v2860, %v3051
        %v3053 = vpop.f32.mrf.mxu0
        %3054 = vmatprep.mubr.bf16.mxu0 0
        %3055 = vmatmul.mubr.bf16.gmra.mxu0 %v2789
        %v3056 = vpop.f32.mrf.mxu0
        %v3057 = vadd.f32 %v2860, %v3056
        %v3058 = vpop.f32.mrf.mxu0
        %v3059 = vpop.f32.mrf.mxu0
        %v3060 = vadd.f32 %v2860, %v3059
        %v3061 = vpop.f32.mrf.mxu0
        %3062 = vmatprep.mubr.bf16.mxu0 0
        %3063 = vmatmul.mubr.bf16.gmra.mxu0 %v2790
        %v3064 = vpop.f32.mrf.mxu0
        %v3065 = vadd.f32 %v2860, %v3064
        %v3066 = vpop.f32.mrf.mxu0
        %v3067 = vpop.f32.mrf.mxu0
        %v3068 = vadd.f32 %v2860, %v3067
        %v3069 = vpop.f32.mrf.mxu0
        %3070 = vmatprep.mubr.bf16.mxu0 0
        %3071 = vmatmul.mubr.bf16.gmra.mxu0 %v2791
        %v3072 = vpop.f32.mrf.mxu0
        %v3073 = vadd.f32 %v2860, %v3072
        %v3074 = vpop.f32.mrf.mxu0
        %v3075 = vpop.f32.mrf.mxu0
        %v3076 = vadd.f32 %v2860, %v3075
        %v3077 = vpop.f32.mrf.mxu0
        %3078 = vmatprep.mubr.bf16.mxu0 0
        %3079 = vmatmul.mubr.bf16.gmra.mxu0 %v2792
        %v3080 = vpop.f32.mrf.mxu0
        %v3081 = vadd.f32 %v2860, %v3080
        %v3082 = vpop.f32.mrf.mxu0
        %v3083 = vpop.f32.mrf.mxu0
        %v3084 = vadd.f32 %v2860, %v3083
        %v3085 = vpop.f32.mrf.mxu0
        %3086 = vmatprep.mubr.bf16.mxu0 0
        %3087 = vmatmul.mubr.bf16.gmra.mxu0 %v2793
        %v3088 = vpop.f32.mrf.mxu0
        %v3089 = vadd.f32 %v2860, %v3088
        %v3090 = vpop.f32.mrf.mxu0
        %v3091 = vpop.f32.mrf.mxu0
        %v3092 = vadd.f32 %v2860, %v3091
        %v3093 = vpop.f32.mrf.mxu0
        %3094 = vmatprep.mubr.bf16.mxu0 0
        %3095 = vmatmul.mubr.bf16.gmra.mxu0 %v2794
        %v3096 = vpop.f32.mrf.mxu0
        %v3097 = vadd.f32 %v2860, %v3096
        %v3098 = vpop.f32.mrf.mxu0
        %v3099 = vpop.f32.mrf.mxu0
        %v3100 = vadd.f32 %v2860, %v3099
        %v3101 = vpop.f32.mrf.mxu0
        %3102 = vmatprep.mubr.bf16.mxu0 0
        %3103 = vmatmul.mubr.bf16.gmra.mxu0 %v2795
        %v3104 = vpop.f32.mrf.mxu0
        %v3105 = vadd.f32 %v2860, %v3104
        %v3106 = vpop.f32.mrf.mxu0
        %v3107 = vpop.f32.mrf.mxu0
        %v3108 = vadd.f32 %v2860, %v3107
        %v3109 = vpop.f32.mrf.mxu0
        %3110 = vmatprep.mubr.bf16.mxu0 0
        %3111 = vmatmul.mubr.bf16.gmra.mxu0 %v2796
        %v3112 = vpop.f32.mrf.mxu0
        %v3113 = vadd.f32 %v2860, %v3112
        %v3114 = vpop.f32.mrf.mxu0
        %v3115 = vpop.f32.mrf.mxu0
        %v3116 = vadd.f32 %v2860, %v3115
        %v3117 = vpop.f32.mrf.mxu0
        %3118 = vmatprep.mubr.bf16.mxu0 0
        %3119 = vmatmul.mubr.bf16.gmra.mxu0 %v2797
        %v3120 = vpop.f32.mrf.mxu0
        %v3121 = vadd.f32 %v2860, %v3120
        %v3122 = vpop.f32.mrf.mxu0
        %v3123 = vpop.f32.mrf.mxu0
        %v3124 = vadd.f32 %v2860, %v3123
        %v3125 = vpop.f32.mrf.mxu0
        %3126 = vmatprep.mubr.bf16.mxu0 0
        %3127 = vmatmul.mubr.bf16.gmra.mxu0 %v2798
        %v3128 = vpop.f32.mrf.mxu0
        %v3129 = vadd.f32 %v2860, %v3128
        %v3130 = vpop.f32.mrf.mxu0
        %v3131 = vpop.f32.mrf.mxu0
        %v3132 = vadd.f32 %v2860, %v3131
        %v3133 = vpop.f32.mrf.mxu0
        %3134 = vmatprep.mubr.bf16.mxu0 0
        %3135 = vmatmul.mubr.bf16.gmra.mxu0 %v2799
        %v3136 = vpop.f32.mrf.mxu0
        %v3137 = vadd.f32 %v2860, %v3136
        %v3138 = vpop.f32.mrf.mxu0
        %v3139 = vpop.f32.mrf.mxu0
        %v3140 = vadd.f32 %v2860, %v3139
        %v3141 = vpop.f32.mrf.mxu0
        %3142 = vmatprep.mubr.bf16.mxu0 0
        %3143 = vmatmul.mubr.bf16.gmra.mxu0 %v2800
        %v3144 = vpop.f32.mrf.mxu0
        %v3145 = vadd.f32 %v2860, %v3144
        %v3146 = vpop.f32.mrf.mxu0
        %v3147 = vpop.f32.mrf.mxu0
        %v3148 = vadd.f32 %v2860, %v3147
        %v3149 = vpop.f32.mrf.mxu0
        %3150 = vmatprep.mubr.bf16.mxu0 0
        %3151 = vmatmul.mubr.bf16.gmra.mxu0 %v2801
        %v3152 = vpop.f32.mrf.mxu0
        %v3153 = vadd.f32 %v2860, %v3152
        %v3154 = vpop.f32.mrf.mxu0
        %v3155 = vpop.f32.mrf.mxu0
        %v3156 = vadd.f32 %v2860, %v3155
        %v3157 = vpop.f32.mrf.mxu0
        %3158 = vmatprep.mubr.bf16.mxu0 0
        %3159 = vmatmul.mubr.bf16.gmra.mxu0 %v2802
        %v3160 = vpop.f32.mrf.mxu0
        %v3161 = vadd.f32 %v2860, %v3160
        %v3162 = vpop.f32.mrf.mxu0
        %v3163 = vpop.f32.mrf.mxu0
        %v3164 = vadd.f32 %v2860, %v3163
        %v3165 = vpop.f32.mrf.mxu0
        %3166 = vmatprep.mubr.bf16.mxu0 0
        %3167 = vmatmul.mubr.bf16.gmra.mxu0 %v2803
        %v3168 = vpop.f32.mrf.mxu0
        %v3169 = vadd.f32 %v2860, %v3168
        %v3170 = vpop.f32.mrf.mxu0
        %v3171 = vpop.f32.mrf.mxu0
        %v3172 = vadd.f32 %v2860, %v3171
        %v3173 = vpop.f32.mrf.mxu0
        %3174 = vmatprep.mubr.bf16.mxu0 0
        %3175 = vmatmul.mubr.bf16.gmra.mxu0 %v2804
        %v3176 = vpop.f32.mrf.mxu0
        %v3177 = vadd.f32 %v2860, %v3176
        %v3178 = vpop.f32.mrf.mxu0
        %v3179 = vpop.f32.mrf.mxu0
        %v3180 = vadd.f32 %v2860, %v3179
        %v3181 = vpop.f32.mrf.mxu0
        %3182 = vmatprep.mubr.bf16.mxu0 0
        %3183 = vmatmul.mubr.bf16.gmra.mxu0 %v2805
        %v3184 = vpop.f32.mrf.mxu0
        %v3185 = vadd.f32 %v2860, %v3184
        %v3186 = vpop.f32.mrf.mxu0
        %v3187 = vpop.f32.mrf.mxu0
        %v3188 = vadd.f32 %v2860, %v3187
        %v3189 = vpop.f32.mrf.mxu0
        %3190 = vmatprep.mubr.bf16.mxu0 0
        %3191 = vmatmul.mubr.bf16.gmra.mxu0 %v2806
        %v3192 = vpop.f32.mrf.mxu0
        %v3193 = vadd.f32 %v2860, %v3192
        %v3194 = vpop.f32.mrf.mxu0
        %v3195 = vpop.f32.mrf.mxu0
        %v3196 = vadd.f32 %v2860, %v3195
        %v3197 = vpop.f32.mrf.mxu0
        %3198 = vmatprep.mubr.bf16.mxu0 0
        %3199 = vmatmul.mubr.bf16.gmra.mxu0 %v2807
        %v3200 = vpop.f32.mrf.mxu0
        %v3201 = vadd.f32 %v2860, %v3200
        %v3202 = vpop.f32.mrf.mxu0
        %v3203 = vpop.f32.mrf.mxu0
        %v3204 = vadd.f32 %v2860, %v3203
        %v3205 = vpop.f32.mrf.mxu0
        %3206 = vmatprep.mubr.bf16.mxu0 0
        %3207 = vmatmul.mubr.bf16.gmra.mxu0 %v2808
        %v3208 = vpop.f32.mrf.mxu0
        %v3209 = vadd.f32 %v2860, %v3208
        %v3210 = vpop.f32.mrf.mxu0
        %v3211 = vpop.f32.mrf.mxu0
        %v3212 = vadd.f32 %v2860, %v3211
        %v3213 = vpop.f32.mrf.mxu0
        %3214 = vmatprep.mubr.bf16.mxu0 0
        %3215 = vmatmul.mubr.bf16.gmra.mxu0 %v2809
        %v3216 = vpop.f32.mrf.mxu0
        %v3217 = vadd.f32 %v2860, %v3216
        %v3218 = vpop.f32.mrf.mxu0
        %v3219 = vpop.f32.mrf.mxu0
        %v3220 = vadd.f32 %v2860, %v3219
        %v3221 = vpop.f32.mrf.mxu0
        %3222 = vmatprep.mubr.bf16.mxu0 0
        %3223 = vmatmul.mubr.bf16.gmra.mxu0 %v2810
        %v3224 = vpop.f32.mrf.mxu0
        %v3225 = vadd.f32 %v2860, %v3224
        %v3226 = vpop.f32.mrf.mxu0
        %v3227 = vpop.f32.mrf.mxu0
        %v3228 = vadd.f32 %v2860, %v3227
        %v3229 = vpop.f32.mrf.mxu0
        %3230 = vmatprep.mubr.bf16.mxu0 0
        %3231 = vmatmul.mubr.bf16.gmra.mxu0 %v2811
        %v3232 = vpop.f32.mrf.mxu0
        %v3233 = vadd.f32 %v2860, %v3232
        %v3234 = vpop.f32.mrf.mxu0
        %v3235 = vpop.f32.mrf.mxu0
        %v3236 = vadd.f32 %v2860, %v3235
        %v3237 = vpop.f32.mrf.mxu0
        %3238 = vmatprep.mubr.bf16.mxu0 0
        %3239 = vmatmul.mubr.bf16.gmra.mxu0 %v2812
        %v3240 = vpop.f32.mrf.mxu0
        %v3241 = vadd.f32 %v2860, %v3240
        %v3242 = vpop.f32.mrf.mxu0
        %v3243 = vpop.f32.mrf.mxu0
        %v3244 = vadd.f32 %v2860, %v3243
        %v3245 = vpop.f32.mrf.mxu0
        %3246 = vmatprep.mubr.bf16.mxu0 0
        %3247 = vmatmul.mubr.bf16.gmra.mxu0 %v2813
        %v3248 = vpop.f32.mrf.mxu0
        %v3249 = vadd.f32 %v2860, %v3248
        %v3250 = vpop.f32.mrf.mxu0
        %v3251 = vpop.f32.mrf.mxu0
        %v3252 = vadd.f32 %v2860, %v3251
        %v3253 = vpop.f32.mrf.mxu0
        %3254 = vmatprep.mubr.bf16.mxu0 0
        %3255 = vmatmul.mubr.bf16.gmra.mxu0 %v2814
        %v3256 = vpop.f32.mrf.mxu0
        %v3257 = vadd.f32 %v2860, %v3256
        %v3258 = vpop.f32.mrf.mxu0
        %v3259 = vpop.f32.mrf.mxu0
        %v3260 = vadd.f32 %v2860, %v3259
        %v3261 = vpop.f32.mrf.mxu0
        %3262 = vmatprep.mubr.bf16.mxu0 0
        %3263 = vmatmul.mubr.bf16.gmra.mxu0 %v2815
        %v3264 = vpop.f32.mrf.mxu0
        %v3265 = vadd.f32 %v2860, %v3264
        %v3266 = vpop.f32.mrf.mxu0
        %v3267 = vpop.f32.mrf.mxu0
        %v3268 = vadd.f32 %v2860, %v3267
        %v3269 = vpop.f32.mrf.mxu0
        %3270 = vmatprep.mubr.bf16.mxu0 0
        %3271 = vmatmul.mubr.bf16.gmra.mxu0 %v2816
        %v3272 = vpop.f32.mrf.mxu0
        %v3273 = vadd.f32 %v2860, %v3272
        %v3274 = vpop.f32.mrf.mxu0
        %v3275 = vpop.f32.mrf.mxu0
        %v3276 = vadd.f32 %v2860, %v3275
        %v3277 = vpop.f32.mrf.mxu0
        %3278 = vmatprep.mubr.bf16.mxu0 0
        %3279 = vmatmul.mubr.bf16.gmra.mxu0 %v2817
        %v3280 = vpop.f32.mrf.mxu0
        %v3281 = vadd.f32 %v2860, %v3280
        %v3282 = vpop.f32.mrf.mxu0
        %v3283 = vpop.f32.mrf.mxu0
        %v3284 = vadd.f32 %v2860, %v3283
        %v3285 = vpop.f32.mrf.mxu0
        %3286 = vmatprep.mubr.bf16.mxu0 0
        %3287 = vmatmul.mubr.bf16.gmra.mxu0 %v2818
        %v3288 = vpop.f32.mrf.mxu0
        %v3289 = vadd.f32 %v2860, %v3288
        %v3290 = vpop.f32.mrf.mxu0
        %v3291 = vpop.f32.mrf.mxu0
        %v3292 = vadd.f32 %v2860, %v3291
        %v3293 = vpop.f32.mrf.mxu0
        %3294 = vmatprep.mubr.bf16.mxu0 0
        %3295 = vmatmul.mubr.bf16.gmra.mxu0 %v2819
        %v3296 = vpop.f32.mrf.mxu0
        %v3297 = vadd.f32 %v2860, %v3296
        %v3298 = vpop.f32.mrf.mxu0
        %v3299 = vpop.f32.mrf.mxu0
        %v3300 = vadd.f32 %v2860, %v3299
        %v3301 = vpop.f32.mrf.mxu0
        %3302 = vmatprep.mubr.bf16.mxu0 0
        %3303 = vmatmul.mubr.bf16.gmra.mxu0 %v2820
        %v3304 = vpop.f32.mrf.mxu0
        %v3305 = vadd.f32 %v2860, %v3304
        %v3306 = vpop.f32.mrf.mxu0
        %v3307 = vpop.f32.mrf.mxu0
        %v3308 = vadd.f32 %v2860, %v3307
        %v3309 = vpop.f32.mrf.mxu0
        %3310 = vmatprep.mubr.bf16.mxu0 0
        %3311 = vmatmul.mubr.bf16.gmra.mxu0 %v2821
        %v3312 = vpop.f32.mrf.mxu0
        %v3313 = vadd.f32 %v2860, %v3312
        %v3314 = vpop.f32.mrf.mxu0
        %v3315 = vpop.f32.mrf.mxu0
        %v3316 = vadd.f32 %v2860, %v3315
        %v3317 = vpop.f32.mrf.mxu0
        %3318 = vmatprep.mubr.bf16.mxu0 0
        %3319 = vmatmul.mubr.bf16.gmra.mxu0 %v2822
        %v3320 = vpop.f32.mrf.mxu0
        %v3321 = vadd.f32 %v2860, %v3320
        %v3322 = vpop.f32.mrf.mxu0
        %v3323 = vpop.f32.mrf.mxu0
        %v3324 = vadd.f32 %v2860, %v3323
        %v3325 = vpop.f32.mrf.mxu0
        %3326 = vmatprep.mubr.bf16.mxu0 0
        %3327 = vmatmul.mubr.bf16.gmra.mxu0 %v2823
        %v3328 = vpop.f32.mrf.mxu0
        %v3329 = vadd.f32 %v2860, %v3328
        %v3330 = vpop.f32.mrf.mxu0
        %v3331 = vpop.f32.mrf.mxu0
        %v3332 = vadd.f32 %v2860, %v3331
        %v3333 = vpop.f32.mrf.mxu0
        %3334 = vmatprep.mubr.bf16.mxu0 0
        %3335 = vmatmul.mubr.bf16.gmra.mxu0 %v2824
        %v3336 = vpop.f32.mrf.mxu0
        %v3337 = vadd.f32 %v2860, %v3336
        %v3338 = vpop.f32.mrf.mxu0
        %v3339 = vpop.f32.mrf.mxu0
        %v3340 = vadd.f32 %v2860, %v3339
        %v3341 = vpop.f32.mrf.mxu0
        %3342 = vmatprep.mubr.bf16.mxu0 0
        %3343 = vmatmul.mubr.bf16.gmra.mxu0 %v2825
        %v3344 = vpop.f32.mrf.mxu0
        %v3345 = vadd.f32 %v2860, %v3344
        %v3346 = vpop.f32.mrf.mxu0
        %v3347 = vpop.f32.mrf.mxu0
        %v3348 = vadd.f32 %v2860, %v3347
        %v3349 = vpop.f32.mrf.mxu0
        %3350 = vmatprep.mubr.bf16.mxu0 0
        %3351 = vmatmul.mubr.bf16.gmra.mxu0 %v2826
        %v3352 = vpop.f32.mrf.mxu0
        %v3353 = vadd.f32 %v2860, %v3352
        %v3354 = vpop.f32.mrf.mxu0
        %v3355 = vpop.f32.mrf.mxu0
        %v3356 = vadd.f32 %v2860, %v3355
        %v3357 = vpop.f32.mrf.mxu0
        %3358 = vmatprep.mubr.bf16.mxu0 0
        %3359 = vmatmul.mubr.bf16.gmra.mxu0 %v2827
        %v3360 = vpop.f32.mrf.mxu0
        %v3361 = vadd.f32 %v2860, %v3360
        %v3362 = vpop.f32.mrf.mxu0
        %v3363 = vpop.f32.mrf.mxu0
        %v3364 = vadd.f32 %v2860, %v3363
        %v3365 = vpop.f32.mrf.mxu0
        %3366 = vmatprep.mubr.bf16.mxu0 0
        %3367 = vmatmul.mubr.bf16.gmra.mxu0 %v2828
        %v3368 = vpop.f32.mrf.mxu0
        %v3369 = vadd.f32 %v2860, %v3368
        %v3370 = vpop.f32.mrf.mxu0
        %v3371 = vpop.f32.mrf.mxu0
        %v3372 = vadd.f32 %v2860, %v3371
        %v3373 = vpop.f32.mrf.mxu0
        %3374 = vmatprep.mubr.bf16.mxu0 0
        %3375 = vmatmul.mubr.bf16.gmra.mxu0 %v2829
        %v3376 = vpop.f32.mrf.mxu0
        %v3377 = vadd.f32 %v2860, %v3376
        %v3378 = vpop.f32.mrf.mxu0
        %v3379 = vpop.f32.mrf.mxu0
        %v3380 = vadd.f32 %v2860, %v3379
        %v3381 = vpop.f32.mrf.mxu0
        %3382 = vmatprep.mubr.bf16.mxu0 0
        %3383 = vmatmul.mubr.bf16.gmra.mxu0 %v2830
        %v3384 = vpop.f32.mrf.mxu0
        %v3385 = vadd.f32 %v2860, %v3384
        %v3386 = vpop.f32.mrf.mxu0
        %v3387 = vpop.f32.mrf.mxu0
        %v3388 = vadd.f32 %v2860, %v3387
        %v3389 = vpop.f32.mrf.mxu0
        %3390 = vmatprep.mubr.bf16.mxu0 0
        %3391 = vmatmul.mubr.bf16.gmra.mxu0 %v2831
        %v3392 = vpop.f32.mrf.mxu0
        %v3393 = vadd.f32 %v2860, %v3392
        %v3394 = vpop.f32.mrf.mxu0
        %v3395 = vpop.f32.mrf.mxu0
        %v3396 = vadd.f32 %v2860, %v3395
        %v3397 = vpop.f32.mrf.mxu0
        %3398 = vmatprep.mubr.bf16.mxu0 0
        %3399 = vmatmul.mubr.bf16.gmra.mxu0 %v2832
        %v3400 = vpop.f32.mrf.mxu0
        %v3401 = vadd.f32 %v2860, %v3400
        %v3402 = vpop.f32.mrf.mxu0
        %v3403 = vpop.f32.mrf.mxu0
        %v3404 = vadd.f32 %v2860, %v3403
        %v3405 = vpop.f32.mrf.mxu0
        %3406 = vmatprep.mubr.bf16.mxu0 0
        %3407 = vmatmul.mubr.bf16.gmra.mxu0 %v2833
        %v3408 = vpop.f32.mrf.mxu0
        %v3409 = vadd.f32 %v2860, %v3408
        %v3410 = vpop.f32.mrf.mxu0
        %v3411 = vpop.f32.mrf.mxu0
        %v3412 = vadd.f32 %v2860, %v3411
        %v3413 = vpop.f32.mrf.mxu0
        %3414 = vmatprep.mubr.bf16.mxu0 0
        %3415 = vmatmul.mubr.bf16.gmra.mxu0 %v2834
        %v3416 = vpop.f32.mrf.mxu0
        %v3417 = vadd.f32 %v2860, %v3416
        %v3418 = vpop.f32.mrf.mxu0
        %v3419 = vpop.f32.mrf.mxu0
        %v3420 = vadd.f32 %v2860, %v3419
        %v3421 = vpop.f32.mrf.mxu0
        %3422 = vmatprep.mubr.bf16.mxu0 0
        %3423 = vmatmul.mubr.bf16.gmra.mxu0 %v2835
        %v3424 = vpop.f32.mrf.mxu0
        %v3425 = vadd.f32 %v2860, %v3424
        %v3426 = vpop.f32.mrf.mxu0
        %v3427 = vpop.f32.mrf.mxu0
        %v3428 = vadd.f32 %v2860, %v3427
        %v3429 = vpop.f32.mrf.mxu0
        %3430 = vmatprep.mubr.bf16.mxu0 0
        %3431 = vmatmul.mubr.bf16.gmra.mxu0 %v2836
        %v3432 = vpop.f32.mrf.mxu0
        %v3433 = vadd.f32 %v2860, %v3432
        %v3434 = vpop.f32.mrf.mxu0
        %v3435 = vpop.f32.mrf.mxu0
        %v3436 = vadd.f32 %v2860, %v3435
        %v3437 = vpop.f32.mrf.mxu0
        %3438 = vmatprep.mubr.bf16.mxu0 0
        %3439 = vmatmul.mubr.bf16.gmra.mxu0 %v2837
        %v3440 = vpop.f32.mrf.mxu0
        %v3441 = vadd.f32 %v2860, %v3440
        %v3442 = vpop.f32.mrf.mxu0
        %v3443 = vpop.f32.mrf.mxu0
        %v3444 = vadd.f32 %v2860, %v3443
        %v3445 = vpop.f32.mrf.mxu0
        %3446 = vmatprep.mubr.bf16.mxu0 0
        %3447 = vmatmul.mubr.bf16.gmra.mxu0 %v2838
        %v3448 = vpop.f32.mrf.mxu0
        %v3449 = vadd.f32 %v2860, %v3448
        %v3450 = vpop.f32.mrf.mxu0
        %v3451 = vpop.f32.mrf.mxu0
        %v3452 = vadd.f32 %v2860, %v3451
        %v3453 = vpop.f32.mrf.mxu0
        %3454 = vdwg.mxu0
        %v3455 = vsub.f32 0.0, %v2945
        %v3456 = vsub.f32 0.0, %v2948
        %v3457 = vsub.f32 0.0, %v2953
        %v3458 = vsub.f32 0.0, %v2956
        %v3459 = vsub.f32 0.0, %v2961
        %v3460 = vsub.f32 0.0, %v2964
        %v3461 = vsub.f32 0.0, %v2969
        %v3462 = vsub.f32 0.0, %v2972
        %v3463 = vsub.f32 0.0, %v2977
        %v3464 = vsub.f32 0.0, %v2980
        %v3465 = vsub.f32 0.0, %v2985
        %v3466 = vsub.f32 0.0, %v2988
        %v3467 = vsub.f32 0.0, %v2993
        %v3468 = vsub.f32 0.0, %v2996
        %v3469 = vsub.f32 0.0, %v3001
        %v3470 = vsub.f32 0.0, %v3004
        %v3471 = vsub.f32 0.0, %v3009
        %v3472 = vsub.f32 0.0, %v3012
        %v3473 = vsub.f32 0.0, %v3017
        %v3474 = vsub.f32 0.0, %v3020
        %v3475 = vsub.f32 0.0, %v3025
        %v3476 = vsub.f32 0.0, %v3028
        %v3477 = vsub.f32 0.0, %v3033
        %v3478 = vsub.f32 0.0, %v3036
        %v3479 = vsub.f32 0.0, %v3041
        %v3480 = vsub.f32 0.0, %v3044
        %v3481 = vsub.f32 0.0, %v3049
        %v3482 = vsub.f32 0.0, %v3052
        %v3483 = vsub.f32 0.0, %v3057
        %v3484 = vsub.f32 0.0, %v3060
        %v3485 = vsub.f32 0.0, %v3065
        %v3486 = vsub.f32 0.0, %v3068
        %v3487 = vsub.f32 0.0, %v3073
        %v3488 = vsub.f32 0.0, %v3076
        %v3489 = vsub.f32 0.0, %v3081
        %v3490 = vsub.f32 0.0, %v3084
        %v3491 = vsub.f32 0.0, %v3089
        %v3492 = vsub.f32 0.0, %v3092
        %v3493 = vsub.f32 0.0, %v3097
        %v3494 = vsub.f32 0.0, %v3100
        %v3495 = vsub.f32 0.0, %v3105
        %v3496 = vsub.f32 0.0, %v3108
        %v3497 = vsub.f32 0.0, %v3113
        %v3498 = vsub.f32 0.0, %v3116
        %v3499 = vsub.f32 0.0, %v3121
        %v3500 = vsub.f32 0.0, %v3124
        %v3501 = vsub.f32 0.0, %v3129
        %v3502 = vsub.f32 0.0, %v3132
        %v3503 = vsub.f32 0.0, %v3137
        %v3504 = vsub.f32 0.0, %v3140
        %v3505 = vsub.f32 0.0, %v3145
        %v3506 = vsub.f32 0.0, %v3148
        %v3507 = vsub.f32 0.0, %v3153
        %v3508 = vsub.f32 0.0, %v3156
        %v3509 = vsub.f32 0.0, %v3161
        %v3510 = vsub.f32 0.0, %v3164
        %v3511 = vsub.f32 0.0, %v3169
        %v3512 = vsub.f32 0.0, %v3172
        %v3513 = vsub.f32 0.0, %v3177
        %v3514 = vsub.f32 0.0, %v3180
        %v3515 = vsub.f32 0.0, %v3185
        %v3516 = vsub.f32 0.0, %v3188
        %v3517 = vsub.f32 0.0, %v3193
        %v3518 = vsub.f32 0.0, %v3196
        %v3519 = vsub.f32 0.0, %v3201
        %v3520 = vsub.f32 0.0, %v3204
        %v3521 = vsub.f32 0.0, %v3209
        %v3522 = vsub.f32 0.0, %v3212
        %v3523 = vsub.f32 0.0, %v3217
        %v3524 = vsub.f32 0.0, %v3220
        %v3525 = vsub.f32 0.0, %v3225
        %v3526 = vsub.f32 0.0, %v3228
        %v3527 = vsub.f32 0.0, %v3233
        %v3528 = vsub.f32 0.0, %v3236
        %v3529 = vsub.f32 0.0, %v3241
        %v3530 = vsub.f32 0.0, %v3244
        %v3531 = vsub.f32 0.0, %v3249
        %v3532 = vsub.f32 0.0, %v3252
        %v3533 = vsub.f32 0.0, %v3257
        %v3534 = vsub.f32 0.0, %v3260
        %v3535 = vsub.f32 0.0, %v3265
        %v3536 = vsub.f32 0.0, %v3268
        %v3537 = vsub.f32 0.0, %v3273
        %v3538 = vsub.f32 0.0, %v3276
        %v3539 = vsub.f32 0.0, %v3281
        %v3540 = vsub.f32 0.0, %v3284
        %v3541 = vsub.f32 0.0, %v3289
        %v3542 = vsub.f32 0.0, %v3292
        %v3543 = vsub.f32 0.0, %v3297
        %v3544 = vsub.f32 0.0, %v3300
        %v3545 = vsub.f32 0.0, %v3305
        %v3546 = vsub.f32 0.0, %v3308
        %v3547 = vsub.f32 0.0, %v3313
        %v3548 = vsub.f32 0.0, %v3316
        %v3549 = vsub.f32 0.0, %v3321
        %v3550 = vsub.f32 0.0, %v3324
        %v3551 = vsub.f32 0.0, %v3329
        %v3552 = vsub.f32 0.0, %v3332
        %v3553 = vsub.f32 0.0, %v3337
        %v3554 = vsub.f32 0.0, %v3340
        %v3555 = vsub.f32 0.0, %v3345
        %v3556 = vsub.f32 0.0, %v3348
        %v3557 = vsub.f32 0.0, %v3353
        %v3558 = vsub.f32 0.0, %v3356
        %v3559 = vsub.f32 0.0, %v3361
        %v3560 = vsub.f32 0.0, %v3364
        %v3561 = vsub.f32 0.0, %v3369
        %v3562 = vsub.f32 0.0, %v3372
        %v3563 = vsub.f32 0.0, %v3377
        %v3564 = vsub.f32 0.0, %v3380
        %v3565 = vsub.f32 0.0, %v3385
        %v3566 = vsub.f32 0.0, %v3388
        %v3567 = vsub.f32 0.0, %v3393
        %v3568 = vsub.f32 0.0, %v3396
        %v3569 = vsub.f32 0.0, %v3401
        %v3570 = vsub.f32 0.0, %v3404
        %v3571 = vsub.f32 0.0, %v3409
        %v3572 = vsub.f32 0.0, %v3412
        %v3573 = vsub.f32 0.0, %v3417
        %v3574 = vsub.f32 0.0, %v3420
        %v3575 = vsub.f32 0.0, %v3425
        %v3576 = vsub.f32 0.0, %v3428
        %v3577 = vsub.f32 0.0, %v3433
        %v3578 = vsub.f32 0.0, %v3436
        %v3579 = vsub.f32 0.0, %v3441
        %v3580 = vsub.f32 0.0, %v3444
        %v3581 = vsub.f32 0.0, %v3449
        %v3582 = vsub.f32 0.0, %v3452
        %v3583 = vmul.f32 %v3455, 1.442695
        %v3584 = vpow.pop %v3583
        %v3585 = vmul.f32 %v3456, 1.442695
        %v3586 = vpow.pop %v3585
        %v3587 = vmul.f32 %v3457, 1.442695
        %v3588 = vpow.pop %v3587
        %v3589 = vmul.f32 %v3458, 1.442695
        %v3590 = vpow.pop %v3589
        %v3591 = vmul.f32 %v3459, 1.442695
        %v3592 = vpow.pop %v3591
        %v3593 = vmul.f32 %v3460, 1.442695
        %v3594 = vpow.pop %v3593
        %v3595 = vmul.f32 %v3461, 1.442695
        %v3596 = vpow.pop %v3595
        %v3597 = vmul.f32 %v3462, 1.442695
        %v3598 = vpow.pop %v3597
        %v3599 = vmul.f32 %v3463, 1.442695
        %v3600 = vpow.pop %v3599
        %v3601 = vmul.f32 %v3464, 1.442695
        %v3602 = vpow.pop %v3601
        %v3603 = vmul.f32 %v3465, 1.442695
        %v3604 = vpow.pop %v3603
        %v3605 = vmul.f32 %v3466, 1.442695
        %v3606 = vpow.pop %v3605
        %v3607 = vmul.f32 %v3467, 1.442695
        %v3608 = vpow.pop %v3607
        %v3609 = vmul.f32 %v3468, 1.442695
        %v3610 = vpow.pop %v3609
        %v3611 = vmul.f32 %v3469, 1.442695
        %v3612 = vpow.pop %v3611
        %v3613 = vmul.f32 %v3470, 1.442695
        %v3614 = vpow.pop %v3613
        %v3615 = vmul.f32 %v3471, 1.442695
        %v3616 = vpow.pop %v3615
        %v3617 = vmul.f32 %v3472, 1.442695
        %v3618 = vpow.pop %v3617
        %v3619 = vmul.f32 %v3473, 1.442695
        %v3620 = vpow.pop %v3619
        %v3621 = vmul.f32 %v3474, 1.442695
        %v3622 = vpow.pop %v3621
        %v3623 = vmul.f32 %v3475, 1.442695
        %v3624 = vpow.pop %v3623
        %v3625 = vmul.f32 %v3476, 1.442695
        %v3626 = vpow.pop %v3625
        %v3627 = vmul.f32 %v3477, 1.442695
        %v3628 = vpow.pop %v3627
        %v3629 = vmul.f32 %v3478, 1.442695
        %v3630 = vpow.pop %v3629
        %v3631 = vmul.f32 %v3479, 1.442695
        %v3632 = vpow.pop %v3631
        %v3633 = vmul.f32 %v3480, 1.442695
        %v3634 = vpow.pop %v3633
        %v3635 = vmul.f32 %v3481, 1.442695
        %v3636 = vpow.pop %v3635
        %v3637 = vmul.f32 %v3482, 1.442695
        %v3638 = vpow.pop %v3637
        %v3639 = vmul.f32 %v3483, 1.442695
        %v3640 = vpow.pop %v3639
        %v3641 = vmul.f32 %v3484, 1.442695
        %v3642 = vpow.pop %v3641
        %v3643 = vmul.f32 %v3485, 1.442695
        %v3644 = vpow.pop %v3643
        %v3645 = vmul.f32 %v3486, 1.442695
        %v3646 = vpow.pop %v3645
        %v3647 = vmul.f32 %v3487, 1.442695
        %v3648 = vpow.pop %v3647
        %v3649 = vmul.f32 %v3488, 1.442695
        %v3650 = vpow.pop %v3649
        %v3651 = vmul.f32 %v3489, 1.442695
        %v3652 = vpow.pop %v3651
        %v3653 = vmul.f32 %v3490, 1.442695
        %v3654 = vpow.pop %v3653
        %v3655 = vmul.f32 %v3491, 1.442695
        %v3656 = vpow.pop %v3655
        %v3657 = vmul.f32 %v3492, 1.442695
        %v3658 = vpow.pop %v3657
        %v3659 = vmul.f32 %v3493, 1.442695
        %v3660 = vpow.pop %v3659
        %v3661 = vmul.f32 %v3494, 1.442695
        %v3662 = vpow.pop %v3661
        %v3663 = vmul.f32 %v3495, 1.442695
        %v3664 = vpow.pop %v3663
        %v3665 = vmul.f32 %v3496, 1.442695
        %v3666 = vpow.pop %v3665
        %v3667 = vmul.f32 %v3497, 1.442695
        %v3668 = vpow.pop %v3667
        %v3669 = vmul.f32 %v3498, 1.442695
        %v3670 = vpow.pop %v3669
        %v3671 = vmul.f32 %v3499, 1.442695
        %v3672 = vpow.pop %v3671
        %v3673 = vmul.f32 %v3500, 1.442695
        %v3674 = vpow.pop %v3673
        %v3675 = vmul.f32 %v3501, 1.442695
        %v3676 = vpow.pop %v3675
        %v3677 = vmul.f32 %v3502, 1.442695
        %v3678 = vpow.pop %v3677
        %v3679 = vmul.f32 %v3503, 1.442695
        %v3680 = vpow.pop %v3679
        %v3681 = vmul.f32 %v3504, 1.442695
        %v3682 = vpow.pop %v3681
        %v3683 = vmul.f32 %v3505, 1.442695
        %v3684 = vpow.pop %v3683
        %v3685 = vmul.f32 %v3506, 1.442695
        %v3686 = vpow.pop %v3685
        %v3687 = vmul.f32 %v3507, 1.442695
        %v3688 = vpow.pop %v3687
        %v3689 = vmul.f32 %v3508, 1.442695
        %v3690 = vpow.pop %v3689
        %v3691 = vmul.f32 %v3509, 1.442695
        %v3692 = vpow.pop %v3691
        %v3693 = vmul.f32 %v3510, 1.442695
        %v3694 = vpow.pop %v3693
        %v3695 = vmul.f32 %v3511, 1.442695
        %v3696 = vpow.pop %v3695
        %v3697 = vmul.f32 %v3512, 1.442695
        %v3698 = vpow.pop %v3697
        %v3699 = vmul.f32 %v3513, 1.442695
        %v3700 = vpow.pop %v3699
        %v3701 = vmul.f32 %v3514, 1.442695
        %v3702 = vpow.pop %v3701
        %v3703 = vmul.f32 %v3515, 1.442695
        %v3704 = vpow.pop %v3703
        %v3705 = vmul.f32 %v3516, 1.442695
        %v3706 = vpow.pop %v3705
        %v3707 = vmul.f32 %v3517, 1.442695
        %v3708 = vpow.pop %v3707
        %v3709 = vmul.f32 %v3518, 1.442695
        %v3710 = vpow.pop %v3709
        %v3711 = vmul.f32 %v3519, 1.442695
        %v3712 = vpow.pop %v3711
        %v3713 = vmul.f32 %v3520, 1.442695
        %v3714 = vpow.pop %v3713
        %v3715 = vmul.f32 %v3521, 1.442695
        %v3716 = vpow.pop %v3715
        %v3717 = vmul.f32 %v3522, 1.442695
        %v3718 = vpow.pop %v3717
        %v3719 = vmul.f32 %v3523, 1.442695
        %v3720 = vpow.pop %v3719
        %v3721 = vmul.f32 %v3524, 1.442695
        %v3722 = vpow.pop %v3721
        %v3723 = vmul.f32 %v3525, 1.442695
        %v3724 = vpow.pop %v3723
        %v3725 = vmul.f32 %v3526, 1.442695
        %v3726 = vpow.pop %v3725
        %v3727 = vmul.f32 %v3527, 1.442695
        %v3728 = vpow.pop %v3727
        %v3729 = vmul.f32 %v3528, 1.442695
        %v3730 = vpow.pop %v3729
        %v3731 = vmul.f32 %v3529, 1.442695
        %v3732 = vpow.pop %v3731
        %v3733 = vmul.f32 %v3530, 1.442695
        %v3734 = vpow.pop %v3733
        %v3735 = vmul.f32 %v3531, 1.442695
        %v3736 = vpow.pop %v3735
        %v3737 = vmul.f32 %v3532, 1.442695
        %v3738 = vpow.pop %v3737
        %v3739 = vmul.f32 %v3533, 1.442695
        %v3740 = vpow.pop %v3739
        %v3741 = vmul.f32 %v3534, 1.442695
        %v3742 = vpow.pop %v3741
        %v3743 = vmul.f32 %v3535, 1.442695
        %v3744 = vpow.pop %v3743
        %v3745 = vmul.f32 %v3536, 1.442695
        %v3746 = vpow.pop %v3745
        %v3747 = vmul.f32 %v3537, 1.442695
        %v3748 = vpow.pop %v3747
        %v3749 = vmul.f32 %v3538, 1.442695
        %v3750 = vpow.pop %v3749
        %v3751 = vmul.f32 %v3539, 1.442695
        %v3752 = vpow.pop %v3751
        %v3753 = vmul.f32 %v3540, 1.442695
        %v3754 = vpow.pop %v3753
        %v3755 = vmul.f32 %v3541, 1.442695
        %v3756 = vpow.pop %v3755
        %v3757 = vmul.f32 %v3542, 1.442695
        %v3758 = vpow.pop %v3757
        %v3759 = vmul.f32 %v3543, 1.442695
        %v3760 = vpow.pop %v3759
        %v3761 = vmul.f32 %v3544, 1.442695
        %v3762 = vpow.pop %v3761
        %v3763 = vmul.f32 %v3545, 1.442695
        %v3764 = vpow.pop %v3763
        %v3765 = vmul.f32 %v3546, 1.442695
        %v3766 = vpow.pop %v3765
        %v3767 = vmul.f32 %v3547, 1.442695
        %v3768 = vpow.pop %v3767
        %v3769 = vmul.f32 %v3548, 1.442695
        %v3770 = vpow.pop %v3769
        %v3771 = vmul.f32 %v3549, 1.442695
        %v3772 = vpow.pop %v3771
        %v3773 = vmul.f32 %v3550, 1.442695
        %v3774 = vpow.pop %v3773
        %v3775 = vmul.f32 %v3551, 1.442695
        %v3776 = vpow.pop %v3775
        %v3777 = vmul.f32 %v3552, 1.442695
        %v3778 = vpow.pop %v3777
        %v3779 = vmul.f32 %v3553, 1.442695
        %v3780 = vpow.pop %v3779
        %v3781 = vmul.f32 %v3554, 1.442695
        %v3782 = vpow.pop %v3781
        %v3783 = vmul.f32 %v3555, 1.442695
        %v3784 = vpow.pop %v3783
        %v3785 = vmul.f32 %v3556, 1.442695
        %v3786 = vpow.pop %v3785
        %v3787 = vmul.f32 %v3557, 1.442695
        %v3788 = vpow.pop %v3787
        %v3789 = vmul.f32 %v3558, 1.442695
        %v3790 = vpow.pop %v3789
        %v3791 = vmul.f32 %v3559, 1.442695
        %v3792 = vpow.pop %v3791
        %v3793 = vmul.f32 %v3560, 1.442695
        %v3794 = vpow.pop %v3793
        %v3795 = vmul.f32 %v3561, 1.442695
        %v3796 = vpow.pop %v3795
        %v3797 = vmul.f32 %v3562, 1.442695
        %v3798 = vpow.pop %v3797
        %v3799 = vmul.f32 %v3563, 1.442695
        %v3800 = vpow.pop %v3799
        %v3801 = vmul.f32 %v3564, 1.442695
        %v3802 = vpow.pop %v3801
        %v3803 = vmul.f32 %v3565, 1.442695
        %v3804 = vpow.pop %v3803
        %v3805 = vmul.f32 %v3566, 1.442695
        %v3806 = vpow.pop %v3805
        %v3807 = vmul.f32 %v3567, 1.442695
        %v3808 = vpow.pop %v3807
        %v3809 = vmul.f32 %v3568, 1.442695
        %v3810 = vpow.pop %v3809
        %v3811 = vmul.f32 %v3569, 1.442695
        %v3812 = vpow.pop %v3811
        %v3813 = vmul.f32 %v3570, 1.442695
        %v3814 = vpow.pop %v3813
        %v3815 = vmul.f32 %v3571, 1.442695
        %v3816 = vpow.pop %v3815
        %v3817 = vmul.f32 %v3572, 1.442695
        %v3818 = vpow.pop %v3817
        %v3819 = vmul.f32 %v3573, 1.442695
        %v3820 = vpow.pop %v3819
        %v3821 = vmul.f32 %v3574, 1.442695
        %v3822 = vpow.pop %v3821
        %v3823 = vmul.f32 %v3575, 1.442695
        %v3824 = vpow.pop %v3823
        %v3825 = vmul.f32 %v3576, 1.442695
        %v3826 = vpow.pop %v3825
        %v3827 = vmul.f32 %v3577, 1.442695
        %v3828 = vpow.pop %v3827
        %v3829 = vmul.f32 %v3578, 1.442695
        %v3830 = vpow.pop %v3829
        %v3831 = vmul.f32 %v3579, 1.442695
        %v3832 = vpow.pop %v3831
        %v3833 = vmul.f32 %v3580, 1.442695
        %v3834 = vpow.pop %v3833
        %v3835 = vmul.f32 %v3581, 1.442695
        %v3836 = vpow.pop %v3835
        %v3837 = vmul.f32 %v3582, 1.442695
        %v3838 = vpow.pop %v3837
        %v3839 = vadd.f32 %v3584, 1.0
        %v3840 = vadd.f32 %v3586, 1.0
        %v3841 = vadd.f32 %v3588, 1.0
        %v3842 = vadd.f32 %v3590, 1.0
        %v3843 = vadd.f32 %v3592, 1.0
        %v3844 = vadd.f32 %v3594, 1.0
        %v3845 = vadd.f32 %v3596, 1.0
        %v3846 = vadd.f32 %v3598, 1.0
        %v3847 = vadd.f32 %v3600, 1.0
        %v3848 = vadd.f32 %v3602, 1.0
        %v3849 = vadd.f32 %v3604, 1.0
        %v3850 = vadd.f32 %v3606, 1.0
        %v3851 = vadd.f32 %v3608, 1.0
        %v3852 = vadd.f32 %v3610, 1.0
        %v3853 = vadd.f32 %v3612, 1.0
        %v3854 = vadd.f32 %v3614, 1.0
        %v3855 = vadd.f32 %v3616, 1.0
        %v3856 = vadd.f32 %v3618, 1.0
        %v3857 = vadd.f32 %v3620, 1.0
        %v3858 = vadd.f32 %v3622, 1.0
        %v3859 = vadd.f32 %v3624, 1.0
        %v3860 = vadd.f32 %v3626, 1.0
        %v3861 = vadd.f32 %v3628, 1.0
        %v3862 = vadd.f32 %v3630, 1.0
        %v3863 = vadd.f32 %v3632, 1.0
        %v3864 = vadd.f32 %v3634, 1.0
        %v3865 = vadd.f32 %v3636, 1.0
        %v3866 = vadd.f32 %v3638, 1.0
        %v3867 = vadd.f32 %v3640, 1.0
        %v3868 = vadd.f32 %v3642, 1.0
        %v3869 = vadd.f32 %v3644, 1.0
        %v3870 = vadd.f32 %v3646, 1.0
        %v3871 = vadd.f32 %v3648, 1.0
        %v3872 = vadd.f32 %v3650, 1.0
        %v3873 = vadd.f32 %v3652, 1.0
        %v3874 = vadd.f32 %v3654, 1.0
        %v3875 = vadd.f32 %v3656, 1.0
        %v3876 = vadd.f32 %v3658, 1.0
        %v3877 = vadd.f32 %v3660, 1.0
        %v3878 = vadd.f32 %v3662, 1.0
        %v3879 = vadd.f32 %v3664, 1.0
        %v3880 = vadd.f32 %v3666, 1.0
        %v3881 = vadd.f32 %v3668, 1.0
        %v3882 = vadd.f32 %v3670, 1.0
        %v3883 = vadd.f32 %v3672, 1.0
        %v3884 = vadd.f32 %v3674, 1.0
        %v3885 = vadd.f32 %v3676, 1.0
        %v3886 = vadd.f32 %v3678, 1.0
        %v3887 = vadd.f32 %v3680, 1.0
        %v3888 = vadd.f32 %v3682, 1.0
        %v3889 = vadd.f32 %v3684, 1.0
        %v3890 = vadd.f32 %v3686, 1.0
        %v3891 = vadd.f32 %v3688, 1.0
        %v3892 = vadd.f32 %v3690, 1.0
        %v3893 = vadd.f32 %v3692, 1.0
        %v3894 = vadd.f32 %v3694, 1.0
        %v3895 = vadd.f32 %v3696, 1.0
        %v3896 = vadd.f32 %v3698, 1.0
        %v3897 = vadd.f32 %v3700, 1.0
        %v3898 = vadd.f32 %v3702, 1.0
        %v3899 = vadd.f32 %v3704, 1.0
        %v3900 = vadd.f32 %v3706, 1.0
        %v3901 = vadd.f32 %v3708, 1.0
        %v3902 = vadd.f32 %v3710, 1.0
        %v3903 = vadd.f32 %v3712, 1.0
        %v3904 = vadd.f32 %v3714, 1.0
        %v3905 = vadd.f32 %v3716, 1.0
        %v3906 = vadd.f32 %v3718, 1.0
        %v3907 = vadd.f32 %v3720, 1.0
        %v3908 = vadd.f32 %v3722, 1.0
        %v3909 = vadd.f32 %v3724, 1.0
        %v3910 = vadd.f32 %v3726, 1.0
        %v3911 = vadd.f32 %v3728, 1.0
        %v3912 = vadd.f32 %v3730, 1.0
        %v3913 = vadd.f32 %v3732, 1.0
        %v3914 = vadd.f32 %v3734, 1.0
        %v3915 = vadd.f32 %v3736, 1.0
        %v3916 = vadd.f32 %v3738, 1.0
        %v3917 = vadd.f32 %v3740, 1.0
        %v3918 = vadd.f32 %v3742, 1.0
        %v3919 = vadd.f32 %v3744, 1.0
        %v3920 = vadd.f32 %v3746, 1.0
        %v3921 = vadd.f32 %v3748, 1.0
        %v3922 = vadd.f32 %v3750, 1.0
        %v3923 = vadd.f32 %v3752, 1.0
        %v3924 = vadd.f32 %v3754, 1.0
        %v3925 = vadd.f32 %v3756, 1.0
        %v3926 = vadd.f32 %v3758, 1.0
        %v3927 = vadd.f32 %v3760, 1.0
        %v3928 = vadd.f32 %v3762, 1.0
        %v3929 = vadd.f32 %v3764, 1.0
        %v3930 = vadd.f32 %v3766, 1.0
        %v3931 = vadd.f32 %v3768, 1.0
        %v3932 = vadd.f32 %v3770, 1.0
        %v3933 = vadd.f32 %v3772, 1.0
        %v3934 = vadd.f32 %v3774, 1.0
        %v3935 = vadd.f32 %v3776, 1.0
        %v3936 = vadd.f32 %v3778, 1.0
        %v3937 = vadd.f32 %v3780, 1.0
        %v3938 = vadd.f32 %v3782, 1.0
        %v3939 = vadd.f32 %v3784, 1.0
        %v3940 = vadd.f32 %v3786, 1.0
        %v3941 = vadd.f32 %v3788, 1.0
        %v3942 = vadd.f32 %v3790, 1.0
        %v3943 = vadd.f32 %v3792, 1.0
        %v3944 = vadd.f32 %v3794, 1.0
        %v3945 = vadd.f32 %v3796, 1.0
        %v3946 = vadd.f32 %v3798, 1.0
        %v3947 = vadd.f32 %v3800, 1.0
        %v3948 = vadd.f32 %v3802, 1.0
        %v3949 = vadd.f32 %v3804, 1.0
        %v3950 = vadd.f32 %v3806, 1.0
        %v3951 = vadd.f32 %v3808, 1.0
        %v3952 = vadd.f32 %v3810, 1.0
        %v3953 = vadd.f32 %v3812, 1.0
        %v3954 = vadd.f32 %v3814, 1.0
        %v3955 = vadd.f32 %v3816, 1.0
        %v3956 = vadd.f32 %v3818, 1.0
        %v3957 = vadd.f32 %v3820, 1.0
        %v3958 = vadd.f32 %v3822, 1.0
        %v3959 = vadd.f32 %v3824, 1.0
        %v3960 = vadd.f32 %v3826, 1.0
        %v3961 = vadd.f32 %v3828, 1.0
        %v3962 = vadd.f32 %v3830, 1.0
        %v3963 = vadd.f32 %v3832, 1.0
        %v3964 = vadd.f32 %v3834, 1.0
        %v3965 = vadd.f32 %v3836, 1.0
        %v3966 = vadd.f32 %v3838, 1.0
        %v3967 = vrcp.pop %v3839
        %v3968 = vrcp.pop %v3840
        %v3969 = vrcp.pop %v3841
        %v3970 = vrcp.pop %v3842
        %v3971 = vrcp.pop %v3843
        %v3972 = vrcp.pop %v3844
        %v3973 = vrcp.pop %v3845
        %v3974 = vrcp.pop %v3846
        %v3975 = vrcp.pop %v3847
        %v3976 = vrcp.pop %v3848
        %v3977 = vrcp.pop %v3849
        %v3978 = vrcp.pop %v3850
        %v3979 = vrcp.pop %v3851
        %v3980 = vrcp.pop %v3852
        %v3981 = vrcp.pop %v3853
        %v3982 = vrcp.pop %v3854
        %v3983 = vrcp.pop %v3855
        %v3984 = vrcp.pop %v3856
        %v3985 = vrcp.pop %v3857
        %v3986 = vrcp.pop %v3858
        %v3987 = vrcp.pop %v3859
        %v3988 = vrcp.pop %v3860
        %v3989 = vrcp.pop %v3861
        %v3990 = vrcp.pop %v3862
        %v3991 = vrcp.pop %v3863
        %v3992 = vrcp.pop %v3864
        %v3993 = vrcp.pop %v3865
        %v3994 = vrcp.pop %v3866
        %v3995 = vrcp.pop %v3867
        %v3996 = vrcp.pop %v3868
        %v3997 = vrcp.pop %v3869
        %v3998 = vrcp.pop %v3870
        %v3999 = vrcp.pop %v3871
        %v4000 = vrcp.pop %v3872
        %v4001 = vrcp.pop %v3873
        %v4002 = vrcp.pop %v3874
        %v4003 = vrcp.pop %v3875
        %v4004 = vrcp.pop %v3876
        %v4005 = vrcp.pop %v3877
        %v4006 = vrcp.pop %v3878
        %v4007 = vrcp.pop %v3879
        %v4008 = vrcp.pop %v3880
        %v4009 = vrcp.pop %v3881
        %v4010 = vrcp.pop %v3882
        %v4011 = vrcp.pop %v3883
        %v4012 = vrcp.pop %v3884
        %v4013 = vrcp.pop %v3885
        %v4014 = vrcp.pop %v3886
        %v4015 = vrcp.pop %v3887
        %v4016 = vrcp.pop %v3888
        %v4017 = vrcp.pop %v3889
        %v4018 = vrcp.pop %v3890
        %v4019 = vrcp.pop %v3891
        %v4020 = vrcp.pop %v3892
        %v4021 = vrcp.pop %v3893
        %v4022 = vrcp.pop %v3894
        %v4023 = vrcp.pop %v3895
        %v4024 = vrcp.pop %v3896
        %v4025 = vrcp.pop %v3897
        %v4026 = vrcp.pop %v3898
        %v4027 = vrcp.pop %v3899
        %v4028 = vrcp.pop %v3900
        %v4029 = vrcp.pop %v3901
        %v4030 = vrcp.pop %v3902
        %v4031 = vrcp.pop %v3903
        %v4032 = vrcp.pop %v3904
        %v4033 = vrcp.pop %v3905
        %v4034 = vrcp.pop %v3906
        %v4035 = vrcp.pop %v3907
        %v4036 = vrcp.pop %v3908
        %v4037 = vrcp.pop %v3909
        %v4038 = vrcp.pop %v3910
        %v4039 = vrcp.pop %v3911
        %v4040 = vrcp.pop %v3912
        %v4041 = vrcp.pop %v3913
        %v4042 = vrcp.pop %v3914
        %v4043 = vrcp.pop %v3915
        %v4044 = vrcp.pop %v3916
        %v4045 = vrcp.pop %v3917
        %v4046 = vrcp.pop %v3918
        %v4047 = vrcp.pop %v3919
        %v4048 = vrcp.pop %v3920
        %v4049 = vrcp.pop %v3921
        %v4050 = vrcp.pop %v3922
        %v4051 = vrcp.pop %v3923
        %v4052 = vrcp.pop %v3924
        %v4053 = vrcp.pop %v3925
        %v4054 = vrcp.pop %v3926
        %v4055 = vrcp.pop %v3927
        %v4056 = vrcp.pop %v3928
        %v4057 = vrcp.pop %v3929
        %v4058 = vrcp.pop %v3930
        %v4059 = vrcp.pop %v3931
        %v4060 = vrcp.pop %v3932
        %v4061 = vrcp.pop %v3933
        %v4062 = vrcp.pop %v3934
        %v4063 = vrcp.pop %v3935
        %v4064 = vrcp.pop %v3936
        %v4065 = vrcp.pop %v3937
        %v4066 = vrcp.pop %v3938
        %v4067 = vrcp.pop %v3939
        %v4068 = vrcp.pop %v3940
        %v4069 = vrcp.pop %v3941
        %v4070 = vrcp.pop %v3942
        %v4071 = vrcp.pop %v3943
        %v4072 = vrcp.pop %v3944
        %v4073 = vrcp.pop %v3945
        %v4074 = vrcp.pop %v3946
        %v4075 = vrcp.pop %v3947
        %v4076 = vrcp.pop %v3948
        %v4077 = vrcp.pop %v3949
        %v4078 = vrcp.pop %v3950
        %v4079 = vrcp.pop %v3951
        %v4080 = vrcp.pop %v3952
        %v4081 = vrcp.pop %v3953
        %v4082 = vrcp.pop %v3954
        %v4083 = vrcp.pop %v3955
        %v4084 = vrcp.pop %v3956
        %v4085 = vrcp.pop %v3957
        %v4086 = vrcp.pop %v3958
        %v4087 = vrcp.pop %v3959
        %v4088 = vrcp.pop %v3960
        %v4089 = vrcp.pop %v3961
        %v4090 = vrcp.pop %v3962
        %v4091 = vrcp.pop %v3963
        %v4092 = vrcp.pop %v3964
        %v4093 = vrcp.pop %v3965
        %v4094 = vrcp.pop %v3966
        %v4095 = vmul.f32 %v2945, %v3967
        %v4096 = vmul.f32 %v2948, %v3968
        %v4097 = vmul.f32 %v2953, %v3969
        %v4098 = vmul.f32 %v2956, %v3970
        %v4099 = vmul.f32 %v2961, %v3971
        %v4100 = vmul.f32 %v2964, %v3972
        %v4101 = vmul.f32 %v2969, %v3973
        %v4102 = vmul.f32 %v2972, %v3974
        %v4103 = vmul.f32 %v2977, %v3975
        %v4104 = vmul.f32 %v2980, %v3976
        %v4105 = vmul.f32 %v2985, %v3977
        %v4106 = vmul.f32 %v2988, %v3978
        %v4107 = vmul.f32 %v2993, %v3979
        %v4108 = vmul.f32 %v2996, %v3980
        %v4109 = vmul.f32 %v3001, %v3981
        %v4110 = vmul.f32 %v3004, %v3982
        %v4111 = vmul.f32 %v3009, %v3983
        %v4112 = vmul.f32 %v3012, %v3984
        %v4113 = vmul.f32 %v3017, %v3985
        %v4114 = vmul.f32 %v3020, %v3986
        %v4115 = vmul.f32 %v3025, %v3987
        %v4116 = vmul.f32 %v3028, %v3988
        %v4117 = vmul.f32 %v3033, %v3989
        %v4118 = vmul.f32 %v3036, %v3990
        %v4119 = vmul.f32 %v3041, %v3991
        %v4120 = vmul.f32 %v3044, %v3992
        %v4121 = vmul.f32 %v3049, %v3993
        %v4122 = vmul.f32 %v3052, %v3994
        %v4123 = vmul.f32 %v3057, %v3995
        %v4124 = vmul.f32 %v3060, %v3996
        %v4125 = vmul.f32 %v3065, %v3997
        %v4126 = vmul.f32 %v3068, %v3998
        %v4127 = vmul.f32 %v3073, %v3999
        %v4128 = vmul.f32 %v3076, %v4000
        %v4129 = vmul.f32 %v3081, %v4001
        %v4130 = vmul.f32 %v3084, %v4002
        %v4131 = vmul.f32 %v3089, %v4003
        %v4132 = vmul.f32 %v3092, %v4004
        %v4133 = vmul.f32 %v3097, %v4005
        %v4134 = vmul.f32 %v3100, %v4006
        %v4135 = vmul.f32 %v3105, %v4007
        %v4136 = vmul.f32 %v3108, %v4008
        %v4137 = vmul.f32 %v3113, %v4009
        %v4138 = vmul.f32 %v3116, %v4010
        %v4139 = vmul.f32 %v3121, %v4011
        %v4140 = vmul.f32 %v3124, %v4012
        %v4141 = vmul.f32 %v3129, %v4013
        %v4142 = vmul.f32 %v3132, %v4014
        %v4143 = vmul.f32 %v3137, %v4015
        %v4144 = vmul.f32 %v3140, %v4016
        %v4145 = vmul.f32 %v3145, %v4017
        %v4146 = vmul.f32 %v3148, %v4018
        %v4147 = vmul.f32 %v3153, %v4019
        %v4148 = vmul.f32 %v3156, %v4020
        %v4149 = vmul.f32 %v3161, %v4021
        %v4150 = vmul.f32 %v3164, %v4022
        %v4151 = vmul.f32 %v3169, %v4023
        %v4152 = vmul.f32 %v3172, %v4024
        %v4153 = vmul.f32 %v3177, %v4025
        %v4154 = vmul.f32 %v3180, %v4026
        %v4155 = vmul.f32 %v3185, %v4027
        %v4156 = vmul.f32 %v3188, %v4028
        %v4157 = vmul.f32 %v3193, %v4029
        %v4158 = vmul.f32 %v3196, %v4030
        %v4159 = vmul.f32 %v3201, %v4031
        %v4160 = vmul.f32 %v3204, %v4032
        %v4161 = vmul.f32 %v3209, %v4033
        %v4162 = vmul.f32 %v3212, %v4034
        %v4163 = vmul.f32 %v3217, %v4035
        %v4164 = vmul.f32 %v3220, %v4036
        %v4165 = vmul.f32 %v3225, %v4037
        %v4166 = vmul.f32 %v3228, %v4038
        %v4167 = vmul.f32 %v3233, %v4039
        %v4168 = vmul.f32 %v3236, %v4040
        %v4169 = vmul.f32 %v3241, %v4041
        %v4170 = vmul.f32 %v3244, %v4042
        %v4171 = vmul.f32 %v3249, %v4043
        %v4172 = vmul.f32 %v3252, %v4044
        %v4173 = vmul.f32 %v3257, %v4045
        %v4174 = vmul.f32 %v3260, %v4046
        %v4175 = vmul.f32 %v3265, %v4047
        %v4176 = vmul.f32 %v3268, %v4048
        %v4177 = vmul.f32 %v3273, %v4049
        %v4178 = vmul.f32 %v3276, %v4050
        %v4179 = vmul.f32 %v3281, %v4051
        %v4180 = vmul.f32 %v3284, %v4052
        %v4181 = vmul.f32 %v3289, %v4053
        %v4182 = vmul.f32 %v3292, %v4054
        %v4183 = vmul.f32 %v3297, %v4055
        %v4184 = vmul.f32 %v3300, %v4056
        %v4185 = vmul.f32 %v3305, %v4057
        %v4186 = vmul.f32 %v3308, %v4058
        %v4187 = vmul.f32 %v3313, %v4059
        %v4188 = vmul.f32 %v3316, %v4060
        %v4189 = vmul.f32 %v3321, %v4061
        %v4190 = vmul.f32 %v3324, %v4062
        %v4191 = vmul.f32 %v3329, %v4063
        %v4192 = vmul.f32 %v3332, %v4064
        %v4193 = vmul.f32 %v3337, %v4065
        %v4194 = vmul.f32 %v3340, %v4066
        %v4195 = vmul.f32 %v3345, %v4067
        %v4196 = vmul.f32 %v3348, %v4068
        %v4197 = vmul.f32 %v3353, %v4069
        %v4198 = vmul.f32 %v3356, %v4070
        %v4199 = vmul.f32 %v3361, %v4071
        %v4200 = vmul.f32 %v3364, %v4072
        %v4201 = vmul.f32 %v3369, %v4073
        %v4202 = vmul.f32 %v3372, %v4074
        %v4203 = vmul.f32 %v3377, %v4075
        %v4204 = vmul.f32 %v3380, %v4076
        %v4205 = vmul.f32 %v3385, %v4077
        %v4206 = vmul.f32 %v3388, %v4078
        %v4207 = vmul.f32 %v3393, %v4079
        %v4208 = vmul.f32 %v3396, %v4080
        %v4209 = vmul.f32 %v3401, %v4081
        %v4210 = vmul.f32 %v3404, %v4082
        %v4211 = vmul.f32 %v3409, %v4083
        %v4212 = vmul.f32 %v3412, %v4084
        %v4213 = vmul.f32 %v3417, %v4085
        %v4214 = vmul.f32 %v3420, %v4086
        %v4215 = vmul.f32 %v3425, %v4087
        %v4216 = vmul.f32 %v3428, %v4088
        %v4217 = vmul.f32 %v3433, %v4089
        %v4218 = vmul.f32 %v3436, %v4090
        %v4219 = vmul.f32 %v3441, %v4091
        %v4220 = vmul.f32 %v3444, %v4092
        %v4221 = vmul.f32 %v3449, %v4093
        %v4222 = vmul.f32 %v3452, %v4094
        %v4223 = vld [vmem:[#allocation2] sm:$0x3]
        %v4224 = vadd.f32 %v4095, %v4096
        %v4225 = vadd.f32 %v4224, %v4097
        %v4226 = vadd.f32 %v4225, %v4098
        %v4227 = vadd.f32 %v4226, %v4099
        %v4228 = vadd.f32 %v4227, %v4100
        %v4229 = vadd.f32 %v4228, %v4101
        %v4230 = vadd.f32 %v4229, %v4102
        %v4231 = vadd.f32 %v4230, %v4103
        %v4232 = vadd.f32 %v4231, %v4104
        %v4233 = vadd.f32 %v4232, %v4105
        %v4234 = vadd.f32 %v4233, %v4106
        %v4235 = vadd.f32 %v4234, %v4107
        %v4236 = vadd.f32 %v4235, %v4108
        %v4237 = vadd.f32 %v4236, %v4109
        %v4238 = vadd.f32 %v4237, %v4110
        %v4239 = vadd.f32 %v4238, %v4111
        %v4240 = vadd.f32 %v4239, %v4112
        %v4241 = vadd.f32 %v4240, %v4113
        %v4242 = vadd.f32 %v4241, %v4114
        %v4243 = vadd.f32 %v4242, %v4115
        %v4244 = vadd.f32 %v4243, %v4116
        %v4245 = vadd.f32 %v4244, %v4117
        %v4246 = vadd.f32 %v4245, %v4118
        %v4247 = vadd.f32 %v4246, %v4119
        %v4248 = vadd.f32 %v4247, %v4120
        %v4249 = vadd.f32 %v4248, %v4121
        %v4250 = vadd.f32 %v4249, %v4122
        %v4251 = vadd.f32 %v4250, %v4123
        %v4252 = vadd.f32 %v4251, %v4124
        %v4253 = vadd.f32 %v4252, %v4125
        %v4254 = vadd.f32 %v4253, %v4126
        %v4255 = vadd.f32 %v4254, %v4127
        %v4256 = vadd.f32 %v4255, %v4128
        %v4257 = vadd.f32 %v4256, %v4129
        %v4258 = vadd.f32 %v4257, %v4130
        %v4259 = vadd.f32 %v4258, %v4131
        %v4260 = vadd.f32 %v4259, %v4132
        %v4261 = vadd.f32 %v4260, %v4133
        %v4262 = vadd.f32 %v4261, %v4134
        %v4263 = vadd.f32 %v4262, %v4135
        %v4264 = vadd.f32 %v4263, %v4136
        %v4265 = vadd.f32 %v4264, %v4137
        %v4266 = vadd.f32 %v4265, %v4138
        %v4267 = vadd.f32 %v4266, %v4139
        %v4268 = vadd.f32 %v4267, %v4140
        %v4269 = vadd.f32 %v4268, %v4141
        %v4270 = vadd.f32 %v4269, %v4142
        %v4271 = vadd.f32 %v4270, %v4143
        %v4272 = vadd.f32 %v4271, %v4144
        %v4273 = vadd.f32 %v4272, %v4145
        %v4274 = vadd.f32 %v4273, %v4146
        %v4275 = vadd.f32 %v4274, %v4147
        %v4276 = vadd.f32 %v4275, %v4148
        %v4277 = vadd.f32 %v4276, %v4149
        %v4278 = vadd.f32 %v4277, %v4150
        %v4279 = vadd.f32 %v4278, %v4151
        %v4280 = vadd.f32 %v4279, %v4152
        %v4281 = vadd.f32 %v4280, %v4153
        %v4282 = vadd.f32 %v4281, %v4154
        %v4283 = vadd.f32 %v4282, %v4155
        %v4284 = vadd.f32 %v4283, %v4156
        %v4285 = vadd.f32 %v4284, %v4157
        %v4286 = vadd.f32 %v4285, %v4158
        %v4287 = vrot.slane %v4286, 4
        %v4288 = vadd.f32 %v4286, %v4287
        %v4289 = vrot.slane %v4288, 2
        %v4290 = vadd.f32 %v4288, %v4289
        %v4291 = vrot.slane %v4290, 1
        %v4292 = vadd.f32 %v4290, %v4291
        %v4293 = vadd.f32 %v4159, %v4160
        %v4294 = vadd.f32 %v4293, %v4161
        %v4295 = vadd.f32 %v4294, %v4162
        %v4296 = vadd.f32 %v4295, %v4163
        %v4297 = vadd.f32 %v4296, %v4164
        %v4298 = vadd.f32 %v4297, %v4165
        %v4299 = vadd.f32 %v4298, %v4166
        %v4300 = vadd.f32 %v4299, %v4167
        %v4301 = vadd.f32 %v4300, %v4168
        %v4302 = vadd.f32 %v4301, %v4169
        %v4303 = vadd.f32 %v4302, %v4170
        %v4304 = vadd.f32 %v4303, %v4171
        %v4305 = vadd.f32 %v4304, %v4172
        %v4306 = vadd.f32 %v4305, %v4173
        %v4307 = vadd.f32 %v4306, %v4174
        %v4308 = vadd.f32 %v4307, %v4175
        %v4309 = vadd.f32 %v4308, %v4176
        %v4310 = vadd.f32 %v4309, %v4177
        %v4311 = vadd.f32 %v4310, %v4178
        %v4312 = vadd.f32 %v4311, %v4179
        %v4313 = vadd.f32 %v4312, %v4180
        %v4314 = vadd.f32 %v4313, %v4181
        %v4315 = vadd.f32 %v4314, %v4182
        %v4316 = vadd.f32 %v4315, %v4183
        %v4317 = vadd.f32 %v4316, %v4184
        %v4318 = vadd.f32 %v4317, %v4185
        %v4319 = vadd.f32 %v4318, %v4186
        %v4320 = vadd.f32 %v4319, %v4187
        %v4321 = vadd.f32 %v4320, %v4188
        %v4322 = vadd.f32 %v4321, %v4189
        %v4323 = vadd.f32 %v4322, %v4190
        %v4324 = vadd.f32 %v4323, %v4191
        %v4325 = vadd.f32 %v4324, %v4192
        %v4326 = vadd.f32 %v4325, %v4193
        %v4327 = vadd.f32 %v4326, %v4194
        %v4328 = vadd.f32 %v4327, %v4195
        %v4329 = vadd.f32 %v4328, %v4196
        %v4330 = vadd.f32 %v4329, %v4197
        %v4331 = vadd.f32 %v4330, %v4198
        %v4332 = vadd.f32 %v4331, %v4199
        %v4333 = vadd.f32 %v4332, %v4200
        %v4334 = vadd.f32 %v4333, %v4201
        %v4335 = vadd.f32 %v4334, %v4202
        %v4336 = vadd.f32 %v4335, %v4203
        %v4337 = vadd.f32 %v4336, %v4204
        %v4338 = vadd.f32 %v4337, %v4205
        %v4339 = vadd.f32 %v4338, %v4206
        %v4340 = vadd.f32 %v4339, %v4207
        %v4341 = vadd.f32 %v4340, %v4208
        %v4342 = vadd.f32 %v4341, %v4209
        %v4343 = vadd.f32 %v4342, %v4210
        %v4344 = vadd.f32 %v4343, %v4211
        %v4345 = vadd.f32 %v4344, %v4212
        %v4346 = vadd.f32 %v4345, %v4213
        %v4347 = vadd.f32 %v4346, %v4214
        %v4348 = vadd.f32 %v4347, %v4215
        %v4349 = vadd.f32 %v4348, %v4216
        %v4350 = vadd.f32 %v4349, %v4217
        %v4351 = vadd.f32 %v4350, %v4218
        %v4352 = vadd.f32 %v4351, %v4219
        %v4353 = vadd.f32 %v4352, %v4220
        %v4354 = vadd.f32 %v4353, %v4221
        %v4355 = vadd.f32 %v4354, %v4222
        %v4356 = vrot.slane %v4355, 4
        %v4357 = vadd.f32 %v4355, %v4356
        %v4358 = vrot.slane %v4357, 2
        %v4359 = vadd.f32 %v4357, %v4358
        %v4360 = vrot.slane %v4359, 1
        %v4361 = vadd.f32 %v4359, %v4360
        %vm4364 = vcmask 1041409
        %v4365 = vsel %vm4364, %v4361, %v4292
        %v4367 = vadd.f32 %v4223, %v4365
        %4368 = vst [vmem:[#allocation2] sm:$0x3] %v4367
        // Predicated region
        $region86: #{effnet_melanoma_forward.2} parent=76 // pred_check
          %p4369 = pneg %p793
        $region87: #{effnet_melanoma_forward.2} parent=76 // pred_check_branch
          %4371 = sbr.rel (%p4369) target = $region89
        $region88: #{effnet_melanoma_forward.2} parent=76 // pred_region
          %v4372 = vld [vmem:[#allocation2] sm:$0x3]
          %v4373 = vmul.f32 %v4372, 0.0009765625
          %4374 = vst [vmem:[%s791] sm:$0x3] %v4373
        $region89: #{effnet_melanoma_forward.2} parent=76 // pred_fallthru
          _
        %p4375 = scmp.lt.s32.totalorder %s20, 1
        %s4376 = scalar_select %p4375, %s20, 1
        %s4377 = smul.addr %s4376, 2
        %s4378 = scalar_lea.vmem %s5, %s4377
        // Predicated region
        $region90: #{effnet_melanoma_forward.2} parent=76 // pred_check
          %p4379 = pneg %p158
        $region91: #{effnet_melanoma_forward.2} parent=76 // pred_check_branch
          %4381 = sbr.rel (%p4379) target = $region93
        $region92: #{effnet_melanoma_forward.2} parent=76 // pred_region
          _
        $region93: #{effnet_melanoma_forward.2} parent=76 // pred_fallthru
          _
      $region77: #{effnet_melanoma_forward.2} parent=5 // pred_fallthru
        _
      %p4382 = scmp.le.s32.totalorder 2, %s11
      // Predicated region
      $region94: #{effnet_melanoma_forward.2} parent=5 // pred_check
        %p4383 = pneg %p4382
      $region95: #{effnet_melanoma_forward.2} parent=5 // pred_check_branch
        %4385 = sbr.rel (%p4383) target = $region97
      $region96: #{effnet_melanoma_forward.2} parent=5 // pred_region
        %s4386 = ssub.s32 %s11, 2
        // Predicated region
        $region98: #{effnet_melanoma_forward.2} parent=96 // pred_check
          %p4387 = pneg %p164
        $region99: #{effnet_melanoma_forward.2} parent=96 // pred_check_branch
          %4389 = sbr.rel (%p4387) target = $region101
        $region100: #{effnet_melanoma_forward.2} parent=96 // pred_region
          %p4390 = scmp.lt.s32.totalorder %s22, 1
          %s4391 = scalar_select %p4390, %s22, 1
          %s4392 = smul.addr %s4391, 2
          %s4393 = scalar_lea.vmem %s5, %s4392
        $region101: #{effnet_melanoma_forward.2} parent=96 // pred_fallthru
          _
      $region97: #{effnet_melanoma_forward.2} parent=5 // pred_fallthru
        _
    $region6: #{effnet_melanoma_forward.2} parent=1 // loop_footer
      %s15 = sadd.s32 1, %s11
    $region7: #{effnet_melanoma_forward.2} parent=1 // loop_footer_branch
      %10 = sbr.rel target = $region3
    $region8: #{effnet_melanoma_forward.2} parent=1 // loop_exit
      _

</llo_original>
